<compile_context>
chip_gen: v5e
topology: v5e:2x2
jax: 0.10.0
libtpu: 0.0.40
codegen_flags: <defaults>
</compile_context>

<pallas_src>
import jax
import jax.numpy as jnp
import numpy as np
from jax import lax
from jax.experimental import pallas as pl
from jax.experimental.pallas import tpu as pltpu

EPS = 1e-5
LANE = 128


def _rup(x, m):
    return (x + m - 1) // m * m


def _pick_row_tile(rows, target=256):
    """Largest multiple-of-8 tile <= target that evenly divides `rows`."""
    t = min(target, rows)
    t -= t % 8
    while t >= 8:
        if rows % t == 0:
            return t
        t -= 8
    return rows


def _write_stats(st_ref, h):
    """Per-tile BN partials: row0 = per-channel sum, row1 = sum of squares."""
    c = h.shape[-1]
    s = jnp.sum(h, axis=0, keepdims=True)
    sq = jnp.sum(h * h, axis=0, keepdims=True)
    st_ref[...] = jnp.concatenate(
        [s, sq, jnp.zeros((6, c), jnp.float32)], axis=0)[None]


# ---------------- pass 1: conv1x1 + bn1 partial stats ------------------------
def _conv1x1_stats_kernel(x_ref, w_ref, h_ref, st_ref):
    h = jnp.dot(x_ref[...].astype(jnp.bfloat16), w_ref[...],
                preferred_element_type=jnp.float32)
    h_ref[...] = h
    _write_stats(st_ref, h)


# ---------------- pass 2: bn1 apply + relu + conv3x3 + bn2 stats -------------
def _conv3x3_stats_kernel(h1_ref, sc_ref, sh_ref, w2_ref, h2_ref, st_ref,
                          pad_ref):
    _, H, W, C = h1_ref.shape
    # bn1 apply (scale/shift precomputed in the wrapper; rsqrt folded into
    # scale, so no per-tile transcendental / broadcast work) + ReLU.
    a1 = jnp.maximum(h1_ref[0] * sc_ref[0] + sh_ref[0], 0.0)      # (H,W,C) f32

    # Build the zero-padded image ONCE into a VMEM scratch (no 9 shifted
    # concatenate copies of the full image as before).
    zrow = jnp.zeros((1, W + 2, C), jnp.float32)
    zcol = jnp.zeros((H, 1, C), jnp.float32)
    a1p = jnp.concatenate([zcol, a1, zcol], axis=1)               # (H, W+2, C)
    pad_ref[...] = jnp.concatenate([zrow, a1p, zrow], axis=0)     # (H+2,W+2,C)

    # 3x3 conv as 3 K-merged MXU matmuls: contract over (kx, cin) = 3*C lanes,
    # i.e. 3 matmuls of depth 3*C instead of 9 matmuls of depth C.
    acc = jnp.zeros((H * W, C), jnp.float32)
    for ky in range(3):                       # static unroll
        win = pad_ref[ky:ky + H]              # (H, W+2, C) leading-dim slice
        tap = jnp.concatenate(
            [win[:, 0:W], win[:, 1:W + 1], win[:, 2:W + 2]], axis=-1)
        acc = acc + jnp.dot(tap.reshape(H * W, 3 * C).astype(jnp.bfloat16),
                            w2_ref[ky], preferred_element_type=jnp.float32)
    h2_ref[...] = acc.reshape(1, H, W, C)
    _write_stats(st_ref, acc)


# ---------------- pass 3: bn2 apply + relu + conv1x1 + bn3 stats -------------
def _bn_conv1x1_stats_kernel(h_ref, sc_ref, sh_ref, w_ref, o_ref, st_ref):
    a = jnp.maximum(h_ref[...] * sc_ref[...] + sh_ref[...], 0.0)
    h = jnp.dot(a.astype(jnp.bfloat16), w_ref[...],
                preferred_element_type=jnp.float32)
    o_ref[...] = h
    _write_stats(st_ref, h)


# ---------------- pass 4: bn3 apply + residual add + relu --------------------
def _bn_residual_relu_kernel(h_ref, x_ref, sc_ref, sh_ref, o_ref):
    y = h_ref[...] * sc_ref[...] + sh_ref[...]
    o_ref[...] = jnp.maximum(x_ref[...] + y, 0.0)


def _finalize_bn(stats, g, b, count):
    """(sum, sumsq) partial tiles -> BN scale/shift (training mode, biased var)."""
    s = jnp.sum(stats[:, 0, :], axis=0)
    sq = jnp.sum(stats[:, 1, :], axis=0)
    mean = s / count
    var = jnp.maximum(sq / count - mean * mean, 0.0)   # clamp fp cancellation
    scale = g * lax.rsqrt(var + EPS)[None, :]
    shift = b - mean[None, :] * scale
    return scale, shift


def bottleneck_pallas_nhwc(x, params, row_tile=256):
    """Bottleneck forward on NHWC input (no layout transposes needed)."""
    N, H, W, Cin = x.shape
    P = params["w1"].shape[1]
    Cout = params["w3"].shape[1]
    if Cin != Cout:
        # TODO(synk): downsample / stride>1 projection shortcut not implemented;
        # only the module's default config (stride=1, downsample=None) is covered.
        raise ValueError("identity skip requires inplanes == 4 * planes")

    cinp, pp, coutp = _rup(Cin, LANE), _rup(P, LANE), _rup(Cout, LANE)
    R = N * H * W
    tr = _pick_row_tile(R, row_tile)
    G = R // tr
    count = float(R)
    f32, bf16 = jnp.float32, jnp.bfloat16

    # Lane-dense (multiple-of-128) channel padding; weights in bf16 for the MXU.
    # Padded gamma/beta are zero so padded channels stay exactly zero end-to-end.
    w1 = jnp.pad(params["w1"], ((0, cinp - Cin), (0, pp - P))).astype(bf16)
    w2 = jnp.pad(params["w2"],
                 ((0, 0), (0, 0), (0, pp - P), (0, pp - P))
                 ).reshape(3, 3 * pp, pp).astype(bf16)
    w3 = jnp.pad(params["w3"], ((0, pp - P), (0, coutp - Cout))).astype(bf16)
    padc = lambda v, c: jnp.pad(v, ((0, 0), (0, c - v.shape[1]))).astype(f32)
    g1, b1 = padc(params["g1"], pp), padc(params["b1"], pp)
    g2, b2 = padc(params["g2"], pp), padc(params["b2"], pp)
    g3, b3 = padc(params["g3"], coutp), padc(params["b3"], coutp)

    x_flat = jnp.pad(x.astype(f32),
                     ((0, 0), (0, 0), (0, 0), (0, cinp - Cin))).reshape(R, cinp)

    par = pltpu.CompilerParams(dimension_semantics=("parallel",))

    # ---- pass 1: conv1 + bn1 partial stats ----------------------------------
    h1_flat, st1 = pl.pallas_call(
        _conv1x1_stats_kernel,
        grid=(G,),
        in_specs=[pl.BlockSpec((tr, cinp), lambda i: (i, 0)),
                  pl.BlockSpec((cinp, pp), lambda i: (0, 0))],
        out_specs=[pl.BlockSpec((tr, pp), lambda i: (i, 0)),
                   pl.BlockSpec((1, 8, pp), lambda i: (i, 0, 0))],
        out_shape=[jax.ShapeDtypeStruct((R, pp), f32),
                   jax.ShapeDtypeStruct((G, 8, pp), f32)],
        compiler_params=par,
    )(x_flat, w1)
    sc1, sh1 = _finalize_bn(st1, g1, b1, count)

    # ---- pass 2: bn1 apply + relu + conv2 (3x3) + bn2 partial stats ----------
    h1_img = h1_flat.reshape(N, H, W, pp)
    h2_img, st2 = pl.pallas_call(
        _conv3x3_stats_kernel,
        grid=(N,),
        in_specs=[pl.BlockSpec((1, H, W, pp), lambda n: (n, 0, 0, 0)),
                  pl.BlockSpec((1, pp), lambda n: (0, 0)),
                  pl.BlockSpec((1, pp), lambda n: (0, 0)),
                  pl.BlockSpec((3, 3 * pp, pp), lambda n: (0, 0, 0))],
        out_specs=[pl.BlockSpec((1, H, W, pp), lambda n: (n, 0, 0, 0)),
                   pl.BlockSpec((1, 8, pp), lambda n: (n, 0, 0))],
        out_shape=[jax.ShapeDtypeStruct((N, H, W, pp), f32),
                   jax.ShapeDtypeStruct((N, 8, pp), f32)],
        scratch_shapes=[pltpu.VMEM((H + 2, W + 2, pp), f32)],
        compiler_params=par,
    )(h1_img, sc1, sh1, w2)
    sc2, sh2 = _finalize_bn(st2, g2, b2, count)

    # ---- pass 3: bn2 apply + relu + conv3 (1x1) + bn3 partial stats ----------
    h2_flat = h2_img.reshape(R, pp)
    h3_flat, st3 = pl.pallas_call(
        _bn_conv1x1_stats_kernel,
        grid=(G,),
        in_specs=[pl.BlockSpec((tr, pp), lambda i: (i, 0)),
                  pl.BlockSpec((1, pp), lambda i: (0, 0)),
                  pl.BlockSpec((1, pp), lambda i: (0, 0)),
                  pl.BlockSpec((pp, coutp), lambda i: (0, 0))],
        out_specs=[pl.BlockSpec((tr, coutp), lambda i: (i, 0)),
                   pl.BlockSpec((1, 8, coutp), lambda i: (i, 0, 0))],
        out_shape=[jax.ShapeDtypeStruct((R, coutp), f32),
                   jax.ShapeDtypeStruct((G, 8, coutp), f32)],
        compiler_params=par,
    )(h2_flat, sc2, sh2, w3)
    sc3, sh3 = _finalize_bn(st3, g3, b3, count)

    # ---- pass 4: bn3 apply + residual add + relu ------------------------------
    out_flat = pl.pallas_call(
        _bn_residual_relu_kernel,
        grid=(G,),
        in_specs=[pl.BlockSpec((tr, coutp), lambda i: (i, 0)),
                  pl.BlockSpec((tr, coutp), lambda i: (i, 0)),   # cinp == coutp
                  pl.BlockSpec((1, coutp), lambda i: (0, 0)),
                  pl.BlockSpec((1, coutp), lambda i: (0, 0))],
        out_specs=pl.BlockSpec((tr, coutp), lambda i: (i, 0)),
        out_shape=jax.ShapeDtypeStruct((R, coutp), f32),
        compiler_params=par,
    )(h3_flat, x_flat, sc3, sh3)

    return out_flat.reshape(N, H, W, coutp)[..., :Cout]


@jax.jit
def bottleneck_pallas(x_nchw, params):
    # PyTorch-layout entry point; the transposes only exist to match the
    # nn.Module NCHW API (keep activations NHWC end-to-end in a real network).
    x = jnp.transpose(x_nchw, (0, 2, 3, 1))
    out = bottleneck_pallas_nhwc(x, params)
    return jnp.transpose(out, (0, 3, 1, 2))


def make_params(key, inplanes, planes):
    # Deterministic synthetic init (shapes match the nn.Module's __init__).
    ks = jax.random.split(key, 9)
    exp = 4 * planes
    return {
        # conv weights stored as (cin, cout) / (kh, kw, cin, cout) for NHWC
        "w1": jax.random.normal(ks[0], (inplanes, planes), jnp.float32) * 0.1,
        "w2": jax.random.normal(ks[1], (3, 3, planes, planes), jnp.float32) * 0.1,
        "w3": jax.random.normal(ks[2], (planes, exp), jnp.float32) * 0.1,
        # BatchNorm affine params, shape (1, C)
        "g1": 1.0 + 0.1 * jax.random.normal(ks[3], (1, planes), jnp.float32),
        "b1": 0.1 * jax.random.normal(ks[4], (1, planes), jnp.float32),
        "g2": 1.0 + 0.1 * jax.random.normal(ks[5], (1, planes), jnp.float32),
        "b2": 0.1 * jax.random.normal(ks[6], (1, planes), jnp.float32),
        "g3": 1.0 + 0.1 * jax.random.normal(ks[7], (1, exp), jnp.float32),
        "b3": 0.1 * jax.random.normal(ks[8], (1, exp), jnp.float32),
    }


def bottleneck_reference_nhwc(x, params):
    # Pure-JAX reference with the same numerics (bf16 conv operands, f32 accum).
    dn = ("NHWC", "HWIO", "NHWC")

    def conv(h, w, padding):
        return lax.conv_general_dilated(
            h.astype(jnp.bfloat16), w.astype(jnp.bfloat16), (1, 1), padding,
            dimension_numbers=dn, preferred_element_type=jnp.float32)

    def bn(h, g, b):
        m = jnp.mean(h, axis=(0, 1, 2), keepdims=True)
        v = jnp.mean((h - m) ** 2, axis=(0, 1, 2), keepdims=True)
        return (h - m) * lax.rsqrt(v + EPS) * g + b

    x = x.astype(jnp.float32)
    h = conv(x, params["w1"][None, None], "VALID")
    h = jnp.maximum(bn(h, params["g1"], params["b1"]), 0.0)
    h = conv(h, params["w2"], "SAME")
    h = jnp.maximum(bn(h, params["g2"], params["b2"]), 0.0)
    h = conv(h, params["w3"][None, None], "VALID")
    h = bn(h, params["g3"], params["b3"])
    return jnp.maximum(x + h, 0.0)


if __name__ == "__main__":
    # Small shapes consistent with Bottleneck: inplanes = 4*planes so the
    # identity skip is shape-compatible (stride=1, downsample=None).
    N, planes, H, W = 2, 4, 16, 16
    inplanes = 4 * planes  # 16

    key = jax.random.PRNGKey(0)
    kx, kp = jax.random.split(key)
    x = jax.random.normal(kx, (N, inplanes, H, W), jnp.float32)  # NCHW input
    params = make_params(kp, inplanes, planes)

    out = bottleneck_pallas(x, params)
    jax.block_until_ready(out)

    ref_nhwc = bottleneck_reference_nhwc(jnp.transpose(x, (0, 2, 3, 1)), params)
    ref = jnp.transpose(ref_nhwc, (0, 3, 1, 2))
    np.testing.assert_allclose(np.asarray(out), np.asarray(ref),
                               rtol=1e-2, atol=1e-2)
    print("KERNEL_OK")
</pallas_src>

<mosaic_0001>
module attributes {stable_mosaic.version = 11 : i64} {
  func.func @_conv3x3_stats_kernel(%arg0: i32, %arg1: memref<1x16x16x128xf32, #tpu.memory_space<vmem>>, %arg2: memref<1x128xf32, #tpu.memory_space<vmem>>, %arg3: memref<1x128xf32, #tpu.memory_space<vmem>>, %arg4: memref<3x384x128xbf16, #tpu.memory_space<vmem>>, %arg5: memref<1x16x16x128xf32, #tpu.memory_space<vmem>>, %arg6: memref<1x8x128xf32, #tpu.memory_space<vmem>>, %arg7: memref<18x18x128xf32, #tpu.memory_space<vmem>>) attributes {dimension_semantics = [#tpu.dimension_semantics<parallel>], iteration_bounds = array<i64: 2>, scalar_prefetch = 0 : i64, scratch_operands = 1 : i64, tpu.core_type = #tpu.core_type<tc>, window_params = [{transform_indices = @transform_0, window_bounds = array<i64: 1, 16, 16, 128>}, {pipeline_mode = #tpu.pipeline_mode<synchronous>, transform_indices = @transform_1, window_bounds = array<i64: 1, 128>}, {pipeline_mode = #tpu.pipeline_mode<synchronous>, transform_indices = @transform_2, window_bounds = array<i64: 1, 128>}, {pipeline_mode = #tpu.pipeline_mode<synchronous>, transform_indices = @transform_3, window_bounds = array<i64: 3, 384, 128>}, {transform_indices = @transform_4, window_bounds = array<i64: 1, 16, 16, 128>}, {transform_indices = @transform_5, window_bounds = array<i64: 1, 8, 128>}]} {
    %c0 = arith.constant 0 : index
    %c0_0 = arith.constant 0 : index
    %c0_1 = arith.constant 0 : index
    %c0_2 = arith.constant 0 : index
    %0 = vector.load %arg1[%c0, %c0_0, %c0_1, %c0_2] : memref<1x16x16x128xf32, #tpu.memory_space<vmem>>, vector<1x16x16x128xf32>
    %1 = vector.shape_cast %0 : vector<1x16x16x128xf32> to vector<16x16x128xf32>
    %c0_3 = arith.constant 0 : index
    %c0_4 = arith.constant 0 : index
    %2 = vector.load %arg2[%c0_3, %c0_4] : memref<1x128xf32, #tpu.memory_space<vmem>>, vector<1x128xf32>
    %3 = vector.shape_cast %2 : vector<1x128xf32> to vector<128xf32>
    %4 = vector.shape_cast %3 : vector<128xf32> to vector<1x1x128xf32>
    %5 = vector.broadcast %4 : vector<1x1x128xf32> to vector<16x16x128xf32>
    %6 = arith.mulf %1, %5 : vector<16x16x128xf32>
    %c0_5 = arith.constant 0 : index
    %c0_6 = arith.constant 0 : index
    %7 = vector.load %arg3[%c0_5, %c0_6] : memref<1x128xf32, #tpu.memory_space<vmem>>, vector<1x128xf32>
    %8 = vector.shape_cast %7 : vector<1x128xf32> to vector<128xf32>
    %9 = vector.shape_cast %8 : vector<128xf32> to vector<1x1x128xf32>
    %10 = vector.broadcast %9 : vector<1x1x128xf32> to vector<16x16x128xf32>
    %11 = arith.addf %6, %10 : vector<16x16x128xf32>
    %cst = arith.constant 0.000000e+00 : f32
    %12 = vector.broadcast %cst : f32 to vector<16x16x128xf32>
    %13 = arith.maximumf %11, %12 : vector<16x16x128xf32>
    %cst_7 = arith.constant 0.000000e+00 : f32
    %14 = vector.broadcast %cst_7 : f32 to vector<1x18x128xf32>
    %cst_8 = arith.constant 0.000000e+00 : f32
    %15 = vector.broadcast %cst_8 : f32 to vector<16x1x128xf32>
    %16 = tpu.concatenate %15, %13, %15 in 1 : vector<16x1x128xf32>, vector<16x16x128xf32>, vector<16x1x128xf32> -> vector<16x18x128xf32>
    %17 = tpu.concatenate %14, %16, %14 in 0 : vector<1x18x128xf32>, vector<16x18x128xf32>, vector<1x18x128xf32> -> vector<18x18x128xf32>
    %c0_9 = arith.constant 0 : index
    %c0_10 = arith.constant 0 : index
    %c0_11 = arith.constant 0 : index
    %18 = vector.load %arg7[%c0_9, %c0_10, %c0_11] : memref<18x18x128xf32, #tpu.memory_space<vmem>>, vector<18x18x128xf32>
    tpu.vector_store %arg7[%c0_9, %c0_10, %c0_11], %17 {strides = array<i32>} : memref<18x18x128xf32, #tpu.memory_space<vmem>>, vector<18x18x128xf32>,
    %cst_12 = arith.constant 0.000000e+00 : f32
    %19 = vector.broadcast %cst_12 : f32 to vector<256x128xf32>
    %c0_13 = arith.constant 0 : index
    %c0_14 = arith.constant 0 : index
    %c0_15 = arith.constant 0 : index
    %20 = vector.load %arg7[%c0_13, %c0_14, %c0_15] : memref<18x18x128xf32, #tpu.memory_space<vmem>>, vector<16x18x128xf32>
    %21 = vector.extract_strided_slice %20 {offsets = [0, 0, 0], sizes = [16, 16, 128], strides = [1, 1, 1]} : vector<16x18x128xf32> to vector<16x16x128xf32>
    %22 = vector.extract_strided_slice %20 {offsets = [0, 1, 0], sizes = [16, 16, 128], strides = [1, 1, 1]} : vector<16x18x128xf32> to vector<16x16x128xf32>
    %23 = vector.extract_strided_slice %20 {offsets = [0, 2, 0], sizes = [16, 16, 128], strides = [1, 1, 1]} : vector<16x18x128xf32> to vector<16x16x128xf32>
    %24 = tpu.concatenate %21, %22, %23 in 2 : vector<16x16x128xf32>, vector<16x16x128xf32>, vector<16x16x128xf32> -> vector<16x16x384xf32>
    %25 = vector.shape_cast %24 : vector<16x16x384xf32> to vector<256x384xf32>
    %26 = arith.truncf %25 : vector<256x384xf32> to vector<256x384xbf16>
    %c0_16 = arith.constant 0 : index
    %c0_17 = arith.constant 0 : index
    %c0_18 = arith.constant 0 : index
    %27 = vector.load %arg4[%c0_16, %c0_17, %c0_18] : memref<3x384x128xbf16, #tpu.memory_space<vmem>>, vector<1x384x128xbf16>
    %28 = vector.shape_cast %27 : vector<1x384x128xbf16> to vector<384x128xbf16>
    %cst_19 = arith.constant dense<0.000000e+00> : vector<256x128xf32>
    %29 = tpu.matmul %26, %28, %cst_19 {dimension_numbers = #tpu.dot_dimension_numbers<[1], [0], [0], [1], [0, 0, 1, 1], [], []>} : vector<256x384xbf16>, vector<384x128xbf16>, vector<256x128xf32> -> vector<256x128xf32>
    %30 = arith.addf %19, %29 : vector<256x128xf32>
    %c1 = arith.constant 1 : index
    %c0_20 = arith.constant 0 : index
    %c0_21 = arith.constant 0 : index
    %31 = vector.load %arg7[%c1, %c0_20, %c0_21] : memref<18x18x128xf32, #tpu.memory_space<vmem>>, vector<16x18x128xf32>
    %32 = vector.extract_strided_slice %31 {offsets = [0, 0, 0], sizes = [16, 16, 128], strides = [1, 1, 1]} : vector<16x18x128xf32> to vector<16x16x128xf32>
    %33 = vector.extract_strided_slice %31 {offsets = [0, 1, 0], sizes = [16, 16, 128], strides = [1, 1, 1]} : vector<16x18x128xf32> to vector<16x16x128xf32>
    %34 = vector.extract_strided_slice %31 {offsets = [0, 2, 0], sizes = [16, 16, 128], strides = [1, 1, 1]} : vector<16x18x128xf32> to vector<16x16x128xf32>
    %35 = tpu.concatenate %32, %33, %34 in 2 : vector<16x16x128xf32>, vector<16x16x128xf32>, vector<16x16x128xf32> -> vector<16x16x384xf32>
    %36 = vector.shape_cast %35 : vector<16x16x384xf32> to vector<256x384xf32>
    %37 = arith.truncf %36 : vector<256x384xf32> to vector<256x384xbf16>
    %c1_22 = arith.constant 1 : index
    %c0_23 = arith.constant 0 : index
    %c0_24 = arith.constant 0 : index
    %38 = vector.load %arg4[%c1_22, %c0_23, %c0_24] : memref<3x384x128xbf16, #tpu.memory_space<vmem>>, vector<1x384x128xbf16>
    %39 = vector.shape_cast %38 : vector<1x384x128xbf16> to vector<384x128xbf16>
    %cst_25 = arith.constant dense<0.000000e+00> : vector<256x128xf32>
    %40 = tpu.matmul %37, %39, %cst_25 {dimension_numbers = #tpu.dot_dimension_numbers<[1], [0], [0], [1], [0, 0, 1, 1], [], []>} : vector<256x384xbf16>, vector<384x128xbf16>, vector<256x128xf32> -> vector<256x128xf32>
    %41 = arith.addf %30, %40 : vector<256x128xf32>
    %c2 = arith.constant 2 : index
    %c0_26 = arith.constant 0 : index
    %c0_27 = arith.constant 0 : index
    %42 = vector.load %arg7[%c2, %c0_26, %c0_27] : memref<18x18x128xf32, #tpu.memory_space<vmem>>, vector<16x18x128xf32>
    %43 = vector.extract_strided_slice %42 {offsets = [0, 0, 0], sizes = [16, 16, 128], strides = [1, 1, 1]} : vector<16x18x128xf32> to vector<16x16x128xf32>
    %44 = vector.extract_strided_slice %42 {offsets = [0, 1, 0], sizes = [16, 16, 128], strides = [1, 1, 1]} : vector<16x18x128xf32> to vector<16x16x128xf32>
    %45 = vector.extract_strided_slice %42 {offsets = [0, 2, 0], sizes = [16, 16, 128], strides = [1, 1, 1]} : vector<16x18x128xf32> to vector<16x16x128xf32>
    %46 = tpu.concatenate %43, %44, %45 in 2 : vector<16x16x128xf32>, vector<16x16x128xf32>, vector<16x16x128xf32> -> vector<16x16x384xf32>
    %47 = vector.shape_cast %46 : vector<16x16x384xf32> to vector<256x384xf32>
    %48 = arith.truncf %47 : vector<256x384xf32> to vector<256x384xbf16>
    %c2_28 = arith.constant 2 : index
    %c0_29 = arith.constant 0 : index
    %c0_30 = arith.constant 0 : index
    %49 = vector.load %arg4[%c2_28, %c0_29, %c0_30] : memref<3x384x128xbf16, #tpu.memory_space<vmem>>, vector<1x384x128xbf16>
    %50 = vector.shape_cast %49 : vector<1x384x128xbf16> to vector<384x128xbf16>
    %cst_31 = arith.constant dense<0.000000e+00> : vector<256x128xf32>
    %51 = tpu.matmul %48, %50, %cst_31 {dimension_numbers = #tpu.dot_dimension_numbers<[1], [0], [0], [1], [0, 0, 1, 1], [], []>} : vector<256x384xbf16>, vector<384x128xbf16>, vector<256x128xf32> -> vector<256x128xf32>
    %52 = arith.addf %41, %51 : vector<256x128xf32>
    %53 = vector.shape_cast %52 : vector<256x128xf32> to vector<1x16x16x128xf32>
    %c0_32 = arith.constant 0 : index
    %c0_33 = arith.constant 0 : index
    %c0_34 = arith.constant 0 : index
    %c0_35 = arith.constant 0 : index
    %54 = vector.load %arg5[%c0_32, %c0_33, %c0_34, %c0_35] : memref<1x16x16x128xf32, #tpu.memory_space<vmem>>, vector<1x16x16x128xf32>
    tpu.vector_store %arg5[%c0_32, %c0_33, %c0_34, %c0_35], %53 {strides = array<i32>} : memref<1x16x16x128xf32, #tpu.memory_space<vmem>>, vector<1x16x16x128xf32>,
    %cst_36 = arith.constant dense<0.000000e+00> : vector<128xf32>
    %55 = vector.multi_reduction <add>, %52, %cst_36 [0] : vector<256x128xf32> to vector<128xf32>
    %56 = vector.shape_cast %55 : vector<128xf32> to vector<1x128xf32>
    %57 = arith.mulf %52, %52 : vector<256x128xf32>
    %cst_37 = arith.constant dense<0.000000e+00> : vector<128xf32>
    %58 = vector.multi_reduction <add>, %57, %cst_37 [0] : vector<256x128xf32> to vector<128xf32>
    %59 = vector.shape_cast %58 : vector<128xf32> to vector<1x128xf32>
    %cst_38 = arith.constant 0.000000e+00 : f32
    %60 = vector.broadcast %cst_38 : f32 to vector<6x128xf32>
    %61 = tpu.concatenate %56, %59, %60 in 0 : vector<1x128xf32>, vector<1x128xf32>, vector<6x128xf32> -> vector<8x128xf32>
    %62 = vector.shape_cast %61 : vector<8x128xf32> to vector<1x8x128xf32>
    %c0_39 = arith.constant 0 : index
    %c0_40 = arith.constant 0 : index
    %c0_41 = arith.constant 0 : index
    %63 = vector.load %arg6[%c0_39, %c0_40, %c0_41] : memref<1x8x128xf32, #tpu.memory_space<vmem>>, vector<1x8x128xf32>
    tpu.vector_store %arg6[%c0_39, %c0_40, %c0_41], %62 {strides = array<i32>} : memref<1x8x128xf32, #tpu.memory_space<vmem>>, vector<1x8x128xf32>,
    return
  }
  func.func @transform_0(%arg0: i32) -> (i32, i32, i32, i32) {
    %c0_i32 = arith.constant 0 : i32
    %c0_i32_0 = arith.constant 0 : i32
    %c0_i32_1 = arith.constant 0 : i32
    %c0_i32_2 = arith.constant 0 : i32
    return %arg0, %c0_i32, %c0_i32_0, %c0_i32_1 : i32, i32, i32, i32
  }
  func.func @transform_1(%arg0: i32) -> (i32, i32) {
    %c0_i32 = arith.constant 0 : i32
    %c0_i32_0 = arith.constant 0 : i32
    %c0_i32_1 = arith.constant 0 : i32
    return %c0_i32, %c0_i32_0 : i32, i32
  }
  func.func @transform_2(%arg0: i32) -> (i32, i32) {
    %c0_i32 = arith.constant 0 : i32
    %c0_i32_0 = arith.constant 0 : i32
    %c0_i32_1 = arith.constant 0 : i32
    return %c0_i32, %c0_i32_0 : i32, i32
  }
  func.func @transform_3(%arg0: i32) -> (i32, i32, i32) {
    %c0_i32 = arith.constant 0 : i32
    %c0_i32_0 = arith.constant 0 : i32
    %c0_i32_1 = arith.constant 0 : i32
    %c0_i32_2 = arith.constant 0 : i32
    return %c0_i32, %c0_i32_0, %c0_i32_1 : i32, i32, i32
  }
  func.func @transform_4(%arg0: i32) -> (i32, i32, i32, i32) {
    %c0_i32 = arith.constant 0 : i32
    %c0_i32_0 = arith.constant 0 : i32
    %c0_i32_1 = arith.constant 0 : i32
    %c0_i32_2 = arith.constant 0 : i32
    return %arg0, %c0_i32, %c0_i32_0, %c0_i32_1 : i32, i32, i32, i32
  }
  func.func @transform_5(%arg0: i32) -> (i32, i32, i32) {
    %c0_i32 = arith.constant 0 : i32
    %c0_i32_0 = arith.constant 0 : i32
    %c0_i32_1 = arith.constant 0 : i32
    return %arg0, %c0_i32, %c0_i32_0 : i32, i32, i32
  }
}

module attributes {stable_mosaic.version = 11 : i64} {
  func.func @_conv1x1_stats_kernel(%arg0: i32, %arg1: memref<256x128xf32, #tpu.memory_space<vmem>>, %arg2: memref<128x128xbf16, #tpu.memory_space<vmem>>, %arg3: memref<256x128xf32, #tpu.memory_space<vmem>>, %arg4: memref<1x8x128xf32, #tpu.memory_space<vmem>>) attributes {dimension_semantics = [#tpu.dimension_semantics<parallel>], iteration_bounds = array<i64: 2>, scalar_prefetch = 0 : i64, scratch_operands = 0 : i64, tpu.core_type = #tpu.core_type<tc>, window_params = [{transform_indices = @transform_0, window_bounds = array<i64: 256, 128>}, {pipeline_mode = #tpu.pipeline_mode<synchronous>, transform_indices = @transform_1, window_bounds = array<i64: 128, 128>}, {transform_indices = @transform_2, window_bounds = array<i64: 256, 128>}, {transform_indices = @transform_3, window_bounds = array<i64: 1, 8, 128>}]} {
    %c0 = arith.constant 0 : index
    %c0_0 = arith.constant 0 : index
    %0 = vector.load %arg1[%c0, %c0_0] : memref<256x128xf32, #tpu.memory_space<vmem>>, vector<256x128xf32>
    %1 = arith.truncf %0 : vector<256x128xf32> to vector<256x128xbf16>
    %c0_1 = arith.constant 0 : index
    %c0_2 = arith.constant 0 : index
    %2 = vector.load %arg2[%c0_1, %c0_2] : memref<128x128xbf16, #tpu.memory_space<vmem>>, vector<128x128xbf16>
    %cst = arith.constant dense<0.000000e+00> : vector<256x128xf32>
    %3 = tpu.matmul %1, %2, %cst {dimension_numbers = #tpu.dot_dimension_numbers<[1], [0], [0], [1], [0, 0, 1, 1], [], []>} : vector<256x128xbf16>, vector<128x128xbf16>, vector<256x128xf32> -> vector<256x128xf32>
    %c0_3 = arith.constant 0 : index
    %c0_4 = arith.constant 0 : index
    %4 = vector.load %arg3[%c0_3, %c0_4] : memref<256x128xf32, #tpu.memory_space<vmem>>, vector<256x128xf32>
    tpu.vector_store %arg3[%c0_3, %c0_4], %3 {strides = array<i32>} : memref<256x128xf32, #tpu.memory_space<vmem>>, vector<256x128xf32>,
    %cst_5 = arith.constant dense<0.000000e+00> : vector<128xf32>
    %5 = vector.multi_reduction <add>, %3, %cst_5 [0] : vector<256x128xf32> to vector<128xf32>
    %6 = vector.shape_cast %5 : vector<128xf32> to vector<1x128xf32>
    %7 = arith.mulf %3, %3 : vector<256x128xf32>
    %cst_6 = arith.constant dense<0.000000e+00> : vector<128xf32>
    %8 = vector.multi_reduction <add>, %7, %cst_6 [0] : vector<256x128xf32> to vector<128xf32>
    %9 = vector.shape_cast %8 : vector<128xf32> to vector<1x128xf32>
    %cst_7 = arith.constant 0.000000e+00 : f32
    %10 = vector.broadcast %cst_7 : f32 to vector<6x128xf32>
    %11 = tpu.concatenate %6, %9, %10 in 0 : vector<1x128xf32>, vector<1x128xf32>, vector<6x128xf32> -> vector<8x128xf32>
    %12 = vector.shape_cast %11 : vector<8x128xf32> to vector<1x8x128xf32>
    %c0_8 = arith.constant 0 : index
    %c0_9 = arith.constant 0 : index
    %c0_10 = arith.constant 0 : index
    %13 = vector.load %arg4[%c0_8, %c0_9, %c0_10] : memref<1x8x128xf32, #tpu.memory_space<vmem>>, vector<1x8x128xf32>
    tpu.vector_store %arg4[%c0_8, %c0_9, %c0_10], %12 {strides = array<i32>} : memref<1x8x128xf32, #tpu.memory_space<vmem>>, vector<1x8x128xf32>,
    return
  }
  func.func @transform_0(%arg0: i32) -> (i32, i32) {
    %c0_i32 = arith.constant 0 : i32
    %c0_i32_0 = arith.constant 0 : i32
    return %arg0, %c0_i32 : i32, i32
  }
  func.func @transform_1(%arg0: i32) -> (i32, i32) {
    %c0_i32 = arith.constant 0 : i32
    %c0_i32_0 = arith.constant 0 : i32
    %c0_i32_1 = arith.constant 0 : i32
    return %c0_i32, %c0_i32_0 : i32, i32
  }
  func.func @transform_2(%arg0: i32) -> (i32, i32) {
    %c0_i32 = arith.constant 0 : i32
    %c0_i32_0 = arith.constant 0 : i32
    return %arg0, %c0_i32 : i32, i32
  }
  func.func @transform_3(%arg0: i32) -> (i32, i32, i32) {
    %c0_i32 = arith.constant 0 : i32
    %c0_i32_0 = arith.constant 0 : i32
    %c0_i32_1 = arith.constant 0 : i32
    return %arg0, %c0_i32, %c0_i32_0 : i32, i32, i32
  }
}

module attributes {stable_mosaic.version = 11 : i64} {
  func.func @_bn_conv1x1_stats_kernel(%arg0: i32, %arg1: memref<256x128xf32, #tpu.memory_space<vmem>>, %arg2: memref<1x128xf32, #tpu.memory_space<vmem>>, %arg3: memref<1x128xf32, #tpu.memory_space<vmem>>, %arg4: memref<128x128xbf16, #tpu.memory_space<vmem>>, %arg5: memref<256x128xf32, #tpu.memory_space<vmem>>, %arg6: memref<1x8x128xf32, #tpu.memory_space<vmem>>) attributes {dimension_semantics = [#tpu.dimension_semantics<parallel>], iteration_bounds = array<i64: 2>, scalar_prefetch = 0 : i64, scratch_operands = 0 : i64, tpu.core_type = #tpu.core_type<tc>, window_params = [{transform_indices = @transform_0, window_bounds = array<i64: 256, 128>}, {pipeline_mode = #tpu.pipeline_mode<synchronous>, transform_indices = @transform_1, window_bounds = array<i64: 1, 128>}, {pipeline_mode = #tpu.pipeline_mode<synchronous>, transform_indices = @transform_2, window_bounds = array<i64: 1, 128>}, {pipeline_mode = #tpu.pipeline_mode<synchronous>, transform_indices = @transform_3, window_bounds = array<i64: 128, 128>}, {transform_indices = @transform_4, window_bounds = array<i64: 256, 128>}, {transform_indices = @transform_5, window_bounds = array<i64: 1, 8, 128>}]} {
    %c0 = arith.constant 0 : index
    %c0_0 = arith.constant 0 : index
    %0 = vector.load %arg1[%c0, %c0_0] : memref<256x128xf32, #tpu.memory_space<vmem>>, vector<256x128xf32>
    %c0_1 = arith.constant 0 : index
    %c0_2 = arith.constant 0 : index
    %1 = vector.load %arg2[%c0_1, %c0_2] : memref<1x128xf32, #tpu.memory_space<vmem>>, vector<1x128xf32>
    %2 = vector.broadcast %1 : vector<1x128xf32> to vector<256x128xf32>
    %3 = arith.mulf %0, %2 : vector<256x128xf32>
    %c0_3 = arith.constant 0 : index
    %c0_4 = arith.constant 0 : index
    %4 = vector.load %arg3[%c0_3, %c0_4] : memref<1x128xf32, #tpu.memory_space<vmem>>, vector<1x128xf32>
    %5 = vector.broadcast %4 : vector<1x128xf32> to vector<256x128xf32>
    %6 = arith.addf %3, %5 : vector<256x128xf32>
    %cst = arith.constant 0.000000e+00 : f32
    %7 = vector.broadcast %cst : f32 to vector<256x128xf32>
    %8 = arith.maximumf %6, %7 : vector<256x128xf32>
    %9 = arith.truncf %8 : vector<256x128xf32> to vector<256x128xbf16>
    %c0_5 = arith.constant 0 : index
    %c0_6 = arith.constant 0 : index
    %10 = vector.load %arg4[%c0_5, %c0_6] : memref<128x128xbf16, #tpu.memory_space<vmem>>, vector<128x128xbf16>
    %cst_7 = arith.constant dense<0.000000e+00> : vector<256x128xf32>
    %11 = tpu.matmul %9, %10, %cst_7 {dimension_numbers = #tpu.dot_dimension_numbers<[1], [0], [0], [1], [0, 0, 1, 1], [], []>} : vector<256x128xbf16>, vector<128x128xbf16>, vector<256x128xf32> -> vector<256x128xf32>
    %c0_8 = arith.constant 0 : index
    %c0_9 = arith.constant 0 : index
    %12 = vector.load %arg5[%c0_8, %c0_9] : memref<256x128xf32, #tpu.memory_space<vmem>>, vector<256x128xf32>
    tpu.vector_store %arg5[%c0_8, %c0_9], %11 {strides = array<i32>} : memref<256x128xf32, #tpu.memory_space<vmem>>, vector<256x128xf32>,
    %cst_10 = arith.constant dense<0.000000e+00> : vector<128xf32>
    %13 = vector.multi_reduction <add>, %11, %cst_10 [0] : vector<256x128xf32> to vector<128xf32>
    %14 = vector.shape_cast %13 : vector<128xf32> to vector<1x128xf32>
    %15 = arith.mulf %11, %11 : vector<256x128xf32>
    %cst_11 = arith.constant dense<0.000000e+00> : vector<128xf32>
    %16 = vector.multi_reduction <add>, %15, %cst_11 [0] : vector<256x128xf32> to vector<128xf32>
    %17 = vector.shape_cast %16 : vector<128xf32> to vector<1x128xf32>
    %cst_12 = arith.constant 0.000000e+00 : f32
    %18 = vector.broadcast %cst_12 : f32 to vector<6x128xf32>
    %19 = tpu.concatenate %14, %17, %18 in 0 : vector<1x128xf32>, vector<1x128xf32>, vector<6x128xf32> -> vector<8x128xf32>
    %20 = vector.shape_cast %19 : vector<8x128xf32> to vector<1x8x128xf32>
    %c0_13 = arith.constant 0 : index
    %c0_14 = arith.constant 0 : index
    %c0_15 = arith.constant 0 : index
    %21 = vector.load %arg6[%c0_13, %c0_14, %c0_15] : memref<1x8x128xf32, #tpu.memory_space<vmem>>, vector<1x8x128xf32>
    tpu.vector_store %arg6[%c0_13, %c0_14, %c0_15], %20 {strides = array<i32>} : memref<1x8x128xf32, #tpu.memory_space<vmem>>, vector<1x8x128xf32>,
    return
  }
  func.func @transform_0(%arg0: i32) -> (i32, i32) {
    %c0_i32 = arith.constant 0 : i32
    %c0_i32_0 = arith.constant 0 : i32
    return %arg0, %c0_i32 : i32, i32
  }
  func.func @transform_1(%arg0: i32) -> (i32, i32) {
    %c0_i32 = arith.constant 0 : i32
    %c0_i32_0 = arith.constant 0 : i32
    %c0_i32_1 = arith.constant 0 : i32
    return %c0_i32, %c0_i32_0 : i32, i32
  }
  func.func @transform_2(%arg0: i32) -> (i32, i32) {
    %c0_i32 = arith.constant 0 : i32
    %c0_i32_0 = arith.constant 0 : i32
    %c0_i32_1 = arith.constant 0 : i32
    return %c0_i32, %c0_i32_0 : i32, i32
  }
  func.func @transform_3(%arg0: i32) -> (i32, i32) {
    %c0_i32 = arith.constant 0 : i32
    %c0_i32_0 = arith.constant 0 : i32
    %c0_i32_1 = arith.constant 0 : i32
    return %c0_i32, %c0_i32_0 : i32, i32
  }
  func.func @transform_4(%arg0: i32) -> (i32, i32) {
    %c0_i32 = arith.constant 0 : i32
    %c0_i32_0 = arith.constant 0 : i32
    return %arg0, %c0_i32 : i32, i32
  }
  func.func @transform_5(%arg0: i32) -> (i32, i32, i32) {
    %c0_i32 = arith.constant 0 : i32
    %c0_i32_0 = arith.constant 0 : i32
    %c0_i32_1 = arith.constant 0 : i32
    return %arg0, %c0_i32, %c0_i32_0 : i32, i32, i32
  }
}

module attributes {stable_mosaic.version = 11 : i64} {
  func.func @_bn_residual_relu_kernel(%arg0: i32, %arg1: memref<256x128xf32, #tpu.memory_space<vmem>>, %arg2: memref<256x128xf32, #tpu.memory_space<vmem>>, %arg3: memref<1x128xf32, #tpu.memory_space<vmem>>, %arg4: memref<1x128xf32, #tpu.memory_space<vmem>>, %arg5: memref<256x128xf32, #tpu.memory_space<vmem>>) attributes {dimension_semantics = [#tpu.dimension_semantics<parallel>], iteration_bounds = array<i64: 2>, scalar_prefetch = 0 : i64, scratch_operands = 0 : i64, tpu.core_type = #tpu.core_type<tc>, window_params = [{transform_indices = @transform_0, window_bounds = array<i64: 256, 128>}, {transform_indices = @transform_1, window_bounds = array<i64: 256, 128>}, {pipeline_mode = #tpu.pipeline_mode<synchronous>, transform_indices = @transform_2, window_bounds = array<i64: 1, 128>}, {pipeline_mode = #tpu.pipeline_mode<synchronous>, transform_indices = @transform_3, window_bounds = array<i64: 1, 128>}, {transform_indices = @transform_4, window_bounds = array<i64: 256, 128>}]} {
    %c0 = arith.constant 0 : index
    %c0_0 = arith.constant 0 : index
    %0 = vector.load %arg1[%c0, %c0_0] : memref<256x128xf32, #tpu.memory_space<vmem>>, vector<256x128xf32>
    %c0_1 = arith.constant 0 : index
    %c0_2 = arith.constant 0 : index
    %1 = vector.load %arg3[%c0_1, %c0_2] : memref<1x128xf32, #tpu.memory_space<vmem>>, vector<1x128xf32>
    %2 = vector.broadcast %1 : vector<1x128xf32> to vector<256x128xf32>
    %3 = arith.mulf %0, %2 : vector<256x128xf32>
    %c0_3 = arith.constant 0 : index
    %c0_4 = arith.constant 0 : index
    %4 = vector.load %arg4[%c0_3, %c0_4] : memref<1x128xf32, #tpu.memory_space<vmem>>, vector<1x128xf32>
    %5 = vector.broadcast %4 : vector<1x128xf32> to vector<256x128xf32>
    %6 = arith.addf %3, %5 : vector<256x128xf32>
    %c0_5 = arith.constant 0 : index
    %c0_6 = arith.constant 0 : index
    %7 = vector.load %arg2[%c0_5, %c0_6] : memref<256x128xf32, #tpu.memory_space<vmem>>, vector<256x128xf32>
    %8 = arith.addf %7, %6 : vector<256x128xf32>
    %cst = arith.constant 0.000000e+00 : f32
    %9 = vector.broadcast %cst : f32 to vector<256x128xf32>
    %10 = arith.maximumf %8, %9 : vector<256x128xf32>
    %c0_7 = arith.constant 0 : index
    %c0_8 = arith.constant 0 : index
    %11 = vector.load %arg5[%c0_7, %c0_8] : memref<256x128xf32, #tpu.memory_space<vmem>>, vector<256x128xf32>
    tpu.vector_store %arg5[%c0_7, %c0_8], %10 {strides = array<i32>} : memref<256x128xf32, #tpu.memory_space<vmem>>, vector<256x128xf32>,
    return
  }
  func.func @transform_0(%arg0: i32) -> (i32, i32) {
    %c0_i32 = arith.constant 0 : i32
    %c0_i32_0 = arith.constant 0 : i32
    return %arg0, %c0_i32 : i32, i32
  }
  func.func @transform_1(%arg0: i32) -> (i32, i32) {
    %c0_i32 = arith.constant 0 : i32
    %c0_i32_0 = arith.constant 0 : i32
    return %arg0, %c0_i32 : i32, i32
  }
  func.func @transform_2(%arg0: i32) -> (i32, i32) {
    %c0_i32 = arith.constant 0 : i32
    %c0_i32_0 = arith.constant 0 : i32
    %c0_i32_1 = arith.constant 0 : i32
    return %c0_i32, %c0_i32_0 : i32, i32
  }
  func.func @transform_3(%arg0: i32) -> (i32, i32) {
    %c0_i32 = arith.constant 0 : i32
    %c0_i32_0 = arith.constant 0 : i32
    %c0_i32_1 = arith.constant 0 : i32
    return %c0_i32, %c0_i32_0 : i32, i32
  }
  func.func @transform_4(%arg0: i32) -> (i32, i32) {
    %c0_i32 = arith.constant 0 : i32
    %c0_i32_0 = arith.constant 0 : i32
    return %arg0, %c0_i32 : i32, i32
  }
}

</mosaic_0001>

<llo_original>
// kernel: bottleneck_pallas.6
$region0: #{bottleneck_pallas.6}
  #allocation0 [shape = 'u32[]', space=smem, size = 0x4, offset = 0x4, fixed_abs, tag = 'smem constant byte address 0x4 - core index']
  #allocation1 [shape = 'u32[72,128]{1,0:T(1,128)}', space=vmem, size = 0x9000, scoped, tag = 'internal scratch']
  %s0 = inlined_call_operand.vmem [shape: f32[512,128], index: 0, kind: input, shape index: {}]
  %s1 = inlined_call_operand.vmem [shape: f32[1,128], index: 1, kind: input, shape index: {}]
  %s2 = inlined_call_operand.vmem [shape: f32[1,128], index: 2, kind: input, shape index: {}]
  %s3 = inlined_call_operand.vmem [shape: bf16[128,128], index: 3, kind: input, shape index: {}]
  %s4 = inlined_call_operand.vmem [shape: f32[512,128], index: 4, kind: output, shape index: {0}]
  %s5 = inlined_call_operand.vmem [shape: f32[2,8,128], index: 5, kind: output, shape index: {1}]
  %6 = xla_tuple %s4, %s5
  %s7 = sld [smem:[#allocation0]]
  $region57: #{bottleneck_pallas.6} parent=0
    _
  %s9 = ssub.s32 1, %s7
  %s10 = scalar_select 0, %s9, %s7
  loop: start=0, step=1, limit=4
  $region2: #{bottleneck_pallas.6} parent=0 // loop_pre_header
    _
  $region3: #{bottleneck_pallas.6} parent=0 // loop_header
    %s12 = sphi 0, %s16
    %p13 = scmp.ge.s32.totalorder %s12, 4
    %s22 = sphi 0, %s24
    %s25 = sphi 0, %s22
    %s26 = sphi 0, %s25
    %s42 = sphi 0, %s26
    %s46 = sphi 0, %s46
    %s48 = sphi 0, %s46
    %s49 = sphi 0, %s48
    %s63 = sphi 0, %s49
    %s67 = sphi 0, %s67
    %s69 = sphi 0, %s67
    %s70 = sphi 0, %s69
    %s84 = sphi 0, %s70
    %s88 = sphi 0, %s88
    %s90 = sphi 0, %s88
    %s91 = sphi 0, %s90
    %s105 = sphi 0, %s91
    %s111 = sphi 0, %s113
    %s114 = sphi 0, %s111
    %s115 = sphi 0, %s114
    %s131 = sphi 0, %s115
    %s137 = sphi 0, %s139
    %s140 = sphi 0, %s137
    %s141 = sphi 0, %s140
    %s157 = sphi 0, %s141
  $region4: #{bottleneck_pallas.6} parent=0 // loop_header_branch
    %15 = sbr.rel (%p13) target = $region8
  $region5: #{bottleneck_pallas.6} parent=0 // loop_body
    %s17 = ssub.s32 %s12, 1
    %s18 = ssub.s32 %s12, 2
    %s19 = sadd.s32 %s12, 1
    %s20 = ssub.s32 %s12, %s19
    %p21 = scmp.eq.s32.totalorder %s20, 0
    %s23 = sadd.s32 %s22, 1
    %s24 = scalar_select %p21, %s22, %s23
    %p27 = pneg %p21
    %p28 = scmp.eq.s32.totalorder %s12, 1
    %p29 = por %p27, %p28
    %p30 = scmp.ne.s32.totalorder %s22, %s25
    %p31 = scmp.eq.s32.totalorder %s12, 0
    %p32 = por %p30, %p31
    %p33 = scmp.ne.s32.totalorder %s22, %s25
    %p34 = scmp.eq.s32.totalorder %s17, 1
    %p35 = por %p33, %p34
    %p36 = scmp.ne.s32.totalorder %s25, %s26
    %p37 = scmp.eq.s32.totalorder %s17, 0
    %p38 = por %p36, %p37
    %p39 = scmp.ne.s32.totalorder %s25, %s26
    %p40 = scmp.eq.s32.totalorder %s18, 1
    %p41 = por %p39, %p40
    %p43 = scmp.ne.s32.totalorder %s26, %s42
    %p44 = scmp.eq.s32.totalorder %s18, 0
    %p45 = por %p43, %p44
    %s47 = sadd.s32 %s46, 1
    %p50 = scmp.eq.s32.totalorder %s12, 1
    %p51 = scmp.ne.s32.totalorder %s46, %s48
    %p52 = scmp.eq.s32.totalorder %s12, 0
    %p53 = por %p51, %p52
    %p54 = scmp.ne.s32.totalorder %s46, %s48
    %p55 = scmp.eq.s32.totalorder %s17, 1
    %p56 = por %p54, %p55
    %p57 = scmp.ne.s32.totalorder %s48, %s49
    %p58 = scmp.eq.s32.totalorder %s17, 0
    %p59 = por %p57, %p58
    %p60 = scmp.ne.s32.totalorder %s48, %s49
    %p61 = scmp.eq.s32.totalorder %s18, 1
    %p62 = por %p60, %p61
    %p64 = scmp.ne.s32.totalorder %s49, %s63
    %p65 = scmp.eq.s32.totalorder %s18, 0
    %p66 = por %p64, %p65
    %s68 = sadd.s32 %s67, 1
    %p71 = scmp.eq.s32.totalorder %s12, 1
    %p72 = scmp.ne.s32.totalorder %s67, %s69
    %p73 = scmp.eq.s32.totalorder %s12, 0
    %p74 = por %p72, %p73
    %p75 = scmp.ne.s32.totalorder %s67, %s69
    %p76 = scmp.eq.s32.totalorder %s17, 1
    %p77 = por %p75, %p76
    %p78 = scmp.ne.s32.totalorder %s69, %s70
    %p79 = scmp.eq.s32.totalorder %s17, 0
    %p80 = por %p78, %p79
    %p81 = scmp.ne.s32.totalorder %s69, %s70
    %p82 = scmp.eq.s32.totalorder %s18, 1
    %p83 = por %p81, %p82
    %p85 = scmp.ne.s32.totalorder %s70, %s84
    %p86 = scmp.eq.s32.totalorder %s18, 0
    %p87 = por %p85, %p86
    %s89 = sadd.s32 %s88, 1
    %p92 = scmp.eq.s32.totalorder %s12, 1
    %p93 = scmp.ne.s32.totalorder %s88, %s90
    %p94 = scmp.eq.s32.totalorder %s12, 0
    %p95 = por %p93, %p94
    %p96 = scmp.ne.s32.totalorder %s88, %s90
    %p97 = scmp.eq.s32.totalorder %s17, 1
    %p98 = por %p96, %p97
    %p99 = scmp.ne.s32.totalorder %s90, %s91
    %p100 = scmp.eq.s32.totalorder %s17, 0
    %p101 = por %p99, %p100
    %p102 = scmp.ne.s32.totalorder %s90, %s91
    %p103 = scmp.eq.s32.totalorder %s18, 1
    %p104 = por %p102, %p103
    %p106 = scmp.ne.s32.totalorder %s91, %s105
    %p107 = scmp.eq.s32.totalorder %s18, 0
    %p108 = por %p106, %p107
    %s109 = ssub.s32 %s12, %s19
    %p110 = scmp.eq.s32.totalorder %s109, 0
    %s112 = sadd.s32 %s111, 1
    %s113 = scalar_select %p110, %s111, %s112
    %p116 = pneg %p110
    %p117 = scmp.eq.s32.totalorder %s12, 1
    %p118 = por %p116, %p117
    %p119 = scmp.ne.s32.totalorder %s111, %s114
    %p120 = scmp.eq.s32.totalorder %s12, 0
    %p121 = por %p119, %p120
    %p122 = scmp.ne.s32.totalorder %s111, %s114
    %p123 = scmp.eq.s32.totalorder %s17, 1
    %p124 = por %p122, %p123
    %p125 = scmp.ne.s32.totalorder %s114, %s115
    %p126 = scmp.eq.s32.totalorder %s17, 0
    %p127 = por %p125, %p126
    %p128 = scmp.ne.s32.totalorder %s114, %s115
    %p129 = scmp.eq.s32.totalorder %s18, 1
    %p130 = por %p128, %p129
    %p132 = scmp.ne.s32.totalorder %s115, %s131
    %p133 = scmp.eq.s32.totalorder %s18, 0
    %p134 = por %p132, %p133
    %s135 = ssub.s32 %s12, %s19
    %p136 = scmp.eq.s32.totalorder %s135, 0
    %s138 = sadd.s32 %s137, 1
    %s139 = scalar_select %p136, %s137, %s138
    %p142 = pneg %p136
    %p143 = scmp.eq.s32.totalorder %s12, 1
    %p144 = por %p142, %p143
    %p145 = scmp.ne.s32.totalorder %s137, %s140
    %p146 = scmp.eq.s32.totalorder %s12, 0
    %p147 = por %p145, %p146
    %p148 = scmp.ne.s32.totalorder %s137, %s140
    %p149 = scmp.eq.s32.totalorder %s17, 1
    %p150 = por %p148, %p149
    %p151 = scmp.ne.s32.totalorder %s140, %s141
    %p152 = scmp.eq.s32.totalorder %s17, 0
    %p153 = por %p151, %p152
    %p154 = scmp.ne.s32.totalorder %s140, %s141
    %p155 = scmp.eq.s32.totalorder %s18, 1
    %p156 = por %p154, %p155
    %p158 = scmp.ne.s32.totalorder %s141, %s157
    %p159 = scmp.eq.s32.totalorder %s18, 0
    %p160 = por %p158, %p159
    %p161 = scmp.le.s32.totalorder 1, %s12
    %p162 = scmp.lt.s32.totalorder %s12, 3
    %p163 = pnand %p161, %p162
    %p164 = pneg %p163
    // Predicated region
    $region9: #{bottleneck_pallas.6} parent=5 // pred_check
      _
    $region10: #{bottleneck_pallas.6} parent=5 // pred_check_branch
      %166 = sbr.rel (%p163) target = $region12
    $region11: #{bottleneck_pallas.6} parent=5 // pred_region
      %s167 = ssub.s32 %s12, 1
      // Predicated region
      $region13: #{bottleneck_pallas.6} parent=11 // pred_check
        %p168 = pneg %p59
      $region14: #{bottleneck_pallas.6} parent=11 // pred_check_branch
        %170 = sbr.rel (%p168) target = $region16
      $region15: #{bottleneck_pallas.6} parent=11 // pred_region
        _
      $region16: #{bottleneck_pallas.6} parent=11 // pred_fallthru
        _
      // Predicated region
      $region17: #{bottleneck_pallas.6} parent=11 // pred_check
        %p171 = pneg %p80
      $region18: #{bottleneck_pallas.6} parent=11 // pred_check_branch
        %173 = sbr.rel (%p171) target = $region20
      $region19: #{bottleneck_pallas.6} parent=11 // pred_region
        _
      $region20: #{bottleneck_pallas.6} parent=11 // pred_fallthru
        _
      // Predicated region
      $region21: #{bottleneck_pallas.6} parent=11 // pred_check
        %p174 = pneg %p101
      $region22: #{bottleneck_pallas.6} parent=11 // pred_check_branch
        %176 = sbr.rel (%p174) target = $region24
      $region23: #{bottleneck_pallas.6} parent=11 // pred_region
        _
      $region24: #{bottleneck_pallas.6} parent=11 // pred_fallthru
        _
    $region12: #{bottleneck_pallas.6} parent=5 // pred_fallthru
      _
    %p177 = scmp.lt.s32.totalorder %s12, 2
    // Predicated region
    $region25: #{bottleneck_pallas.6} parent=5 // pred_check
      %p178 = pneg %p177
    $region26: #{bottleneck_pallas.6} parent=5 // pred_check_branch
      %180 = sbr.rel (%p178) target = $region28
    $region27: #{bottleneck_pallas.6} parent=5 // pred_region
      // Predicated region
      $region29: #{bottleneck_pallas.6} parent=27 // pred_check
        %p181 = pneg %p32
      $region30: #{bottleneck_pallas.6} parent=27 // pred_check_branch
        %183 = sbr.rel (%p181) target = $region32
      $region31: #{bottleneck_pallas.6} parent=27 // pred_region
        %s184 = smul.u32 32, %s12
        %p185 = scmp.lt.s32.totalorder %s184, 63
        %s186 = scalar_select %p185, %s184, 63
        %s187 = smul.addr %s186, 8
        %s188 = scalar_lea.vmem %s0, %s187
        %s189 = smul.u32 32, %s12
      $region32: #{bottleneck_pallas.6} parent=27 // pred_fallthru
        _
    $region28: #{bottleneck_pallas.6} parent=5 // pred_fallthru
      _
    %p190 = scmp.le.s32.totalorder 1, %s12
    %p191 = scmp.lt.s32.totalorder %s12, 3
    %p192 = pnand %p190, %p191
    %p193 = pneg %p192
    // Predicated region
    $region33: #{bottleneck_pallas.6} parent=5 // pred_check
      _
    $region34: #{bottleneck_pallas.6} parent=5 // pred_check_branch
      %195 = sbr.rel (%p192) target = $region36
    $region35: #{bottleneck_pallas.6} parent=5 // pred_region
      %s196 = ssub.s32 %s12, 1
      %s197 = smul.u32 32, %s17
      %p198 = scmp.lt.s32.totalorder %s197, 63
      %s199 = scalar_select %p198, %s197, 63
      %s200 = smul.addr %s199, 8
      %s201 = scalar_lea.vmem %s0, %s200
      %p202 = pneg %p38
      %p203 = pneg %p35
      %p204 = pneg %p59
      %p205 = pneg %p56
      %p206 = pneg %p80
      %p207 = pneg %p77
      %p208 = pneg %p101
      %p209 = pneg %p98
      %p210 = pneg %p127
      %p211 = pneg %p124
      %s212 = smul.u32 32, %s17
      %p213 = scmp.lt.s32.totalorder %s212, 63
      %s214 = scalar_select %p213, %s212, 63
      %s215 = smul.addr %s214, 8
      %s216 = scalar_lea.vmem %s4, %s215
      %p217 = pneg %p153
      %p218 = pneg %p150
      %p219 = scmp.lt.s32.totalorder %s17, 1
      %s220 = scalar_select %p219, %s17, 1
      %s221 = smul.addr %s220, 8
      %s222 = scalar_lea.vmem %s5, %s221
      %s223 = smul.u32 32, %s17
      %p224 = scmp.lt.s32.totalorder %s223, 63
      %s225 = scalar_select %p224, %s223, 63
      %s226 = smul.addr %s225, 8
      %s227 = scalar_lea.vmem %s0, %s226
      %s228 = smul.u32 32, %s17
      %s229 = smul.u32 32, %s17
      %p230 = scmp.lt.s32.totalorder %s229, 63
      %s231 = scalar_select %p230, %s229, 63
      %s232 = smul.addr %s231, 8
      %s233 = scalar_lea.vmem %s4, %s232
      %s234 = smul.u32 32, %s17
      %p235 = scmp.lt.s32.totalorder %s17, 1
      %s236 = scalar_select %p235, %s17, 1
      %s237 = smul.addr %s236, 8
      %s238 = scalar_lea.vmem %s5, %s237
      %v239 = vld [vmem:[%s227] sm:$0xff]
      %v240 = vld [vmem:[%s227 + $0x8] sm:$0xff]
      %v241 = vld [vmem:[%s227 + $0x10] sm:$0xff]
      %v242 = vld [vmem:[%s227 + $0x18] sm:$0xff]
      %v243 = vld [vmem:[%s227 + $0x20] sm:$0xff]
      %v244 = vld [vmem:[%s227 + $0x28] sm:$0xff]
      %v245 = vld [vmem:[%s227 + $0x30] sm:$0xff]
      %v246 = vld [vmem:[%s227 + $0x38] sm:$0xff]
      %v247 = vld [vmem:[%s227 + $0x40] sm:$0xff]
      %v248 = vld [vmem:[%s227 + $0x48] sm:$0xff]
      %v249 = vld [vmem:[%s227 + $0x50] sm:$0xff]
      %v250 = vld [vmem:[%s227 + $0x58] sm:$0xff]
      %v251 = vld [vmem:[%s227 + $0x60] sm:$0xff]
      %v252 = vld [vmem:[%s227 + $0x68] sm:$0xff]
      %v253 = vld [vmem:[%s227 + $0x70] sm:$0xff]
      %v254 = vld [vmem:[%s227 + $0x78] sm:$0xff]
      %v255 = vld [vmem:[%s227 + $0x80] sm:$0xff]
      %v256 = vld [vmem:[%s227 + $0x88] sm:$0xff]
      %v257 = vld [vmem:[%s227 + $0x90] sm:$0xff]
      %v258 = vld [vmem:[%s227 + $0x98] sm:$0xff]
      %v259 = vld [vmem:[%s227 + $0xa0] sm:$0xff]
      %v260 = vld [vmem:[%s227 + $0xa8] sm:$0xff]
      %v261 = vld [vmem:[%s227 + $0xb0] sm:$0xff]
      %v262 = vld [vmem:[%s227 + $0xb8] sm:$0xff]
      %v263 = vld [vmem:[%s227 + $0xc0] sm:$0xff]
      %v264 = vld [vmem:[%s227 + $0xc8] sm:$0xff]
      %v265 = vld [vmem:[%s227 + $0xd0] sm:$0xff]
      %v266 = vld [vmem:[%s227 + $0xd8] sm:$0xff]
      %v267 = vld [vmem:[%s227 + $0xe0] sm:$0xff]
      %v268 = vld [vmem:[%s227 + $0xe8] sm:$0xff]
      %v269 = vld [vmem:[%s227 + $0xf0] sm:$0xff]
      %v270 = vld [vmem:[%s227 + $0xf8] sm:$0xff]
      %v271 = vld [vmem:[%s1] sm:$0x1]
      %v273 = vperm.slane %v271, 0
      %v275 = vmul.f32 %v239, %v273
      %v276 = vmul.f32 %v240, %v273
      %v277 = vmul.f32 %v241, %v273
      %v278 = vmul.f32 %v242, %v273
      %v279 = vmul.f32 %v243, %v273
      %v280 = vmul.f32 %v244, %v273
      %v281 = vmul.f32 %v245, %v273
      %v282 = vmul.f32 %v246, %v273
      %v283 = vmul.f32 %v247, %v273
      %v284 = vmul.f32 %v248, %v273
      %v285 = vmul.f32 %v249, %v273
      %v286 = vmul.f32 %v250, %v273
      %v287 = vmul.f32 %v251, %v273
      %v288 = vmul.f32 %v252, %v273
      %v289 = vmul.f32 %v253, %v273
      %v290 = vmul.f32 %v254, %v273
      %v291 = vmul.f32 %v255, %v273
      %v292 = vmul.f32 %v256, %v273
      %v293 = vmul.f32 %v257, %v273
      %v294 = vmul.f32 %v258, %v273
      %v295 = vmul.f32 %v259, %v273
      %v296 = vmul.f32 %v260, %v273
      %v297 = vmul.f32 %v261, %v273
      %v298 = vmul.f32 %v262, %v273
      %v299 = vmul.f32 %v263, %v273
      %v300 = vmul.f32 %v264, %v273
      %v301 = vmul.f32 %v265, %v273
      %v302 = vmul.f32 %v266, %v273
      %v303 = vmul.f32 %v267, %v273
      %v304 = vmul.f32 %v268, %v273
      %v305 = vmul.f32 %v269, %v273
      %v306 = vmul.f32 %v270, %v273
      %v307 = vld [vmem:[%s2] sm:$0x1]
      %v309 = vperm.slane %v307, 0
      %v311 = vadd.f32 %v275, %v309
      %v312 = vadd.f32 %v276, %v309
      %v313 = vadd.f32 %v277, %v309
      %v314 = vadd.f32 %v278, %v309
      %v315 = vadd.f32 %v279, %v309
      %v316 = vadd.f32 %v280, %v309
      %v317 = vadd.f32 %v281, %v309
      %v318 = vadd.f32 %v282, %v309
      %v319 = vadd.f32 %v283, %v309
      %v320 = vadd.f32 %v284, %v309
      %v321 = vadd.f32 %v285, %v309
      %v322 = vadd.f32 %v286, %v309
      %v323 = vadd.f32 %v287, %v309
      %v324 = vadd.f32 %v288, %v309
      %v325 = vadd.f32 %v289, %v309
      %v326 = vadd.f32 %v290, %v309
      %v327 = vadd.f32 %v291, %v309
      %v328 = vadd.f32 %v292, %v309
      %v329 = vadd.f32 %v293, %v309
      %v330 = vadd.f32 %v294, %v309
      %v331 = vadd.f32 %v295, %v309
      %v332 = vadd.f32 %v296, %v309
      %v333 = vadd.f32 %v297, %v309
      %v334 = vadd.f32 %v298, %v309
      %v335 = vadd.f32 %v299, %v309
      %v336 = vadd.f32 %v300, %v309
      %v337 = vadd.f32 %v301, %v309
      %v338 = vadd.f32 %v302, %v309
      %v339 = vadd.f32 %v303, %v309
      %v340 = vadd.f32 %v304, %v309
      %v341 = vadd.f32 %v305, %v309
      %v342 = vadd.f32 %v306, %v309
      %v343 = vmax.f32 %v311, 0.0
      %v344 = vmax.f32 %v312, 0.0
      %v345 = vmax.f32 %v313, 0.0
      %v346 = vmax.f32 %v314, 0.0
      %v347 = vmax.f32 %v315, 0.0
      %v348 = vmax.f32 %v316, 0.0
      %v349 = vmax.f32 %v317, 0.0
      %v350 = vmax.f32 %v318, 0.0
      %v351 = vmax.f32 %v319, 0.0
      %v352 = vmax.f32 %v320, 0.0
      %v353 = vmax.f32 %v321, 0.0
      %v354 = vmax.f32 %v322, 0.0
      %v355 = vmax.f32 %v323, 0.0
      %v356 = vmax.f32 %v324, 0.0
      %v357 = vmax.f32 %v325, 0.0
      %v358 = vmax.f32 %v326, 0.0
      %v359 = vmax.f32 %v327, 0.0
      %v360 = vmax.f32 %v328, 0.0
      %v361 = vmax.f32 %v329, 0.0
      %v362 = vmax.f32 %v330, 0.0
      %v363 = vmax.f32 %v331, 0.0
      %v364 = vmax.f32 %v332, 0.0
      %v365 = vmax.f32 %v333, 0.0
      %v366 = vmax.f32 %v334, 0.0
      %v367 = vmax.f32 %v335, 0.0
      %v368 = vmax.f32 %v336, 0.0
      %v369 = vmax.f32 %v337, 0.0
      %v370 = vmax.f32 %v338, 0.0
      %v371 = vmax.f32 %v339, 0.0
      %v372 = vmax.f32 %v340, 0.0
      %v373 = vmax.f32 %v341, 0.0
      %v374 = vmax.f32 %v342, 0.0
      %v375 = vpack.c.bf16 %v344, %v343
      %v376 = vpack.c.bf16 %v346, %v345
      %v377 = vpack.c.bf16 %v348, %v347
      %v378 = vpack.c.bf16 %v350, %v349
      %v379 = vpack.c.bf16 %v352, %v351
      %v380 = vpack.c.bf16 %v354, %v353
      %v381 = vpack.c.bf16 %v356, %v355
      %v382 = vpack.c.bf16 %v358, %v357
      %v383 = vpack.c.bf16 %v360, %v359
      %v384 = vpack.c.bf16 %v362, %v361
      %v385 = vpack.c.bf16 %v364, %v363
      %v386 = vpack.c.bf16 %v366, %v365
      %v387 = vpack.c.bf16 %v368, %v367
      %v388 = vpack.c.bf16 %v370, %v369
      %v389 = vpack.c.bf16 %v372, %v371
      %v390 = vpack.c.bf16 %v374, %v373
      %v391 = vld [vmem:[%s3] sm:$0xf]
      %v392 = vld [vmem:[%s3 + $0x4] sm:$0xf]
      %v393 = vld [vmem:[%s3 + $0x8] sm:$0xf]
      %v394 = vld [vmem:[%s3 + $0xc] sm:$0xf]
      %v395 = vld [vmem:[%s3 + $0x10] sm:$0xf]
      %v396 = vld [vmem:[%s3 + $0x14] sm:$0xf]
      %v397 = vld [vmem:[%s3 + $0x18] sm:$0xf]
      %v398 = vld [vmem:[%s3 + $0x1c] sm:$0xf]
      %v399 = vld [vmem:[%s3 + $0x20] sm:$0xf]
      %v400 = vld [vmem:[%s3 + $0x24] sm:$0xf]
      %v401 = vld [vmem:[%s3 + $0x28] sm:$0xf]
      %v402 = vld [vmem:[%s3 + $0x2c] sm:$0xf]
      %v403 = vld [vmem:[%s3 + $0x30] sm:$0xf]
      %v404 = vld [vmem:[%s3 + $0x34] sm:$0xf]
      %v405 = vld [vmem:[%s3 + $0x38] sm:$0xf]
      %v406 = vld [vmem:[%s3 + $0x3c] sm:$0xf]
      %v423 = vunpack.c.l.b16 %v391
      %v424 = vunpack.c.l.b16 %v392
      %v425 = vunpack.c.l.b16 %v393
      %v426 = vunpack.c.l.b16 %v394
      %v427 = vunpack.c.l.b16 %v395
      %v428 = vunpack.c.l.b16 %v396
      %v429 = vunpack.c.l.b16 %v397
      %v430 = vunpack.c.l.b16 %v398
      %v431 = vunpack.c.l.b16 %v399
      %v432 = vunpack.c.l.b16 %v400
      %v433 = vunpack.c.l.b16 %v401
      %v434 = vunpack.c.l.b16 %v402
      %v435 = vunpack.c.l.b16 %v403
      %v436 = vunpack.c.l.b16 %v404
      %v437 = vunpack.c.l.b16 %v405
      %v438 = vunpack.c.l.b16 %v406
      %v439 = vpack.c.b16 %v424, %v423
      %v440 = vpack.c.b16 %v426, %v425
      %v441 = vpack.c.b16 %v428, %v427
      %v442 = vpack.c.b16 %v430, %v429
      %v443 = vpack.c.b16 %v432, %v431
      %v444 = vpack.c.b16 %v434, %v433
      %v445 = vpack.c.b16 %v436, %v435
      %v446 = vpack.c.b16 %v438, %v437
      %455 = vmatpush.bf16.msra.mxu0 %v446
      %456 = vmatpush.bf16.msra.mxu0 %v445
      %457 = vmatpush.bf16.msra.mxu0 %v444
      %458 = vmatpush.bf16.msra.mxu0 %v443
      %459 = vmatpush.bf16.msra.mxu0 %v442
      %460 = vmatpush.bf16.msra.mxu0 %v441
      %461 = vmatpush.bf16.msra.mxu0 %v440
      %462 = vmatpush.bf16.msra.mxu0 %v439
      %463 = vmatmul.bf16.gmra.mxu0 %v375
      %v464 = vpop.f32.mrf.mxu0
      %v465 = vadd.f32 0.0, %v464
      %v466 = vpop.f32.mrf.mxu0
      %v467 = vadd.f32 0.0, %v466
      %468 = vmatmul.bf16.gmra.mxu0 %v376
      %v469 = vpop.f32.mrf.mxu0
      %v470 = vadd.f32 0.0, %v469
      %v471 = vpop.f32.mrf.mxu0
      %v472 = vadd.f32 0.0, %v471
      %473 = vmatmul.bf16.gmra.mxu0 %v377
      %v474 = vpop.f32.mrf.mxu0
      %v475 = vadd.f32 0.0, %v474
      %v476 = vpop.f32.mrf.mxu0
      %v477 = vadd.f32 0.0, %v476
      %478 = vmatmul.bf16.gmra.mxu0 %v378
      %v479 = vpop.f32.mrf.mxu0
      %v480 = vadd.f32 0.0, %v479
      %v481 = vpop.f32.mrf.mxu0
      %v482 = vadd.f32 0.0, %v481
      %483 = vmatmul.bf16.gmra.mxu0 %v379
      %v484 = vpop.f32.mrf.mxu0
      %v485 = vadd.f32 0.0, %v484
      %v486 = vpop.f32.mrf.mxu0
      %v487 = vadd.f32 0.0, %v486
      %488 = vmatmul.bf16.gmra.mxu0 %v380
      %v489 = vpop.f32.mrf.mxu0
      %v490 = vadd.f32 0.0, %v489
      %v491 = vpop.f32.mrf.mxu0
      %v492 = vadd.f32 0.0, %v491
      %493 = vmatmul.bf16.gmra.mxu0 %v381
      %v494 = vpop.f32.mrf.mxu0
      %v495 = vadd.f32 0.0, %v494
      %v496 = vpop.f32.mrf.mxu0
      %v497 = vadd.f32 0.0, %v496
      %498 = vmatmul.bf16.gmra.mxu0 %v382
      %v499 = vpop.f32.mrf.mxu0
      %v500 = vadd.f32 0.0, %v499
      %v501 = vpop.f32.mrf.mxu0
      %v502 = vadd.f32 0.0, %v501
      %503 = vmatmul.bf16.gmra.mxu0 %v383
      %v504 = vpop.f32.mrf.mxu0
      %v505 = vadd.f32 0.0, %v504
      %v506 = vpop.f32.mrf.mxu0
      %v507 = vadd.f32 0.0, %v506
      %508 = vmatmul.bf16.gmra.mxu0 %v384
      %v509 = vpop.f32.mrf.mxu0
      %v510 = vadd.f32 0.0, %v509
      %v511 = vpop.f32.mrf.mxu0
      %v512 = vadd.f32 0.0, %v511
      %513 = vmatmul.bf16.gmra.mxu0 %v385
      %v514 = vpop.f32.mrf.mxu0
      %v515 = vadd.f32 0.0, %v514
      %v516 = vpop.f32.mrf.mxu0
      %v517 = vadd.f32 0.0, %v516
      %518 = vmatmul.bf16.gmra.mxu0 %v386
      %v519 = vpop.f32.mrf.mxu0
      %v520 = vadd.f32 0.0, %v519
      %v521 = vpop.f32.mrf.mxu0
      %v522 = vadd.f32 0.0, %v521
      %523 = vmatmul.bf16.gmra.mxu0 %v387
      %v524 = vpop.f32.mrf.mxu0
      %v525 = vadd.f32 0.0, %v524
      %v526 = vpop.f32.mrf.mxu0
      %v527 = vadd.f32 0.0, %v526
      %528 = vmatmul.bf16.gmra.mxu0 %v388
      %v529 = vpop.f32.mrf.mxu0
      %v530 = vadd.f32 0.0, %v529
      %v531 = vpop.f32.mrf.mxu0
      %v532 = vadd.f32 0.0, %v531
      %533 = vmatmul.bf16.gmra.mxu0 %v389
      %v534 = vpop.f32.mrf.mxu0
      %v535 = vadd.f32 0.0, %v534
      %v536 = vpop.f32.mrf.mxu0
      %v537 = vadd.f32 0.0, %v536
      %538 = vmatmul.bf16.gmra.mxu0 %v390
      %v539 = vpop.f32.mrf.mxu0
      %v540 = vadd.f32 0.0, %v539
      %v541 = vpop.f32.mrf.mxu0
      %v542 = vadd.f32 0.0, %v541
      %543 = vdwg.mxu0
      %544 = vst [vmem:[%s233] sm:$0xff] %v465
      %545 = vst [vmem:[%s233 + $0x8] sm:$0xff] %v467
      %546 = vst [vmem:[%s233 + $0x10] sm:$0xff] %v470
      %547 = vst [vmem:[%s233 + $0x18] sm:$0xff] %v472
      %548 = vst [vmem:[%s233 + $0x20] sm:$0xff] %v475
      %549 = vst [vmem:[%s233 + $0x28] sm:$0xff] %v477
      %550 = vst [vmem:[%s233 + $0x30] sm:$0xff] %v480
      %551 = vst [vmem:[%s233 + $0x38] sm:$0xff] %v482
      %552 = vst [vmem:[%s233 + $0x40] sm:$0xff] %v485
      %553 = vst [vmem:[%s233 + $0x48] sm:$0xff] %v487
      %554 = vst [vmem:[%s233 + $0x50] sm:$0xff] %v490
      %555 = vst [vmem:[%s233 + $0x58] sm:$0xff] %v492
      %556 = vst [vmem:[%s233 + $0x60] sm:$0xff] %v495
      %557 = vst [vmem:[%s233 + $0x68] sm:$0xff] %v497
      %558 = vst [vmem:[%s233 + $0x70] sm:$0xff] %v500
      %559 = vst [vmem:[%s233 + $0x78] sm:$0xff] %v502
      %560 = vst [vmem:[%s233 + $0x80] sm:$0xff] %v505
      %561 = vst [vmem:[%s233 + $0x88] sm:$0xff] %v507
      %562 = vst [vmem:[%s233 + $0x90] sm:$0xff] %v510
      %563 = vst [vmem:[%s233 + $0x98] sm:$0xff] %v512
      %564 = vst [vmem:[%s233 + $0xa0] sm:$0xff] %v515
      %565 = vst [vmem:[%s233 + $0xa8] sm:$0xff] %v517
      %566 = vst [vmem:[%s233 + $0xb0] sm:$0xff] %v520
      %567 = vst [vmem:[%s233 + $0xb8] sm:$0xff] %v522
      %568 = vst [vmem:[%s233 + $0xc0] sm:$0xff] %v525
      %569 = vst [vmem:[%s233 + $0xc8] sm:$0xff] %v527
      %570 = vst [vmem:[%s233 + $0xd0] sm:$0xff] %v530
      %571 = vst [vmem:[%s233 + $0xd8] sm:$0xff] %v532
      %572 = vst [vmem:[%s233 + $0xe0] sm:$0xff] %v535
      %573 = vst [vmem:[%s233 + $0xe8] sm:$0xff] %v537
      %574 = vst [vmem:[%s233 + $0xf0] sm:$0xff] %v540
      %575 = vst [vmem:[%s233 + $0xf8] sm:$0xff] %v542
      %v576 = vadd.f32 %v465, %v467
      %v577 = vadd.f32 %v576, %v470
      %v578 = vadd.f32 %v577, %v472
      %v579 = vadd.f32 %v578, %v475
      %v580 = vadd.f32 %v579, %v477
      %v581 = vadd.f32 %v580, %v480
      %v582 = vadd.f32 %v581, %v482
      %v583 = vadd.f32 %v582, %v485
      %v584 = vadd.f32 %v583, %v487
      %v585 = vadd.f32 %v584, %v490
      %v586 = vadd.f32 %v585, %v492
      %v587 = vadd.f32 %v586, %v495
      %v588 = vadd.f32 %v587, %v497
      %v589 = vadd.f32 %v588, %v500
      %v590 = vadd.f32 %v589, %v502
      %v591 = vadd.f32 %v590, %v505
      %v592 = vadd.f32 %v591, %v507
      %v593 = vadd.f32 %v592, %v510
      %v594 = vadd.f32 %v593, %v512
      %v595 = vadd.f32 %v594, %v515
      %v596 = vadd.f32 %v595, %v517
      %v597 = vadd.f32 %v596, %v520
      %v598 = vadd.f32 %v597, %v522
      %v599 = vadd.f32 %v598, %v525
      %v600 = vadd.f32 %v599, %v527
      %v601 = vadd.f32 %v600, %v530
      %v602 = vadd.f32 %v601, %v532
      %v603 = vadd.f32 %v602, %v535
      %v604 = vadd.f32 %v603, %v537
      %v605 = vadd.f32 %v604, %v540
      %v606 = vadd.f32 %v605, %v542
      %v607 = vrot.slane %v606, 4
      %v608 = vadd.f32 %v606, %v607
      %v609 = vrot.slane %v608, 2
      %v610 = vadd.f32 %v608, %v609
      %v611 = vrot.slane %v610, 1
      %v612 = vadd.f32 %v610, %v611
      %v613 = vmul.f32 %v465, %v465
      %v614 = vmul.f32 %v467, %v467
      %v615 = vmul.f32 %v470, %v470
      %v616 = vmul.f32 %v472, %v472
      %v617 = vmul.f32 %v475, %v475
      %v618 = vmul.f32 %v477, %v477
      %v619 = vmul.f32 %v480, %v480
      %v620 = vmul.f32 %v482, %v482
      %v621 = vmul.f32 %v485, %v485
      %v622 = vmul.f32 %v487, %v487
      %v623 = vmul.f32 %v490, %v490
      %v624 = vmul.f32 %v492, %v492
      %v625 = vmul.f32 %v495, %v495
      %v626 = vmul.f32 %v497, %v497
      %v627 = vmul.f32 %v500, %v500
      %v628 = vmul.f32 %v502, %v502
      %v629 = vmul.f32 %v505, %v505
      %v630 = vmul.f32 %v507, %v507
      %v631 = vmul.f32 %v510, %v510
      %v632 = vmul.f32 %v512, %v512
      %v633 = vmul.f32 %v515, %v515
      %v634 = vmul.f32 %v517, %v517
      %v635 = vmul.f32 %v520, %v520
      %v636 = vmul.f32 %v522, %v522
      %v637 = vmul.f32 %v525, %v525
      %v638 = vmul.f32 %v527, %v527
      %v639 = vmul.f32 %v530, %v530
      %v640 = vmul.f32 %v532, %v532
      %v641 = vmul.f32 %v535, %v535
      %v642 = vmul.f32 %v537, %v537
      %v643 = vmul.f32 %v540, %v540
      %v644 = vmul.f32 %v542, %v542
      %v645 = vadd.f32 %v613, %v614
      %v646 = vadd.f32 %v645, %v615
      %v647 = vadd.f32 %v646, %v616
      %v648 = vadd.f32 %v647, %v617
      %v649 = vadd.f32 %v648, %v618
      %v650 = vadd.f32 %v649, %v619
      %v651 = vadd.f32 %v650, %v620
      %v652 = vadd.f32 %v651, %v621
      %v653 = vadd.f32 %v652, %v622
      %v654 = vadd.f32 %v653, %v623
      %v655 = vadd.f32 %v654, %v624
      %v656 = vadd.f32 %v655, %v625
      %v657 = vadd.f32 %v656, %v626
      %v658 = vadd.f32 %v657, %v627
      %v659 = vadd.f32 %v658, %v628
      %v660 = vadd.f32 %v659, %v629
      %v661 = vadd.f32 %v660, %v630
      %v662 = vadd.f32 %v661, %v631
      %v663 = vadd.f32 %v662, %v632
      %v664 = vadd.f32 %v663, %v633
      %v665 = vadd.f32 %v664, %v634
      %v666 = vadd.f32 %v665, %v635
      %v667 = vadd.f32 %v666, %v636
      %v668 = vadd.f32 %v667, %v637
      %v669 = vadd.f32 %v668, %v638
      %v670 = vadd.f32 %v669, %v639
      %v671 = vadd.f32 %v670, %v640
      %v672 = vadd.f32 %v671, %v641
      %v673 = vadd.f32 %v672, %v642
      %v674 = vadd.f32 %v673, %v643
      %v675 = vadd.f32 %v674, %v644
      %v676 = vrot.slane %v675, 4
      %v677 = vadd.f32 %v675, %v676
      %v678 = vrot.slane %v677, 2
      %v679 = vadd.f32 %v677, %v678
      %v680 = vrot.slane %v679, 1
      %v681 = vadd.f32 %v679, %v680
      %vm682 = vcmask 1040384
      %v683 = vsel %vm682, %v612, %v681
      %vm684 = vcmask 1041408
      %v685 = vsel %vm684, %v683, 0.0
      %686 = vst [vmem:[%s238] sm:$0xff] %v685
      %s687 = smul.u32 32, %s17
      %p688 = scmp.lt.s32.totalorder %s687, 63
      %s689 = scalar_select %p688, %s687, 63
      %s690 = smul.addr %s689, 8
      %s691 = scalar_lea.vmem %s4, %s690
      %p692 = scmp.lt.s32.totalorder %s17, 1
      %s693 = scalar_select %p692, %s17, 1
      %s694 = smul.addr %s693, 8
      %s695 = scalar_lea.vmem %s5, %s694
      // Predicated region
      $region37: #{bottleneck_pallas.6} parent=35 // pred_check
        %p696 = pneg %p124
      $region38: #{bottleneck_pallas.6} parent=35 // pred_check_branch
        %698 = sbr.rel (%p696) target = $region40
      $region39: #{bottleneck_pallas.6} parent=35 // pred_region
        %s699 = smul.u32 32, %s17
      $region40: #{bottleneck_pallas.6} parent=35 // pred_fallthru
        _
      // Predicated region
      $region41: #{bottleneck_pallas.6} parent=35 // pred_check
        %p700 = pneg %p150
      $region42: #{bottleneck_pallas.6} parent=35 // pred_check_branch
        %702 = sbr.rel (%p700) target = $region44
      $region43: #{bottleneck_pallas.6} parent=35 // pred_region
        _
      $region44: #{bottleneck_pallas.6} parent=35 // pred_fallthru
        _
    $region36: #{bottleneck_pallas.6} parent=5 // pred_fallthru
      _
    %p703 = scmp.le.s32.totalorder 2, %s12
    // Predicated region
    $region45: #{bottleneck_pallas.6} parent=5 // pred_check
      %p704 = pneg %p703
    $region46: #{bottleneck_pallas.6} parent=5 // pred_check_branch
      %706 = sbr.rel (%p704) target = $region48
    $region47: #{bottleneck_pallas.6} parent=5 // pred_region
      %s707 = ssub.s32 %s12, 2
      // Predicated region
      $region49: #{bottleneck_pallas.6} parent=47 // pred_check
        %p708 = pneg %p130
      $region50: #{bottleneck_pallas.6} parent=47 // pred_check_branch
        %710 = sbr.rel (%p708) target = $region52
      $region51: #{bottleneck_pallas.6} parent=47 // pred_region
        %s711 = smul.u32 32, %s18
        %p712 = scmp.lt.s32.totalorder %s711, 63
        %s713 = scalar_select %p712, %s711, 63
        %s714 = smul.addr %s713, 8
        %s715 = scalar_lea.vmem %s4, %s714
      $region52: #{bottleneck_pallas.6} parent=47 // pred_fallthru
        _
      // Predicated region
      $region53: #{bottleneck_pallas.6} parent=47 // pred_check
        %p716 = pneg %p156
      $region54: #{bottleneck_pallas.6} parent=47 // pred_check_branch
        %718 = sbr.rel (%p716) target = $region56
      $region55: #{bottleneck_pallas.6} parent=47 // pred_region
        %p719 = scmp.lt.s32.totalorder %s18, 1
        %s720 = scalar_select %p719, %s18, 1
        %s721 = smul.addr %s720, 8
        %s722 = scalar_lea.vmem %s5, %s721
      $region56: #{bottleneck_pallas.6} parent=47 // pred_fallthru
        _
    $region48: #{bottleneck_pallas.6} parent=5 // pred_fallthru
      _
  $region6: #{bottleneck_pallas.6} parent=0 // loop_footer
    %s16 = sadd.s32 1, %s12
  $region7: #{bottleneck_pallas.6} parent=0 // loop_footer_branch
    %11 = sbr.rel target = $region3
  $region8: #{bottleneck_pallas.6} parent=0 // loop_exit
    _

// kernel: bottleneck_pallas.7
$region0: #{bottleneck_pallas.7}
  #allocation0 [shape = 'u32[]', space=smem, size = 0x4, offset = 0x4, fixed_abs, tag = 'smem constant byte address 0x4 - core index']
  #allocation1 [shape = 'u32[72,128]{1,0:T(1,128)}', space=vmem, size = 0x9000, scoped, tag = 'internal scratch']
  %s0 = inlined_call_operand.vmem [shape: f32[512,128], index: 0, kind: input, shape index: {}]
  %s1 = inlined_call_operand.vmem [shape: f32[512,128], index: 1, kind: input, shape index: {}]
  %s2 = inlined_call_operand.vmem [shape: f32[1,128], index: 2, kind: input, shape index: {}]
  %s3 = inlined_call_operand.vmem [shape: f32[1,128], index: 3, kind: input, shape index: {}]
  %s4 = inlined_call_operand.vmem [shape: f32[512,128], index: 4, kind: output, shape index: {}]
  %s5 = sld [smem:[#allocation0]]
  $region49: #{bottleneck_pallas.7} parent=0
    _
  %s7 = ssub.s32 1, %s5
  %s8 = scalar_select 0, %s7, %s5
  loop: start=0, step=1, limit=4
  $region2: #{bottleneck_pallas.7} parent=0 // loop_pre_header
    _
  $region3: #{bottleneck_pallas.7} parent=0 // loop_header
    %s10 = sphi 0, %s14
    %p11 = scmp.ge.s32.totalorder %s10, 4
    %s20 = sphi 0, %s22
    %s23 = sphi 0, %s20
    %s24 = sphi 0, %s23
    %s40 = sphi 0, %s24
    %s46 = sphi 0, %s48
    %s49 = sphi 0, %s46
    %s50 = sphi 0, %s49
    %s66 = sphi 0, %s50
    %s70 = sphi 0, %s70
    %s72 = sphi 0, %s70
    %s73 = sphi 0, %s72
    %s87 = sphi 0, %s73
    %s91 = sphi 0, %s91
    %s93 = sphi 0, %s91
    %s94 = sphi 0, %s93
    %s108 = sphi 0, %s94
    %s114 = sphi 0, %s116
    %s117 = sphi 0, %s114
    %s118 = sphi 0, %s117
    %s134 = sphi 0, %s118
  $region4: #{bottleneck_pallas.7} parent=0 // loop_header_branch
    %13 = sbr.rel (%p11) target = $region8
  $region5: #{bottleneck_pallas.7} parent=0 // loop_body
    %s15 = ssub.s32 %s10, 1
    %s16 = ssub.s32 %s10, 2
    %s17 = sadd.s32 %s10, 1
    %s18 = ssub.s32 %s10, %s17
    %p19 = scmp.eq.s32.totalorder %s18, 0
    %s21 = sadd.s32 %s20, 1
    %s22 = scalar_select %p19, %s20, %s21
    %p25 = pneg %p19
    %p26 = scmp.eq.s32.totalorder %s10, 1
    %p27 = por %p25, %p26
    %p28 = scmp.ne.s32.totalorder %s20, %s23
    %p29 = scmp.eq.s32.totalorder %s10, 0
    %p30 = por %p28, %p29
    %p31 = scmp.ne.s32.totalorder %s20, %s23
    %p32 = scmp.eq.s32.totalorder %s15, 1
    %p33 = por %p31, %p32
    %p34 = scmp.ne.s32.totalorder %s23, %s24
    %p35 = scmp.eq.s32.totalorder %s15, 0
    %p36 = por %p34, %p35
    %p37 = scmp.ne.s32.totalorder %s23, %s24
    %p38 = scmp.eq.s32.totalorder %s16, 1
    %p39 = por %p37, %p38
    %p41 = scmp.ne.s32.totalorder %s24, %s40
    %p42 = scmp.eq.s32.totalorder %s16, 0
    %p43 = por %p41, %p42
    %s44 = ssub.s32 %s10, %s17
    %p45 = scmp.eq.s32.totalorder %s44, 0
    %s47 = sadd.s32 %s46, 1
    %s48 = scalar_select %p45, %s46, %s47
    %p51 = pneg %p45
    %p52 = scmp.eq.s32.totalorder %s10, 1
    %p53 = por %p51, %p52
    %p54 = scmp.ne.s32.totalorder %s46, %s49
    %p55 = scmp.eq.s32.totalorder %s10, 0
    %p56 = por %p54, %p55
    %p57 = scmp.ne.s32.totalorder %s46, %s49
    %p58 = scmp.eq.s32.totalorder %s15, 1
    %p59 = por %p57, %p58
    %p60 = scmp.ne.s32.totalorder %s49, %s50
    %p61 = scmp.eq.s32.totalorder %s15, 0
    %p62 = por %p60, %p61
    %p63 = scmp.ne.s32.totalorder %s49, %s50
    %p64 = scmp.eq.s32.totalorder %s16, 1
    %p65 = por %p63, %p64
    %p67 = scmp.ne.s32.totalorder %s50, %s66
    %p68 = scmp.eq.s32.totalorder %s16, 0
    %p69 = por %p67, %p68
    %s71 = sadd.s32 %s70, 1
    %p74 = scmp.eq.s32.totalorder %s10, 1
    %p75 = scmp.ne.s32.totalorder %s70, %s72
    %p76 = scmp.eq.s32.totalorder %s10, 0
    %p77 = por %p75, %p76
    %p78 = scmp.ne.s32.totalorder %s70, %s72
    %p79 = scmp.eq.s32.totalorder %s15, 1
    %p80 = por %p78, %p79
    %p81 = scmp.ne.s32.totalorder %s72, %s73
    %p82 = scmp.eq.s32.totalorder %s15, 0
    %p83 = por %p81, %p82
    %p84 = scmp.ne.s32.totalorder %s72, %s73
    %p85 = scmp.eq.s32.totalorder %s16, 1
    %p86 = por %p84, %p85
    %p88 = scmp.ne.s32.totalorder %s73, %s87
    %p89 = scmp.eq.s32.totalorder %s16, 0
    %p90 = por %p88, %p89
    %s92 = sadd.s32 %s91, 1
    %p95 = scmp.eq.s32.totalorder %s10, 1
    %p96 = scmp.ne.s32.totalorder %s91, %s93
    %p97 = scmp.eq.s32.totalorder %s10, 0
    %p98 = por %p96, %p97
    %p99 = scmp.ne.s32.totalorder %s91, %s93
    %p100 = scmp.eq.s32.totalorder %s15, 1
    %p101 = por %p99, %p100
    %p102 = scmp.ne.s32.totalorder %s93, %s94
    %p103 = scmp.eq.s32.totalorder %s15, 0
    %p104 = por %p102, %p103
    %p105 = scmp.ne.s32.totalorder %s93, %s94
    %p106 = scmp.eq.s32.totalorder %s16, 1
    %p107 = por %p105, %p106
    %p109 = scmp.ne.s32.totalorder %s94, %s108
    %p110 = scmp.eq.s32.totalorder %s16, 0
    %p111 = por %p109, %p110
    %s112 = ssub.s32 %s10, %s17
    %p113 = scmp.eq.s32.totalorder %s112, 0
    %s115 = sadd.s32 %s114, 1
    %s116 = scalar_select %p113, %s114, %s115
    %p119 = pneg %p113
    %p120 = scmp.eq.s32.totalorder %s10, 1
    %p121 = por %p119, %p120
    %p122 = scmp.ne.s32.totalorder %s114, %s117
    %p123 = scmp.eq.s32.totalorder %s10, 0
    %p124 = por %p122, %p123
    %p125 = scmp.ne.s32.totalorder %s114, %s117
    %p126 = scmp.eq.s32.totalorder %s15, 1
    %p127 = por %p125, %p126
    %p128 = scmp.ne.s32.totalorder %s117, %s118
    %p129 = scmp.eq.s32.totalorder %s15, 0
    %p130 = por %p128, %p129
    %p131 = scmp.ne.s32.totalorder %s117, %s118
    %p132 = scmp.eq.s32.totalorder %s16, 1
    %p133 = por %p131, %p132
    %p135 = scmp.ne.s32.totalorder %s118, %s134
    %p136 = scmp.eq.s32.totalorder %s16, 0
    %p137 = por %p135, %p136
    %p138 = scmp.le.s32.totalorder 1, %s10
    %p139 = scmp.lt.s32.totalorder %s10, 3
    %p140 = pnand %p138, %p139
    %p141 = pneg %p140
    // Predicated region
    $region9: #{bottleneck_pallas.7} parent=5 // pred_check
      _
    $region10: #{bottleneck_pallas.7} parent=5 // pred_check_branch
      %143 = sbr.rel (%p140) target = $region12
    $region11: #{bottleneck_pallas.7} parent=5 // pred_region
      %s144 = ssub.s32 %s10, 1
      // Predicated region
      $region13: #{bottleneck_pallas.7} parent=11 // pred_check
        %p145 = pneg %p83
      $region14: #{bottleneck_pallas.7} parent=11 // pred_check_branch
        %147 = sbr.rel (%p145) target = $region16
      $region15: #{bottleneck_pallas.7} parent=11 // pred_region
        _
      $region16: #{bottleneck_pallas.7} parent=11 // pred_fallthru
        _
      // Predicated region
      $region17: #{bottleneck_pallas.7} parent=11 // pred_check
        %p148 = pneg %p104
      $region18: #{bottleneck_pallas.7} parent=11 // pred_check_branch
        %150 = sbr.rel (%p148) target = $region20
      $region19: #{bottleneck_pallas.7} parent=11 // pred_region
        _
      $region20: #{bottleneck_pallas.7} parent=11 // pred_fallthru
        _
    $region12: #{bottleneck_pallas.7} parent=5 // pred_fallthru
      _
    %p151 = scmp.lt.s32.totalorder %s10, 2
    // Predicated region
    $region21: #{bottleneck_pallas.7} parent=5 // pred_check
      %p152 = pneg %p151
    $region22: #{bottleneck_pallas.7} parent=5 // pred_check_branch
      %154 = sbr.rel (%p152) target = $region24
    $region23: #{bottleneck_pallas.7} parent=5 // pred_region
      // Predicated region
      $region25: #{bottleneck_pallas.7} parent=23 // pred_check
        %p155 = pneg %p30
      $region26: #{bottleneck_pallas.7} parent=23 // pred_check_branch
        %157 = sbr.rel (%p155) target = $region28
      $region27: #{bottleneck_pallas.7} parent=23 // pred_region
        %s158 = smul.u32 32, %s10
        %p159 = scmp.lt.s32.totalorder %s158, 63
        %s160 = scalar_select %p159, %s158, 63
        %s161 = smul.addr %s160, 8
        %s162 = scalar_lea.vmem %s0, %s161
        %s163 = smul.u32 32, %s10
      $region28: #{bottleneck_pallas.7} parent=23 // pred_fallthru
        _
      // Predicated region
      $region29: #{bottleneck_pallas.7} parent=23 // pred_check
        %p164 = pneg %p56
      $region30: #{bottleneck_pallas.7} parent=23 // pred_check_branch
        %166 = sbr.rel (%p164) target = $region32
      $region31: #{bottleneck_pallas.7} parent=23 // pred_region
        %s167 = smul.u32 32, %s10
        %p168 = scmp.lt.s32.totalorder %s167, 63
        %s169 = scalar_select %p168, %s167, 63
        %s170 = smul.addr %s169, 8
        %s171 = scalar_lea.vmem %s1, %s170
        %s172 = smul.u32 32, %s10
      $region32: #{bottleneck_pallas.7} parent=23 // pred_fallthru
        _
    $region24: #{bottleneck_pallas.7} parent=5 // pred_fallthru
      _
    %p173 = scmp.le.s32.totalorder 1, %s10
    %p174 = scmp.lt.s32.totalorder %s10, 3
    %p175 = pnand %p173, %p174
    %p176 = pneg %p175
    // Predicated region
    $region33: #{bottleneck_pallas.7} parent=5 // pred_check
      _
    $region34: #{bottleneck_pallas.7} parent=5 // pred_check_branch
      %178 = sbr.rel (%p175) target = $region36
    $region35: #{bottleneck_pallas.7} parent=5 // pred_region
      %s179 = ssub.s32 %s10, 1
      %s180 = smul.u32 32, %s15
      %p181 = scmp.lt.s32.totalorder %s180, 63
      %s182 = scalar_select %p181, %s180, 63
      %s183 = smul.addr %s182, 8
      %s184 = scalar_lea.vmem %s0, %s183
      %p185 = pneg %p36
      %p186 = pneg %p33
      %s187 = smul.u32 32, %s15
      %p188 = scmp.lt.s32.totalorder %s187, 63
      %s189 = scalar_select %p188, %s187, 63
      %s190 = smul.addr %s189, 8
      %s191 = scalar_lea.vmem %s1, %s190
      %p192 = pneg %p62
      %p193 = pneg %p59
      %p194 = pneg %p83
      %p195 = pneg %p80
      %p196 = pneg %p104
      %p197 = pneg %p101
      %p198 = pneg %p130
      %p199 = pneg %p127
      %s200 = smul.u32 32, %s15
      %p201 = scmp.lt.s32.totalorder %s200, 63
      %s202 = scalar_select %p201, %s200, 63
      %s203 = smul.addr %s202, 8
      %s204 = scalar_lea.vmem %s4, %s203
      %s205 = smul.u32 32, %s15
      %p206 = scmp.lt.s32.totalorder %s205, 63
      %s207 = scalar_select %p206, %s205, 63
      %s208 = smul.addr %s207, 8
      %s209 = scalar_lea.vmem %s0, %s208
      %s210 = smul.u32 32, %s15
      %s211 = smul.u32 32, %s15
      %p212 = scmp.lt.s32.totalorder %s211, 63
      %s213 = scalar_select %p212, %s211, 63
      %s214 = smul.addr %s213, 8
      %s215 = scalar_lea.vmem %s1, %s214
      %s216 = smul.u32 32, %s15
      %s217 = smul.u32 32, %s15
      %p218 = scmp.lt.s32.totalorder %s217, 63
      %s219 = scalar_select %p218, %s217, 63
      %s220 = smul.addr %s219, 8
      %s221 = scalar_lea.vmem %s4, %s220
      %s222 = smul.u32 32, %s15
      %v223 = vld [vmem:[%s209] sm:$0xff]
      %v224 = vld [vmem:[%s209 + $0x8] sm:$0xff]
      %v225 = vld [vmem:[%s209 + $0x10] sm:$0xff]
      %v226 = vld [vmem:[%s209 + $0x18] sm:$0xff]
      %v227 = vld [vmem:[%s209 + $0x20] sm:$0xff]
      %v228 = vld [vmem:[%s209 + $0x28] sm:$0xff]
      %v229 = vld [vmem:[%s209 + $0x30] sm:$0xff]
      %v230 = vld [vmem:[%s209 + $0x38] sm:$0xff]
      %v231 = vld [vmem:[%s209 + $0x40] sm:$0xff]
      %v232 = vld [vmem:[%s209 + $0x48] sm:$0xff]
      %v233 = vld [vmem:[%s209 + $0x50] sm:$0xff]
      %v234 = vld [vmem:[%s209 + $0x58] sm:$0xff]
      %v235 = vld [vmem:[%s209 + $0x60] sm:$0xff]
      %v236 = vld [vmem:[%s209 + $0x68] sm:$0xff]
      %v237 = vld [vmem:[%s209 + $0x70] sm:$0xff]
      %v238 = vld [vmem:[%s209 + $0x78] sm:$0xff]
      %v239 = vld [vmem:[%s209 + $0x80] sm:$0xff]
      %v240 = vld [vmem:[%s209 + $0x88] sm:$0xff]
      %v241 = vld [vmem:[%s209 + $0x90] sm:$0xff]
      %v242 = vld [vmem:[%s209 + $0x98] sm:$0xff]
      %v243 = vld [vmem:[%s209 + $0xa0] sm:$0xff]
      %v244 = vld [vmem:[%s209 + $0xa8] sm:$0xff]
      %v245 = vld [vmem:[%s209 + $0xb0] sm:$0xff]
      %v246 = vld [vmem:[%s209 + $0xb8] sm:$0xff]
      %v247 = vld [vmem:[%s209 + $0xc0] sm:$0xff]
      %v248 = vld [vmem:[%s209 + $0xc8] sm:$0xff]
      %v249 = vld [vmem:[%s209 + $0xd0] sm:$0xff]
      %v250 = vld [vmem:[%s209 + $0xd8] sm:$0xff]
      %v251 = vld [vmem:[%s209 + $0xe0] sm:$0xff]
      %v252 = vld [vmem:[%s209 + $0xe8] sm:$0xff]
      %v253 = vld [vmem:[%s209 + $0xf0] sm:$0xff]
      %v254 = vld [vmem:[%s209 + $0xf8] sm:$0xff]
      %v255 = vld [vmem:[%s2] sm:$0x1]
      %v257 = vperm.slane %v255, 0
      %v259 = vmul.f32 %v223, %v257
      %v260 = vmul.f32 %v224, %v257
      %v261 = vmul.f32 %v225, %v257
      %v262 = vmul.f32 %v226, %v257
      %v263 = vmul.f32 %v227, %v257
      %v264 = vmul.f32 %v228, %v257
      %v265 = vmul.f32 %v229, %v257
      %v266 = vmul.f32 %v230, %v257
      %v267 = vmul.f32 %v231, %v257
      %v268 = vmul.f32 %v232, %v257
      %v269 = vmul.f32 %v233, %v257
      %v270 = vmul.f32 %v234, %v257
      %v271 = vmul.f32 %v235, %v257
      %v272 = vmul.f32 %v236, %v257
      %v273 = vmul.f32 %v237, %v257
      %v274 = vmul.f32 %v238, %v257
      %v275 = vmul.f32 %v239, %v257
      %v276 = vmul.f32 %v240, %v257
      %v277 = vmul.f32 %v241, %v257
      %v278 = vmul.f32 %v242, %v257
      %v279 = vmul.f32 %v243, %v257
      %v280 = vmul.f32 %v244, %v257
      %v281 = vmul.f32 %v245, %v257
      %v282 = vmul.f32 %v246, %v257
      %v283 = vmul.f32 %v247, %v257
      %v284 = vmul.f32 %v248, %v257
      %v285 = vmul.f32 %v249, %v257
      %v286 = vmul.f32 %v250, %v257
      %v287 = vmul.f32 %v251, %v257
      %v288 = vmul.f32 %v252, %v257
      %v289 = vmul.f32 %v253, %v257
      %v290 = vmul.f32 %v254, %v257
      %v291 = vld [vmem:[%s3] sm:$0x1]
      %v293 = vperm.slane %v291, 0
      %v295 = vadd.f32 %v259, %v293
      %v296 = vadd.f32 %v260, %v293
      %v297 = vadd.f32 %v261, %v293
      %v298 = vadd.f32 %v262, %v293
      %v299 = vadd.f32 %v263, %v293
      %v300 = vadd.f32 %v264, %v293
      %v301 = vadd.f32 %v265, %v293
      %v302 = vadd.f32 %v266, %v293
      %v303 = vadd.f32 %v267, %v293
      %v304 = vadd.f32 %v268, %v293
      %v305 = vadd.f32 %v269, %v293
      %v306 = vadd.f32 %v270, %v293
      %v307 = vadd.f32 %v271, %v293
      %v308 = vadd.f32 %v272, %v293
      %v309 = vadd.f32 %v273, %v293
      %v310 = vadd.f32 %v274, %v293
      %v311 = vadd.f32 %v275, %v293
      %v312 = vadd.f32 %v276, %v293
      %v313 = vadd.f32 %v277, %v293
      %v314 = vadd.f32 %v278, %v293
      %v315 = vadd.f32 %v279, %v293
      %v316 = vadd.f32 %v280, %v293
      %v317 = vadd.f32 %v281, %v293
      %v318 = vadd.f32 %v282, %v293
      %v319 = vadd.f32 %v283, %v293
      %v320 = vadd.f32 %v284, %v293
      %v321 = vadd.f32 %v285, %v293
      %v322 = vadd.f32 %v286, %v293
      %v323 = vadd.f32 %v287, %v293
      %v324 = vadd.f32 %v288, %v293
      %v325 = vadd.f32 %v289, %v293
      %v326 = vadd.f32 %v290, %v293
      %v327 = vld [vmem:[%s215] sm:$0xff]
      %v328 = vld [vmem:[%s215 + $0x8] sm:$0xff]
      %v329 = vld [vmem:[%s215 + $0x10] sm:$0xff]
      %v330 = vld [vmem:[%s215 + $0x18] sm:$0xff]
      %v331 = vld [vmem:[%s215 + $0x20] sm:$0xff]
      %v332 = vld [vmem:[%s215 + $0x28] sm:$0xff]
      %v333 = vld [vmem:[%s215 + $0x30] sm:$0xff]
      %v334 = vld [vmem:[%s215 + $0x38] sm:$0xff]
      %v335 = vld [vmem:[%s215 + $0x40] sm:$0xff]
      %v336 = vld [vmem:[%s215 + $0x48] sm:$0xff]
      %v337 = vld [vmem:[%s215 + $0x50] sm:$0xff]
      %v338 = vld [vmem:[%s215 + $0x58] sm:$0xff]
      %v339 = vld [vmem:[%s215 + $0x60] sm:$0xff]
      %v340 = vld [vmem:[%s215 + $0x68] sm:$0xff]
      %v341 = vld [vmem:[%s215 + $0x70] sm:$0xff]
      %v342 = vld [vmem:[%s215 + $0x78] sm:$0xff]
      %v343 = vld [vmem:[%s215 + $0x80] sm:$0xff]
      %v344 = vld [vmem:[%s215 + $0x88] sm:$0xff]
      %v345 = vld [vmem:[%s215 + $0x90] sm:$0xff]
      %v346 = vld [vmem:[%s215 + $0x98] sm:$0xff]
      %v347 = vld [vmem:[%s215 + $0xa0] sm:$0xff]
      %v348 = vld [vmem:[%s215 + $0xa8] sm:$0xff]
      %v349 = vld [vmem:[%s215 + $0xb0] sm:$0xff]
      %v350 = vld [vmem:[%s215 + $0xb8] sm:$0xff]
      %v351 = vld [vmem:[%s215 + $0xc0] sm:$0xff]
      %v352 = vld [vmem:[%s215 + $0xc8] sm:$0xff]
      %v353 = vld [vmem:[%s215 + $0xd0] sm:$0xff]
      %v354 = vld [vmem:[%s215 + $0xd8] sm:$0xff]
      %v355 = vld [vmem:[%s215 + $0xe0] sm:$0xff]
      %v356 = vld [vmem:[%s215 + $0xe8] sm:$0xff]
      %v357 = vld [vmem:[%s215 + $0xf0] sm:$0xff]
      %v358 = vld [vmem:[%s215 + $0xf8] sm:$0xff]
      %v359 = vadd.f32 %v327, %v295
      %v360 = vadd.f32 %v328, %v296
      %v361 = vadd.f32 %v329, %v297
      %v362 = vadd.f32 %v330, %v298
      %v363 = vadd.f32 %v331, %v299
      %v364 = vadd.f32 %v332, %v300
      %v365 = vadd.f32 %v333, %v301
      %v366 = vadd.f32 %v334, %v302
      %v367 = vadd.f32 %v335, %v303
      %v368 = vadd.f32 %v336, %v304
      %v369 = vadd.f32 %v337, %v305
      %v370 = vadd.f32 %v338, %v306
      %v371 = vadd.f32 %v339, %v307
      %v372 = vadd.f32 %v340, %v308
      %v373 = vadd.f32 %v341, %v309
      %v374 = vadd.f32 %v342, %v310
      %v375 = vadd.f32 %v343, %v311
      %v376 = vadd.f32 %v344, %v312
      %v377 = vadd.f32 %v345, %v313
      %v378 = vadd.f32 %v346, %v314
      %v379 = vadd.f32 %v347, %v315
      %v380 = vadd.f32 %v348, %v316
      %v381 = vadd.f32 %v349, %v317
      %v382 = vadd.f32 %v350, %v318
      %v383 = vadd.f32 %v351, %v319
      %v384 = vadd.f32 %v352, %v320
      %v385 = vadd.f32 %v353, %v321
      %v386 = vadd.f32 %v354, %v322
      %v387 = vadd.f32 %v355, %v323
      %v388 = vadd.f32 %v356, %v324
      %v389 = vadd.f32 %v357, %v325
      %v390 = vadd.f32 %v358, %v326
      %v391 = vmax.f32 %v359, 0.0
      %v392 = vmax.f32 %v360, 0.0
      %v393 = vmax.f32 %v361, 0.0
      %v394 = vmax.f32 %v362, 0.0
      %v395 = vmax.f32 %v363, 0.0
      %v396 = vmax.f32 %v364, 0.0
      %v397 = vmax.f32 %v365, 0.0
      %v398 = vmax.f32 %v366, 0.0
      %v399 = vmax.f32 %v367, 0.0
      %v400 = vmax.f32 %v368, 0.0
      %v401 = vmax.f32 %v369, 0.0
      %v402 = vmax.f32 %v370, 0.0
      %v403 = vmax.f32 %v371, 0.0
      %v404 = vmax.f32 %v372, 0.0
      %v405 = vmax.f32 %v373, 0.0
      %v406 = vmax.f32 %v374, 0.0
      %v407 = vmax.f32 %v375, 0.0
      %v408 = vmax.f32 %v376, 0.0
      %v409 = vmax.f32 %v377, 0.0
      %v410 = vmax.f32 %v378, 0.0
      %v411 = vmax.f32 %v379, 0.0
      %v412 = vmax.f32 %v380, 0.0
      %v413 = vmax.f32 %v381, 0.0
      %v414 = vmax.f32 %v382, 0.0
      %v415 = vmax.f32 %v383, 0.0
      %v416 = vmax.f32 %v384, 0.0
      %v417 = vmax.f32 %v385, 0.0
      %v418 = vmax.f32 %v386, 0.0
      %v419 = vmax.f32 %v387, 0.0
      %v420 = vmax.f32 %v388, 0.0
      %v421 = vmax.f32 %v389, 0.0
      %v422 = vmax.f32 %v390, 0.0
      %423 = vst [vmem:[%s221] sm:$0xff] %v391
      %424 = vst [vmem:[%s221 + $0x8] sm:$0xff] %v392
      %425 = vst [vmem:[%s221 + $0x10] sm:$0xff] %v393
      %426 = vst [vmem:[%s221 + $0x18] sm:$0xff] %v394
      %427 = vst [vmem:[%s221 + $0x20] sm:$0xff] %v395
      %428 = vst [vmem:[%s221 + $0x28] sm:$0xff] %v396
      %429 = vst [vmem:[%s221 + $0x30] sm:$0xff] %v397
      %430 = vst [vmem:[%s221 + $0x38] sm:$0xff] %v398
      %431 = vst [vmem:[%s221 + $0x40] sm:$0xff] %v399
      %432 = vst [vmem:[%s221 + $0x48] sm:$0xff] %v400
      %433 = vst [vmem:[%s221 + $0x50] sm:$0xff] %v401
      %434 = vst [vmem:[%s221 + $0x58] sm:$0xff] %v402
      %435 = vst [vmem:[%s221 + $0x60] sm:$0xff] %v403
      %436 = vst [vmem:[%s221 + $0x68] sm:$0xff] %v404
      %437 = vst [vmem:[%s221 + $0x70] sm:$0xff] %v405
      %438 = vst [vmem:[%s221 + $0x78] sm:$0xff] %v406
      %439 = vst [vmem:[%s221 + $0x80] sm:$0xff] %v407
      %440 = vst [vmem:[%s221 + $0x88] sm:$0xff] %v408
      %441 = vst [vmem:[%s221 + $0x90] sm:$0xff] %v409
      %442 = vst [vmem:[%s221 + $0x98] sm:$0xff] %v410
      %443 = vst [vmem:[%s221 + $0xa0] sm:$0xff] %v411
      %444 = vst [vmem:[%s221 + $0xa8] sm:$0xff] %v412
      %445 = vst [vmem:[%s221 + $0xb0] sm:$0xff] %v413
      %446 = vst [vmem:[%s221 + $0xb8] sm:$0xff] %v414
      %447 = vst [vmem:[%s221 + $0xc0] sm:$0xff] %v415
      %448 = vst [vmem:[%s221 + $0xc8] sm:$0xff] %v416
      %449 = vst [vmem:[%s221 + $0xd0] sm:$0xff] %v417
      %450 = vst [vmem:[%s221 + $0xd8] sm:$0xff] %v418
      %451 = vst [vmem:[%s221 + $0xe0] sm:$0xff] %v419
      %452 = vst [vmem:[%s221 + $0xe8] sm:$0xff] %v420
      %453 = vst [vmem:[%s221 + $0xf0] sm:$0xff] %v421
      %454 = vst [vmem:[%s221 + $0xf8] sm:$0xff] %v422
      %s455 = smul.u32 32, %s15
      %p456 = scmp.lt.s32.totalorder %s455, 63
      %s457 = scalar_select %p456, %s455, 63
      %s458 = smul.addr %s457, 8
      %s459 = scalar_lea.vmem %s4, %s458
      // Predicated region
      $region37: #{bottleneck_pallas.7} parent=35 // pred_check
        %p460 = pneg %p127
      $region38: #{bottleneck_pallas.7} parent=35 // pred_check_branch
        %462 = sbr.rel (%p460) target = $region40
      $region39: #{bottleneck_pallas.7} parent=35 // pred_region
        %s463 = smul.u32 32, %s15
      $region40: #{bottleneck_pallas.7} parent=35 // pred_fallthru
        _
    $region36: #{bottleneck_pallas.7} parent=5 // pred_fallthru
      _
    %p464 = scmp.le.s32.totalorder 2, %s10
    // Predicated region
    $region41: #{bottleneck_pallas.7} parent=5 // pred_check
      %p465 = pneg %p464
    $region42: #{bottleneck_pallas.7} parent=5 // pred_check_branch
      %467 = sbr.rel (%p465) target = $region44
    $region43: #{bottleneck_pallas.7} parent=5 // pred_region
      %s468 = ssub.s32 %s10, 2
      // Predicated region
      $region45: #{bottleneck_pallas.7} parent=43 // pred_check
        %p469 = pneg %p133
      $region46: #{bottleneck_pallas.7} parent=43 // pred_check_branch
        %471 = sbr.rel (%p469) target = $region48
      $region47: #{bottleneck_pallas.7} parent=43 // pred_region
        %s472 = smul.u32 32, %s16
        %p473 = scmp.lt.s32.totalorder %s472, 63
        %s474 = scalar_select %p473, %s472, 63
        %s475 = smul.addr %s474, 8
        %s476 = scalar_lea.vmem %s4, %s475
      $region48: #{bottleneck_pallas.7} parent=43 // pred_fallthru
        _
    $region44: #{bottleneck_pallas.7} parent=5 // pred_fallthru
      _
  $region6: #{bottleneck_pallas.7} parent=0 // loop_footer
    %s14 = sadd.s32 1, %s10
  $region7: #{bottleneck_pallas.7} parent=0 // loop_footer_branch
    %9 = sbr.rel target = $region3
  $region8: #{bottleneck_pallas.7} parent=0 // loop_exit
    _

// kernel: bottleneck_pallas.4
$region0: #{bottleneck_pallas.4}
  #allocation0 [shape = 'u32[]', space=smem, size = 0x4, offset = 0x4, fixed_abs, tag = 'smem constant byte address 0x4 - core index']
  #allocation1 [shape = 'u32[72,128]{1,0:T(1,128)}', space=vmem, size = 0x9000, scoped, tag = 'internal scratch']
  %s0 = inlined_call_operand.vmem [shape: f32[512,128], index: 0, kind: input, shape index: {}]
  %s1 = inlined_call_operand.vmem [shape: bf16[128,128], index: 1, kind: input, shape index: {}]
  %s2 = inlined_call_operand.vmem [shape: f32[512,128], index: 2, kind: output, shape index: {0}]
  %s3 = inlined_call_operand.vmem [shape: f32[2,8,128], index: 3, kind: output, shape index: {1}]
  %4 = xla_tuple %s2, %s3
  %s5 = sld [smem:[#allocation0]]
  $region49: #{bottleneck_pallas.4} parent=0
    _
  %s7 = ssub.s32 1, %s5
  %s8 = scalar_select 0, %s7, %s5
  loop: start=0, step=1, limit=4
  $region2: #{bottleneck_pallas.4} parent=0 // loop_pre_header
    _
  $region3: #{bottleneck_pallas.4} parent=0 // loop_header
    %s10 = sphi 0, %s14
    %p11 = scmp.ge.s32.totalorder %s10, 4
    %s20 = sphi 0, %s22
    %s23 = sphi 0, %s20
    %s24 = sphi 0, %s23
    %s40 = sphi 0, %s24
    %s44 = sphi 0, %s44
    %s46 = sphi 0, %s44
    %s47 = sphi 0, %s46
    %s61 = sphi 0, %s47
    %s67 = sphi 0, %s69
    %s70 = sphi 0, %s67
    %s71 = sphi 0, %s70
    %s87 = sphi 0, %s71
    %s93 = sphi 0, %s95
    %s96 = sphi 0, %s93
    %s97 = sphi 0, %s96
    %s113 = sphi 0, %s97
  $region4: #{bottleneck_pallas.4} parent=0 // loop_header_branch
    %13 = sbr.rel (%p11) target = $region8
  $region5: #{bottleneck_pallas.4} parent=0 // loop_body
    %s15 = ssub.s32 %s10, 1
    %s16 = ssub.s32 %s10, 2
    %s17 = sadd.s32 %s10, 1
    %s18 = ssub.s32 %s10, %s17
    %p19 = scmp.eq.s32.totalorder %s18, 0
    %s21 = sadd.s32 %s20, 1
    %s22 = scalar_select %p19, %s20, %s21
    %p25 = pneg %p19
    %p26 = scmp.eq.s32.totalorder %s10, 1
    %p27 = por %p25, %p26
    %p28 = scmp.ne.s32.totalorder %s20, %s23
    %p29 = scmp.eq.s32.totalorder %s10, 0
    %p30 = por %p28, %p29
    %p31 = scmp.ne.s32.totalorder %s20, %s23
    %p32 = scmp.eq.s32.totalorder %s15, 1
    %p33 = por %p31, %p32
    %p34 = scmp.ne.s32.totalorder %s23, %s24
    %p35 = scmp.eq.s32.totalorder %s15, 0
    %p36 = por %p34, %p35
    %p37 = scmp.ne.s32.totalorder %s23, %s24
    %p38 = scmp.eq.s32.totalorder %s16, 1
    %p39 = por %p37, %p38
    %p41 = scmp.ne.s32.totalorder %s24, %s40
    %p42 = scmp.eq.s32.totalorder %s16, 0
    %p43 = por %p41, %p42
    %s45 = sadd.s32 %s44, 1
    %p48 = scmp.eq.s32.totalorder %s10, 1
    %p49 = scmp.ne.s32.totalorder %s44, %s46
    %p50 = scmp.eq.s32.totalorder %s10, 0
    %p51 = por %p49, %p50
    %p52 = scmp.ne.s32.totalorder %s44, %s46
    %p53 = scmp.eq.s32.totalorder %s15, 1
    %p54 = por %p52, %p53
    %p55 = scmp.ne.s32.totalorder %s46, %s47
    %p56 = scmp.eq.s32.totalorder %s15, 0
    %p57 = por %p55, %p56
    %p58 = scmp.ne.s32.totalorder %s46, %s47
    %p59 = scmp.eq.s32.totalorder %s16, 1
    %p60 = por %p58, %p59
    %p62 = scmp.ne.s32.totalorder %s47, %s61
    %p63 = scmp.eq.s32.totalorder %s16, 0
    %p64 = por %p62, %p63
    %s65 = ssub.s32 %s10, %s17
    %p66 = scmp.eq.s32.totalorder %s65, 0
    %s68 = sadd.s32 %s67, 1
    %s69 = scalar_select %p66, %s67, %s68
    %p72 = pneg %p66
    %p73 = scmp.eq.s32.totalorder %s10, 1
    %p74 = por %p72, %p73
    %p75 = scmp.ne.s32.totalorder %s67, %s70
    %p76 = scmp.eq.s32.totalorder %s10, 0
    %p77 = por %p75, %p76
    %p78 = scmp.ne.s32.totalorder %s67, %s70
    %p79 = scmp.eq.s32.totalorder %s15, 1
    %p80 = por %p78, %p79
    %p81 = scmp.ne.s32.totalorder %s70, %s71
    %p82 = scmp.eq.s32.totalorder %s15, 0
    %p83 = por %p81, %p82
    %p84 = scmp.ne.s32.totalorder %s70, %s71
    %p85 = scmp.eq.s32.totalorder %s16, 1
    %p86 = por %p84, %p85
    %p88 = scmp.ne.s32.totalorder %s71, %s87
    %p89 = scmp.eq.s32.totalorder %s16, 0
    %p90 = por %p88, %p89
    %s91 = ssub.s32 %s10, %s17
    %p92 = scmp.eq.s32.totalorder %s91, 0
    %s94 = sadd.s32 %s93, 1
    %s95 = scalar_select %p92, %s93, %s94
    %p98 = pneg %p92
    %p99 = scmp.eq.s32.totalorder %s10, 1
    %p100 = por %p98, %p99
    %p101 = scmp.ne.s32.totalorder %s93, %s96
    %p102 = scmp.eq.s32.totalorder %s10, 0
    %p103 = por %p101, %p102
    %p104 = scmp.ne.s32.totalorder %s93, %s96
    %p105 = scmp.eq.s32.totalorder %s15, 1
    %p106 = por %p104, %p105
    %p107 = scmp.ne.s32.totalorder %s96, %s97
    %p108 = scmp.eq.s32.totalorder %s15, 0
    %p109 = por %p107, %p108
    %p110 = scmp.ne.s32.totalorder %s96, %s97
    %p111 = scmp.eq.s32.totalorder %s16, 1
    %p112 = por %p110, %p111
    %p114 = scmp.ne.s32.totalorder %s97, %s113
    %p115 = scmp.eq.s32.totalorder %s16, 0
    %p116 = por %p114, %p115
    %p117 = scmp.le.s32.totalorder 1, %s10
    %p118 = scmp.lt.s32.totalorder %s10, 3
    %p119 = pnand %p117, %p118
    %p120 = pneg %p119
    // Predicated region
    $region9: #{bottleneck_pallas.4} parent=5 // pred_check
      _
    $region10: #{bottleneck_pallas.4} parent=5 // pred_check_branch
      %122 = sbr.rel (%p119) target = $region12
    $region11: #{bottleneck_pallas.4} parent=5 // pred_region
      %s123 = ssub.s32 %s10, 1
      // Predicated region
      $region13: #{bottleneck_pallas.4} parent=11 // pred_check
        %p124 = pneg %p57
      $region14: #{bottleneck_pallas.4} parent=11 // pred_check_branch
        %126 = sbr.rel (%p124) target = $region16
      $region15: #{bottleneck_pallas.4} parent=11 // pred_region
        _
      $region16: #{bottleneck_pallas.4} parent=11 // pred_fallthru
        _
    $region12: #{bottleneck_pallas.4} parent=5 // pred_fallthru
      _
    %p127 = scmp.lt.s32.totalorder %s10, 2
    // Predicated region
    $region17: #{bottleneck_pallas.4} parent=5 // pred_check
      %p128 = pneg %p127
    $region18: #{bottleneck_pallas.4} parent=5 // pred_check_branch
      %130 = sbr.rel (%p128) target = $region20
    $region19: #{bottleneck_pallas.4} parent=5 // pred_region
      // Predicated region
      $region21: #{bottleneck_pallas.4} parent=19 // pred_check
        %p131 = pneg %p30
      $region22: #{bottleneck_pallas.4} parent=19 // pred_check_branch
        %133 = sbr.rel (%p131) target = $region24
      $region23: #{bottleneck_pallas.4} parent=19 // pred_region
        %s134 = smul.u32 32, %s10
        %p135 = scmp.lt.s32.totalorder %s134, 63
        %s136 = scalar_select %p135, %s134, 63
        %s137 = smul.addr %s136, 8
        %s138 = scalar_lea.vmem %s0, %s137
        %s139 = smul.u32 32, %s10
      $region24: #{bottleneck_pallas.4} parent=19 // pred_fallthru
        _
    $region20: #{bottleneck_pallas.4} parent=5 // pred_fallthru
      _
    %p140 = scmp.le.s32.totalorder 1, %s10
    %p141 = scmp.lt.s32.totalorder %s10, 3
    %p142 = pnand %p140, %p141
    %p143 = pneg %p142
    // Predicated region
    $region25: #{bottleneck_pallas.4} parent=5 // pred_check
      _
    $region26: #{bottleneck_pallas.4} parent=5 // pred_check_branch
      %145 = sbr.rel (%p142) target = $region28
    $region27: #{bottleneck_pallas.4} parent=5 // pred_region
      %s146 = ssub.s32 %s10, 1
      %s147 = smul.u32 32, %s15
      %p148 = scmp.lt.s32.totalorder %s147, 63
      %s149 = scalar_select %p148, %s147, 63
      %s150 = smul.addr %s149, 8
      %s151 = scalar_lea.vmem %s0, %s150
      %p152 = pneg %p36
      %p153 = pneg %p33
      %p154 = pneg %p57
      %p155 = pneg %p54
      %p156 = pneg %p83
      %p157 = pneg %p80
      %s158 = smul.u32 32, %s15
      %p159 = scmp.lt.s32.totalorder %s158, 63
      %s160 = scalar_select %p159, %s158, 63
      %s161 = smul.addr %s160, 8
      %s162 = scalar_lea.vmem %s2, %s161
      %p163 = pneg %p109
      %p164 = pneg %p106
      %p165 = scmp.lt.s32.totalorder %s15, 1
      %s166 = scalar_select %p165, %s15, 1
      %s167 = smul.addr %s166, 8
      %s168 = scalar_lea.vmem %s3, %s167
      %s169 = smul.u32 32, %s15
      %p170 = scmp.lt.s32.totalorder %s169, 63
      %s171 = scalar_select %p170, %s169, 63
      %s172 = smul.addr %s171, 8
      %s173 = scalar_lea.vmem %s0, %s172
      %s174 = smul.u32 32, %s15
      %s175 = smul.u32 32, %s15
      %p176 = scmp.lt.s32.totalorder %s175, 63
      %s177 = scalar_select %p176, %s175, 63
      %s178 = smul.addr %s177, 8
      %s179 = scalar_lea.vmem %s2, %s178
      %s180 = smul.u32 32, %s15
      %p181 = scmp.lt.s32.totalorder %s15, 1
      %s182 = scalar_select %p181, %s15, 1
      %s183 = smul.addr %s182, 8
      %s184 = scalar_lea.vmem %s3, %s183
      %v185 = vld [vmem:[%s173] sm:$0xff]
      %v186 = vld [vmem:[%s173 + $0x8] sm:$0xff]
      %v187 = vld [vmem:[%s173 + $0x10] sm:$0xff]
      %v188 = vld [vmem:[%s173 + $0x18] sm:$0xff]
      %v189 = vld [vmem:[%s173 + $0x20] sm:$0xff]
      %v190 = vld [vmem:[%s173 + $0x28] sm:$0xff]
      %v191 = vld [vmem:[%s173 + $0x30] sm:$0xff]
      %v192 = vld [vmem:[%s173 + $0x38] sm:$0xff]
      %v193 = vld [vmem:[%s173 + $0x40] sm:$0xff]
      %v194 = vld [vmem:[%s173 + $0x48] sm:$0xff]
      %v195 = vld [vmem:[%s173 + $0x50] sm:$0xff]
      %v196 = vld [vmem:[%s173 + $0x58] sm:$0xff]
      %v197 = vld [vmem:[%s173 + $0x60] sm:$0xff]
      %v198 = vld [vmem:[%s173 + $0x68] sm:$0xff]
      %v199 = vld [vmem:[%s173 + $0x70] sm:$0xff]
      %v200 = vld [vmem:[%s173 + $0x78] sm:$0xff]
      %v201 = vld [vmem:[%s173 + $0x80] sm:$0xff]
      %v202 = vld [vmem:[%s173 + $0x88] sm:$0xff]
      %v203 = vld [vmem:[%s173 + $0x90] sm:$0xff]
      %v204 = vld [vmem:[%s173 + $0x98] sm:$0xff]
      %v205 = vld [vmem:[%s173 + $0xa0] sm:$0xff]
      %v206 = vld [vmem:[%s173 + $0xa8] sm:$0xff]
      %v207 = vld [vmem:[%s173 + $0xb0] sm:$0xff]
      %v208 = vld [vmem:[%s173 + $0xb8] sm:$0xff]
      %v209 = vld [vmem:[%s173 + $0xc0] sm:$0xff]
      %v210 = vld [vmem:[%s173 + $0xc8] sm:$0xff]
      %v211 = vld [vmem:[%s173 + $0xd0] sm:$0xff]
      %v212 = vld [vmem:[%s173 + $0xd8] sm:$0xff]
      %v213 = vld [vmem:[%s173 + $0xe0] sm:$0xff]
      %v214 = vld [vmem:[%s173 + $0xe8] sm:$0xff]
      %v215 = vld [vmem:[%s173 + $0xf0] sm:$0xff]
      %v216 = vld [vmem:[%s173 + $0xf8] sm:$0xff]
      %v217 = vpack.c.bf16 %v186, %v185
      %v218 = vpack.c.bf16 %v188, %v187
      %v219 = vpack.c.bf16 %v190, %v189
      %v220 = vpack.c.bf16 %v192, %v191
      %v221 = vpack.c.bf16 %v194, %v193
      %v222 = vpack.c.bf16 %v196, %v195
      %v223 = vpack.c.bf16 %v198, %v197
      %v224 = vpack.c.bf16 %v200, %v199
      %v225 = vpack.c.bf16 %v202, %v201
      %v226 = vpack.c.bf16 %v204, %v203
      %v227 = vpack.c.bf16 %v206, %v205
      %v228 = vpack.c.bf16 %v208, %v207
      %v229 = vpack.c.bf16 %v210, %v209
      %v230 = vpack.c.bf16 %v212, %v211
      %v231 = vpack.c.bf16 %v214, %v213
      %v232 = vpack.c.bf16 %v216, %v215
      %v233 = vld [vmem:[%s1] sm:$0xf]
      %v234 = vld [vmem:[%s1 + $0x4] sm:$0xf]
      %v235 = vld [vmem:[%s1 + $0x8] sm:$0xf]
      %v236 = vld [vmem:[%s1 + $0xc] sm:$0xf]
      %v237 = vld [vmem:[%s1 + $0x10] sm:$0xf]
      %v238 = vld [vmem:[%s1 + $0x14] sm:$0xf]
      %v239 = vld [vmem:[%s1 + $0x18] sm:$0xf]
      %v240 = vld [vmem:[%s1 + $0x1c] sm:$0xf]
      %v241 = vld [vmem:[%s1 + $0x20] sm:$0xf]
      %v242 = vld [vmem:[%s1 + $0x24] sm:$0xf]
      %v243 = vld [vmem:[%s1 + $0x28] sm:$0xf]
      %v244 = vld [vmem:[%s1 + $0x2c] sm:$0xf]
      %v245 = vld [vmem:[%s1 + $0x30] sm:$0xf]
      %v246 = vld [vmem:[%s1 + $0x34] sm:$0xf]
      %v247 = vld [vmem:[%s1 + $0x38] sm:$0xf]
      %v248 = vld [vmem:[%s1 + $0x3c] sm:$0xf]
      %v265 = vunpack.c.l.b16 %v233
      %v266 = vunpack.c.l.b16 %v234
      %v267 = vunpack.c.l.b16 %v235
      %v268 = vunpack.c.l.b16 %v236
      %v269 = vunpack.c.l.b16 %v237
      %v270 = vunpack.c.l.b16 %v238
      %v271 = vunpack.c.l.b16 %v239
      %v272 = vunpack.c.l.b16 %v240
      %v273 = vunpack.c.l.b16 %v241
      %v274 = vunpack.c.l.b16 %v242
      %v275 = vunpack.c.l.b16 %v243
      %v276 = vunpack.c.l.b16 %v244
      %v277 = vunpack.c.l.b16 %v245
      %v278 = vunpack.c.l.b16 %v246
      %v279 = vunpack.c.l.b16 %v247
      %v280 = vunpack.c.l.b16 %v248
      %v281 = vpack.c.b16 %v266, %v265
      %v282 = vpack.c.b16 %v268, %v267
      %v283 = vpack.c.b16 %v270, %v269
      %v284 = vpack.c.b16 %v272, %v271
      %v285 = vpack.c.b16 %v274, %v273
      %v286 = vpack.c.b16 %v276, %v275
      %v287 = vpack.c.b16 %v278, %v277
      %v288 = vpack.c.b16 %v280, %v279
      %297 = vmatpush.bf16.msra.mxu0 %v288
      %298 = vmatpush.bf16.msra.mxu0 %v287
      %299 = vmatpush.bf16.msra.mxu0 %v286
      %300 = vmatpush.bf16.msra.mxu0 %v285
      %301 = vmatpush.bf16.msra.mxu0 %v284
      %302 = vmatpush.bf16.msra.mxu0 %v283
      %303 = vmatpush.bf16.msra.mxu0 %v282
      %304 = vmatpush.bf16.msra.mxu0 %v281
      %305 = vmatmul.bf16.gmra.mxu0 %v217
      %v306 = vpop.f32.mrf.mxu0
      %v307 = vadd.f32 0.0, %v306
      %v308 = vpop.f32.mrf.mxu0
      %v309 = vadd.f32 0.0, %v308
      %310 = vmatmul.bf16.gmra.mxu0 %v218
      %v311 = vpop.f32.mrf.mxu0
      %v312 = vadd.f32 0.0, %v311
      %v313 = vpop.f32.mrf.mxu0
      %v314 = vadd.f32 0.0, %v313
      %315 = vmatmul.bf16.gmra.mxu0 %v219
      %v316 = vpop.f32.mrf.mxu0
      %v317 = vadd.f32 0.0, %v316
      %v318 = vpop.f32.mrf.mxu0
      %v319 = vadd.f32 0.0, %v318
      %320 = vmatmul.bf16.gmra.mxu0 %v220
      %v321 = vpop.f32.mrf.mxu0
      %v322 = vadd.f32 0.0, %v321
      %v323 = vpop.f32.mrf.mxu0
      %v324 = vadd.f32 0.0, %v323
      %325 = vmatmul.bf16.gmra.mxu0 %v221
      %v326 = vpop.f32.mrf.mxu0
      %v327 = vadd.f32 0.0, %v326
      %v328 = vpop.f32.mrf.mxu0
      %v329 = vadd.f32 0.0, %v328
      %330 = vmatmul.bf16.gmra.mxu0 %v222
      %v331 = vpop.f32.mrf.mxu0
      %v332 = vadd.f32 0.0, %v331
      %v333 = vpop.f32.mrf.mxu0
      %v334 = vadd.f32 0.0, %v333
      %335 = vmatmul.bf16.gmra.mxu0 %v223
      %v336 = vpop.f32.mrf.mxu0
      %v337 = vadd.f32 0.0, %v336
      %v338 = vpop.f32.mrf.mxu0
      %v339 = vadd.f32 0.0, %v338
      %340 = vmatmul.bf16.gmra.mxu0 %v224
      %v341 = vpop.f32.mrf.mxu0
      %v342 = vadd.f32 0.0, %v341
      %v343 = vpop.f32.mrf.mxu0
      %v344 = vadd.f32 0.0, %v343
      %345 = vmatmul.bf16.gmra.mxu0 %v225
      %v346 = vpop.f32.mrf.mxu0
      %v347 = vadd.f32 0.0, %v346
      %v348 = vpop.f32.mrf.mxu0
      %v349 = vadd.f32 0.0, %v348
      %350 = vmatmul.bf16.gmra.mxu0 %v226
      %v351 = vpop.f32.mrf.mxu0
      %v352 = vadd.f32 0.0, %v351
      %v353 = vpop.f32.mrf.mxu0
      %v354 = vadd.f32 0.0, %v353
      %355 = vmatmul.bf16.gmra.mxu0 %v227
      %v356 = vpop.f32.mrf.mxu0
      %v357 = vadd.f32 0.0, %v356
      %v358 = vpop.f32.mrf.mxu0
      %v359 = vadd.f32 0.0, %v358
      %360 = vmatmul.bf16.gmra.mxu0 %v228
      %v361 = vpop.f32.mrf.mxu0
      %v362 = vadd.f32 0.0, %v361
      %v363 = vpop.f32.mrf.mxu0
      %v364 = vadd.f32 0.0, %v363
      %365 = vmatmul.bf16.gmra.mxu0 %v229
      %v366 = vpop.f32.mrf.mxu0
      %v367 = vadd.f32 0.0, %v366
      %v368 = vpop.f32.mrf.mxu0
      %v369 = vadd.f32 0.0, %v368
      %370 = vmatmul.bf16.gmra.mxu0 %v230
      %v371 = vpop.f32.mrf.mxu0
      %v372 = vadd.f32 0.0, %v371
      %v373 = vpop.f32.mrf.mxu0
      %v374 = vadd.f32 0.0, %v373
      %375 = vmatmul.bf16.gmra.mxu0 %v231
      %v376 = vpop.f32.mrf.mxu0
      %v377 = vadd.f32 0.0, %v376
      %v378 = vpop.f32.mrf.mxu0
      %v379 = vadd.f32 0.0, %v378
      %380 = vmatmul.bf16.gmra.mxu0 %v232
      %v381 = vpop.f32.mrf.mxu0
      %v382 = vadd.f32 0.0, %v381
      %v383 = vpop.f32.mrf.mxu0
      %v384 = vadd.f32 0.0, %v383
      %385 = vdwg.mxu0
      %386 = vst [vmem:[%s179] sm:$0xff] %v307
      %387 = vst [vmem:[%s179 + $0x8] sm:$0xff] %v309
      %388 = vst [vmem:[%s179 + $0x10] sm:$0xff] %v312
      %389 = vst [vmem:[%s179 + $0x18] sm:$0xff] %v314
      %390 = vst [vmem:[%s179 + $0x20] sm:$0xff] %v317
      %391 = vst [vmem:[%s179 + $0x28] sm:$0xff] %v319
      %392 = vst [vmem:[%s179 + $0x30] sm:$0xff] %v322
      %393 = vst [vmem:[%s179 + $0x38] sm:$0xff] %v324
      %394 = vst [vmem:[%s179 + $0x40] sm:$0xff] %v327
      %395 = vst [vmem:[%s179 + $0x48] sm:$0xff] %v329
      %396 = vst [vmem:[%s179 + $0x50] sm:$0xff] %v332
      %397 = vst [vmem:[%s179 + $0x58] sm:$0xff] %v334
      %398 = vst [vmem:[%s179 + $0x60] sm:$0xff] %v337
      %399 = vst [vmem:[%s179 + $0x68] sm:$0xff] %v339
      %400 = vst [vmem:[%s179 + $0x70] sm:$0xff] %v342
      %401 = vst [vmem:[%s179 + $0x78] sm:$0xff] %v344
      %402 = vst [vmem:[%s179 + $0x80] sm:$0xff] %v347
      %403 = vst [vmem:[%s179 + $0x88] sm:$0xff] %v349
      %404 = vst [vmem:[%s179 + $0x90] sm:$0xff] %v352
      %405 = vst [vmem:[%s179 + $0x98] sm:$0xff] %v354
      %406 = vst [vmem:[%s179 + $0xa0] sm:$0xff] %v357
      %407 = vst [vmem:[%s179 + $0xa8] sm:$0xff] %v359
      %408 = vst [vmem:[%s179 + $0xb0] sm:$0xff] %v362
      %409 = vst [vmem:[%s179 + $0xb8] sm:$0xff] %v364
      %410 = vst [vmem:[%s179 + $0xc0] sm:$0xff] %v367
      %411 = vst [vmem:[%s179 + $0xc8] sm:$0xff] %v369
      %412 = vst [vmem:[%s179 + $0xd0] sm:$0xff] %v372
      %413 = vst [vmem:[%s179 + $0xd8] sm:$0xff] %v374
      %414 = vst [vmem:[%s179 + $0xe0] sm:$0xff] %v377
      %415 = vst [vmem:[%s179 + $0xe8] sm:$0xff] %v379
      %416 = vst [vmem:[%s179 + $0xf0] sm:$0xff] %v382
      %417 = vst [vmem:[%s179 + $0xf8] sm:$0xff] %v384
      %v418 = vadd.f32 %v307, %v309
      %v419 = vadd.f32 %v418, %v312
      %v420 = vadd.f32 %v419, %v314
      %v421 = vadd.f32 %v420, %v317
      %v422 = vadd.f32 %v421, %v319
      %v423 = vadd.f32 %v422, %v322
      %v424 = vadd.f32 %v423, %v324
      %v425 = vadd.f32 %v424, %v327
      %v426 = vadd.f32 %v425, %v329
      %v427 = vadd.f32 %v426, %v332
      %v428 = vadd.f32 %v427, %v334
      %v429 = vadd.f32 %v428, %v337
      %v430 = vadd.f32 %v429, %v339
      %v431 = vadd.f32 %v430, %v342
      %v432 = vadd.f32 %v431, %v344
      %v433 = vadd.f32 %v432, %v347
      %v434 = vadd.f32 %v433, %v349
      %v435 = vadd.f32 %v434, %v352
      %v436 = vadd.f32 %v435, %v354
      %v437 = vadd.f32 %v436, %v357
      %v438 = vadd.f32 %v437, %v359
      %v439 = vadd.f32 %v438, %v362
      %v440 = vadd.f32 %v439, %v364
      %v441 = vadd.f32 %v440, %v367
      %v442 = vadd.f32 %v441, %v369
      %v443 = vadd.f32 %v442, %v372
      %v444 = vadd.f32 %v443, %v374
      %v445 = vadd.f32 %v444, %v377
      %v446 = vadd.f32 %v445, %v379
      %v447 = vadd.f32 %v446, %v382
      %v448 = vadd.f32 %v447, %v384
      %v449 = vrot.slane %v448, 4
      %v450 = vadd.f32 %v448, %v449
      %v451 = vrot.slane %v450, 2
      %v452 = vadd.f32 %v450, %v451
      %v453 = vrot.slane %v452, 1
      %v454 = vadd.f32 %v452, %v453
      %v455 = vmul.f32 %v307, %v307
      %v456 = vmul.f32 %v309, %v309
      %v457 = vmul.f32 %v312, %v312
      %v458 = vmul.f32 %v314, %v314
      %v459 = vmul.f32 %v317, %v317
      %v460 = vmul.f32 %v319, %v319
      %v461 = vmul.f32 %v322, %v322
      %v462 = vmul.f32 %v324, %v324
      %v463 = vmul.f32 %v327, %v327
      %v464 = vmul.f32 %v329, %v329
      %v465 = vmul.f32 %v332, %v332
      %v466 = vmul.f32 %v334, %v334
      %v467 = vmul.f32 %v337, %v337
      %v468 = vmul.f32 %v339, %v339
      %v469 = vmul.f32 %v342, %v342
      %v470 = vmul.f32 %v344, %v344
      %v471 = vmul.f32 %v347, %v347
      %v472 = vmul.f32 %v349, %v349
      %v473 = vmul.f32 %v352, %v352
      %v474 = vmul.f32 %v354, %v354
      %v475 = vmul.f32 %v357, %v357
      %v476 = vmul.f32 %v359, %v359
      %v477 = vmul.f32 %v362, %v362
      %v478 = vmul.f32 %v364, %v364
      %v479 = vmul.f32 %v367, %v367
      %v480 = vmul.f32 %v369, %v369
      %v481 = vmul.f32 %v372, %v372
      %v482 = vmul.f32 %v374, %v374
      %v483 = vmul.f32 %v377, %v377
      %v484 = vmul.f32 %v379, %v379
      %v485 = vmul.f32 %v382, %v382
      %v486 = vmul.f32 %v384, %v384
      %v487 = vadd.f32 %v455, %v456
      %v488 = vadd.f32 %v487, %v457
      %v489 = vadd.f32 %v488, %v458
      %v490 = vadd.f32 %v489, %v459
      %v491 = vadd.f32 %v490, %v460
      %v492 = vadd.f32 %v491, %v461
      %v493 = vadd.f32 %v492, %v462
      %v494 = vadd.f32 %v493, %v463
      %v495 = vadd.f32 %v494, %v464
      %v496 = vadd.f32 %v495, %v465
      %v497 = vadd.f32 %v496, %v466
      %v498 = vadd.f32 %v497, %v467
      %v499 = vadd.f32 %v498, %v468
      %v500 = vadd.f32 %v499, %v469
      %v501 = vadd.f32 %v500, %v470
      %v502 = vadd.f32 %v501, %v471
      %v503 = vadd.f32 %v502, %v472
      %v504 = vadd.f32 %v503, %v473
      %v505 = vadd.f32 %v504, %v474
      %v506 = vadd.f32 %v505, %v475
      %v507 = vadd.f32 %v506, %v476
      %v508 = vadd.f32 %v507, %v477
      %v509 = vadd.f32 %v508, %v478
      %v510 = vadd.f32 %v509, %v479
      %v511 = vadd.f32 %v510, %v480
      %v512 = vadd.f32 %v511, %v481
      %v513 = vadd.f32 %v512, %v482
      %v514 = vadd.f32 %v513, %v483
      %v515 = vadd.f32 %v514, %v484
      %v516 = vadd.f32 %v515, %v485
      %v517 = vadd.f32 %v516, %v486
      %v518 = vrot.slane %v517, 4
      %v519 = vadd.f32 %v517, %v518
      %v520 = vrot.slane %v519, 2
      %v521 = vadd.f32 %v519, %v520
      %v522 = vrot.slane %v521, 1
      %v523 = vadd.f32 %v521, %v522
      %vm524 = vcmask 1040384
      %v525 = vsel %vm524, %v454, %v523
      %vm526 = vcmask 1041408
      %v527 = vsel %vm526, %v525, 0.0
      %528 = vst [vmem:[%s184] sm:$0xff] %v527
      %s529 = smul.u32 32, %s15
      %p530 = scmp.lt.s32.totalorder %s529, 63
      %s531 = scalar_select %p530, %s529, 63
      %s532 = smul.addr %s531, 8
      %s533 = scalar_lea.vmem %s2, %s532
      %p534 = scmp.lt.s32.totalorder %s15, 1
      %s535 = scalar_select %p534, %s15, 1
      %s536 = smul.addr %s535, 8
      %s537 = scalar_lea.vmem %s3, %s536
      // Predicated region
      $region29: #{bottleneck_pallas.4} parent=27 // pred_check
        %p538 = pneg %p80
      $region30: #{bottleneck_pallas.4} parent=27 // pred_check_branch
        %540 = sbr.rel (%p538) target = $region32
      $region31: #{bottleneck_pallas.4} parent=27 // pred_region
        %s541 = smul.u32 32, %s15
      $region32: #{bottleneck_pallas.4} parent=27 // pred_fallthru
        _
      // Predicated region
      $region33: #{bottleneck_pallas.4} parent=27 // pred_check
        %p542 = pneg %p106
      $region34: #{bottleneck_pallas.4} parent=27 // pred_check_branch
        %544 = sbr.rel (%p542) target = $region36
      $region35: #{bottleneck_pallas.4} parent=27 // pred_region
        _
      $region36: #{bottleneck_pallas.4} parent=27 // pred_fallthru
        _
    $region28: #{bottleneck_pallas.4} parent=5 // pred_fallthru
      _
    %p545 = scmp.le.s32.totalorder 2, %s10
    // Predicated region
    $region37: #{bottleneck_pallas.4} parent=5 // pred_check
      %p546 = pneg %p545
    $region38: #{bottleneck_pallas.4} parent=5 // pred_check_branch
      %548 = sbr.rel (%p546) target = $region40
    $region39: #{bottleneck_pallas.4} parent=5 // pred_region
      %s549 = ssub.s32 %s10, 2
      // Predicated region
      $region41: #{bottleneck_pallas.4} parent=39 // pred_check
        %p550 = pneg %p86
      $region42: #{bottleneck_pallas.4} parent=39 // pred_check_branch
        %552 = sbr.rel (%p550) target = $region44
      $region43: #{bottleneck_pallas.4} parent=39 // pred_region
        %s553 = smul.u32 32, %s16
        %p554 = scmp.lt.s32.totalorder %s553, 63
        %s555 = scalar_select %p554, %s553, 63
        %s556 = smul.addr %s555, 8
        %s557 = scalar_lea.vmem %s2, %s556
      $region44: #{bottleneck_pallas.4} parent=39 // pred_fallthru
        _
      // Predicated region
      $region45: #{bottleneck_pallas.4} parent=39 // pred_check
        %p558 = pneg %p112
      $region46: #{bottleneck_pallas.4} parent=39 // pred_check_branch
        %560 = sbr.rel (%p558) target = $region48
      $region47: #{bottleneck_pallas.4} parent=39 // pred_region
        %p561 = scmp.lt.s32.totalorder %s16, 1
        %s562 = scalar_select %p561, %s16, 1
        %s563 = smul.addr %s562, 8
        %s564 = scalar_lea.vmem %s3, %s563
      $region48: #{bottleneck_pallas.4} parent=39 // pred_fallthru
        _
    $region40: #{bottleneck_pallas.4} parent=5 // pred_fallthru
      _
  $region6: #{bottleneck_pallas.4} parent=0 // loop_footer
    %s14 = sadd.s32 1, %s10
  $region7: #{bottleneck_pallas.4} parent=0 // loop_footer_branch
    %9 = sbr.rel target = $region3
  $region8: #{bottleneck_pallas.4} parent=0 // loop_exit
    _

// kernel: bottleneck_pallas.5
$region0: #{bottleneck_pallas.5}
  #allocation0 [shape = 'u32[]', space=smem, size = 0x4, offset = 0x4, fixed_abs, tag = 'smem constant byte address 0x4 - core index']
  #allocation1 [shape = 'u32[72,128]{1,0:T(1,128)}', space=vmem, size = 0x9000, scoped, tag = 'internal scratch']
  #allocation2 [shape = 'f32[18,18,128]{2,1,0:T(8,128)}', space=vmem, size = 0x36000, scoped, tag = 'scratch operand']
  %s0 = inlined_call_operand.vmem [shape: f32[2,16,16,128], index: 0, kind: input, shape index: {}]
  %s1 = inlined_call_operand.vmem [shape: f32[1,128], index: 1, kind: input, shape index: {}]
  %s2 = inlined_call_operand.vmem [shape: f32[1,128], index: 2, kind: input, shape index: {}]
  %s3 = inlined_call_operand.vmem [shape: bf16[3,384,128], index: 3, kind: input, shape index: {}]
  %s4 = inlined_call_operand.vmem [shape: f32[2,16,16,128], index: 4, kind: output, shape index: {0}]
  %s5 = inlined_call_operand.vmem [shape: f32[2,8,128], index: 5, kind: output, shape index: {1}]
  %6 = xla_tuple %s4, %s5
  %s7 = sld [smem:[#allocation0]]
  $region57: #{bottleneck_pallas.5} parent=0
    _
  %s9 = ssub.s32 1, %s7
  %s10 = scalar_select 0, %s9, %s7
  loop: start=0, step=1, limit=4
  $region2: #{bottleneck_pallas.5} parent=0 // loop_pre_header
    _
  $region3: #{bottleneck_pallas.5} parent=0 // loop_header
    %s12 = sphi 0, %s16
    %p13 = scmp.ge.s32.totalorder %s12, 4
    %s22 = sphi 0, %s24
    %s25 = sphi 0, %s22
    %s26 = sphi 0, %s25
    %s42 = sphi 0, %s26
    %s46 = sphi 0, %s46
    %s48 = sphi 0, %s46
    %s49 = sphi 0, %s48
    %s63 = sphi 0, %s49
    %s67 = sphi 0, %s67
    %s69 = sphi 0, %s67
    %s70 = sphi 0, %s69
    %s84 = sphi 0, %s70
    %s88 = sphi 0, %s88
    %s90 = sphi 0, %s88
    %s91 = sphi 0, %s90
    %s105 = sphi 0, %s91
    %s111 = sphi 0, %s113
    %s114 = sphi 0, %s111
    %s115 = sphi 0, %s114
    %s131 = sphi 0, %s115
    %s137 = sphi 0, %s139
    %s140 = sphi 0, %s137
    %s141 = sphi 0, %s140
    %s157 = sphi 0, %s141
  $region4: #{bottleneck_pallas.5} parent=0 // loop_header_branch
    %15 = sbr.rel (%p13) target = $region8
  $region5: #{bottleneck_pallas.5} parent=0 // loop_body
    %s17 = ssub.s32 %s12, 1
    %s18 = ssub.s32 %s12, 2
    %s19 = sadd.s32 %s12, 1
    %s20 = ssub.s32 %s12, %s19
    %p21 = scmp.eq.s32.totalorder %s20, 0
    %s23 = sadd.s32 %s22, 1
    %s24 = scalar_select %p21, %s22, %s23
    %p27 = pneg %p21
    %p28 = scmp.eq.s32.totalorder %s12, 1
    %p29 = por %p27, %p28
    %p30 = scmp.ne.s32.totalorder %s22, %s25
    %p31 = scmp.eq.s32.totalorder %s12, 0
    %p32 = por %p30, %p31
    %p33 = scmp.ne.s32.totalorder %s22, %s25
    %p34 = scmp.eq.s32.totalorder %s17, 1
    %p35 = por %p33, %p34
    %p36 = scmp.ne.s32.totalorder %s25, %s26
    %p37 = scmp.eq.s32.totalorder %s17, 0
    %p38 = por %p36, %p37
    %p39 = scmp.ne.s32.totalorder %s25, %s26
    %p40 = scmp.eq.s32.totalorder %s18, 1
    %p41 = por %p39, %p40
    %p43 = scmp.ne.s32.totalorder %s26, %s42
    %p44 = scmp.eq.s32.totalorder %s18, 0
    %p45 = por %p43, %p44
    %s47 = sadd.s32 %s46, 1
    %p50 = scmp.eq.s32.totalorder %s12, 1
    %p51 = scmp.ne.s32.totalorder %s46, %s48
    %p52 = scmp.eq.s32.totalorder %s12, 0
    %p53 = por %p51, %p52
    %p54 = scmp.ne.s32.totalorder %s46, %s48
    %p55 = scmp.eq.s32.totalorder %s17, 1
    %p56 = por %p54, %p55
    %p57 = scmp.ne.s32.totalorder %s48, %s49
    %p58 = scmp.eq.s32.totalorder %s17, 0
    %p59 = por %p57, %p58
    %p60 = scmp.ne.s32.totalorder %s48, %s49
    %p61 = scmp.eq.s32.totalorder %s18, 1
    %p62 = por %p60, %p61
    %p64 = scmp.ne.s32.totalorder %s49, %s63
    %p65 = scmp.eq.s32.totalorder %s18, 0
    %p66 = por %p64, %p65
    %s68 = sadd.s32 %s67, 1
    %p71 = scmp.eq.s32.totalorder %s12, 1
    %p72 = scmp.ne.s32.totalorder %s67, %s69
    %p73 = scmp.eq.s32.totalorder %s12, 0
    %p74 = por %p72, %p73
    %p75 = scmp.ne.s32.totalorder %s67, %s69
    %p76 = scmp.eq.s32.totalorder %s17, 1
    %p77 = por %p75, %p76
    %p78 = scmp.ne.s32.totalorder %s69, %s70
    %p79 = scmp.eq.s32.totalorder %s17, 0
    %p80 = por %p78, %p79
    %p81 = scmp.ne.s32.totalorder %s69, %s70
    %p82 = scmp.eq.s32.totalorder %s18, 1
    %p83 = por %p81, %p82
    %p85 = scmp.ne.s32.totalorder %s70, %s84
    %p86 = scmp.eq.s32.totalorder %s18, 0
    %p87 = por %p85, %p86
    %s89 = sadd.s32 %s88, 1
    %p92 = scmp.eq.s32.totalorder %s12, 1
    %p93 = scmp.ne.s32.totalorder %s88, %s90
    %p94 = scmp.eq.s32.totalorder %s12, 0
    %p95 = por %p93, %p94
    %p96 = scmp.ne.s32.totalorder %s88, %s90
    %p97 = scmp.eq.s32.totalorder %s17, 1
    %p98 = por %p96, %p97
    %p99 = scmp.ne.s32.totalorder %s90, %s91
    %p100 = scmp.eq.s32.totalorder %s17, 0
    %p101 = por %p99, %p100
    %p102 = scmp.ne.s32.totalorder %s90, %s91
    %p103 = scmp.eq.s32.totalorder %s18, 1
    %p104 = por %p102, %p103
    %p106 = scmp.ne.s32.totalorder %s91, %s105
    %p107 = scmp.eq.s32.totalorder %s18, 0
    %p108 = por %p106, %p107
    %s109 = ssub.s32 %s12, %s19
    %p110 = scmp.eq.s32.totalorder %s109, 0
    %s112 = sadd.s32 %s111, 1
    %s113 = scalar_select %p110, %s111, %s112
    %p116 = pneg %p110
    %p117 = scmp.eq.s32.totalorder %s12, 1
    %p118 = por %p116, %p117
    %p119 = scmp.ne.s32.totalorder %s111, %s114
    %p120 = scmp.eq.s32.totalorder %s12, 0
    %p121 = por %p119, %p120
    %p122 = scmp.ne.s32.totalorder %s111, %s114
    %p123 = scmp.eq.s32.totalorder %s17, 1
    %p124 = por %p122, %p123
    %p125 = scmp.ne.s32.totalorder %s114, %s115
    %p126 = scmp.eq.s32.totalorder %s17, 0
    %p127 = por %p125, %p126
    %p128 = scmp.ne.s32.totalorder %s114, %s115
    %p129 = scmp.eq.s32.totalorder %s18, 1
    %p130 = por %p128, %p129
    %p132 = scmp.ne.s32.totalorder %s115, %s131
    %p133 = scmp.eq.s32.totalorder %s18, 0
    %p134 = por %p132, %p133
    %s135 = ssub.s32 %s12, %s19
    %p136 = scmp.eq.s32.totalorder %s135, 0
    %s138 = sadd.s32 %s137, 1
    %s139 = scalar_select %p136, %s137, %s138
    %p142 = pneg %p136
    %p143 = scmp.eq.s32.totalorder %s12, 1
    %p144 = por %p142, %p143
    %p145 = scmp.ne.s32.totalorder %s137, %s140
    %p146 = scmp.eq.s32.totalorder %s12, 0
    %p147 = por %p145, %p146
    %p148 = scmp.ne.s32.totalorder %s137, %s140
    %p149 = scmp.eq.s32.totalorder %s17, 1
    %p150 = por %p148, %p149
    %p151 = scmp.ne.s32.totalorder %s140, %s141
    %p152 = scmp.eq.s32.totalorder %s17, 0
    %p153 = por %p151, %p152
    %p154 = scmp.ne.s32.totalorder %s140, %s141
    %p155 = scmp.eq.s32.totalorder %s18, 1
    %p156 = por %p154, %p155
    %p158 = scmp.ne.s32.totalorder %s141, %s157
    %p159 = scmp.eq.s32.totalorder %s18, 0
    %p160 = por %p158, %p159
    %p161 = scmp.le.s32.totalorder 1, %s12
    %p162 = scmp.lt.s32.totalorder %s12, 3
    %p163 = pnand %p161, %p162
    %p164 = pneg %p163
    // Predicated region
    $region9: #{bottleneck_pallas.5} parent=5 // pred_check
      _
    $region10: #{bottleneck_pallas.5} parent=5 // pred_check_branch
      %166 = sbr.rel (%p163) target = $region12
    $region11: #{bottleneck_pallas.5} parent=5 // pred_region
      %s167 = ssub.s32 %s12, 1
      // Predicated region
      $region13: #{bottleneck_pallas.5} parent=11 // pred_check
        %p168 = pneg %p59
      $region14: #{bottleneck_pallas.5} parent=11 // pred_check_branch
        %170 = sbr.rel (%p168) target = $region16
      $region15: #{bottleneck_pallas.5} parent=11 // pred_region
        _
      $region16: #{bottleneck_pallas.5} parent=11 // pred_fallthru
        _
      // Predicated region
      $region17: #{bottleneck_pallas.5} parent=11 // pred_check
        %p171 = pneg %p80
      $region18: #{bottleneck_pallas.5} parent=11 // pred_check_branch
        %173 = sbr.rel (%p171) target = $region20
      $region19: #{bottleneck_pallas.5} parent=11 // pred_region
        _
      $region20: #{bottleneck_pallas.5} parent=11 // pred_fallthru
        _
      // Predicated region
      $region21: #{bottleneck_pallas.5} parent=11 // pred_check
        %p174 = pneg %p101
      $region22: #{bottleneck_pallas.5} parent=11 // pred_check_branch
        %176 = sbr.rel (%p174) target = $region24
      $region23: #{bottleneck_pallas.5} parent=11 // pred_region
        _
      $region24: #{bottleneck_pallas.5} parent=11 // pred_fallthru
        _
    $region12: #{bottleneck_pallas.5} parent=5 // pred_fallthru
      _
    %p177 = scmp.lt.s32.totalorder %s12, 2
    // Predicated region
    $region25: #{bottleneck_pallas.5} parent=5 // pred_check
      %p178 = pneg %p177
    $region26: #{bottleneck_pallas.5} parent=5 // pred_check_branch
      %180 = sbr.rel (%p178) target = $region28
    $region27: #{bottleneck_pallas.5} parent=5 // pred_region
      // Predicated region
      $region29: #{bottleneck_pallas.5} parent=27 // pred_check
        %p181 = pneg %p32
      $region30: #{bottleneck_pallas.5} parent=27 // pred_check_branch
        %183 = sbr.rel (%p181) target = $region32
      $region31: #{bottleneck_pallas.5} parent=27 // pred_region
        %p184 = scmp.lt.s32.totalorder %s12, 1
        %s185 = scalar_select %p184, %s12, 1
        %s186 = smul.addr %s185, 32
        %s187 = smul.addr %s186, 8
        %s188 = scalar_lea.vmem %s0, %s187
      $region32: #{bottleneck_pallas.5} parent=27 // pred_fallthru
        _
    $region28: #{bottleneck_pallas.5} parent=5 // pred_fallthru
      _
    %p189 = scmp.le.s32.totalorder 1, %s12
    %p190 = scmp.lt.s32.totalorder %s12, 3
    %p191 = pnand %p189, %p190
    %p192 = pneg %p191
    // Predicated region
    $region33: #{bottleneck_pallas.5} parent=5 // pred_check
      _
    $region34: #{bottleneck_pallas.5} parent=5 // pred_check_branch
      %194 = sbr.rel (%p191) target = $region36
    $region35: #{bottleneck_pallas.5} parent=5 // pred_region
      %s195 = ssub.s32 %s12, 1
      %p196 = scmp.lt.s32.totalorder %s17, 1
      %s197 = scalar_select %p196, %s17, 1
      %s198 = smul.addr %s197, 32
      %s199 = smul.addr %s198, 8
      %s200 = scalar_lea.vmem %s0, %s199
      %p201 = pneg %p38
      %p202 = pneg %p35
      %p203 = pneg %p59
      %p204 = pneg %p56
      %p205 = pneg %p80
      %p206 = pneg %p77
      %p207 = pneg %p101
      %p208 = pneg %p98
      %p209 = pneg %p127
      %p210 = pneg %p124
      %p211 = scmp.lt.s32.totalorder %s17, 1
      %s212 = scalar_select %p211, %s17, 1
      %s213 = smul.addr %s212, 32
      %s214 = smul.addr %s213, 8
      %s215 = scalar_lea.vmem %s4, %s214
      %p216 = pneg %p153
      %p217 = pneg %p150
      %p218 = scmp.lt.s32.totalorder %s17, 1
      %s219 = scalar_select %p218, %s17, 1
      %s220 = smul.addr %s219, 8
      %s221 = scalar_lea.vmem %s5, %s220
      %p222 = scmp.lt.s32.totalorder %s17, 1
      %s223 = scalar_select %p222, %s17, 1
      %s224 = smul.addr %s223, 32
      %s225 = smul.addr %s224, 8
      %s226 = scalar_lea.vmem %s0, %s225
      %p227 = scmp.lt.s32.totalorder %s17, 1
      %s228 = scalar_select %p227, %s17, 1
      %s229 = smul.addr %s228, 32
      %s230 = smul.addr %s229, 8
      %s231 = scalar_lea.vmem %s4, %s230
      %p232 = scmp.lt.s32.totalorder %s17, 1
      %s233 = scalar_select %p232, %s17, 1
      %s234 = smul.addr %s233, 8
      %s235 = scalar_lea.vmem %s5, %s234
      %v236 = vld [vmem:[%s226] sm:$0xff]
      %v237 = vld [vmem:[%s226 + $0x8] sm:$0xff]
      %v238 = vld [vmem:[%s226 + $0x10] sm:$0xff]
      %v239 = vld [vmem:[%s226 + $0x18] sm:$0xff]
      %v240 = vld [vmem:[%s226 + $0x20] sm:$0xff]
      %v241 = vld [vmem:[%s226 + $0x28] sm:$0xff]
      %v242 = vld [vmem:[%s226 + $0x30] sm:$0xff]
      %v243 = vld [vmem:[%s226 + $0x38] sm:$0xff]
      %v244 = vld [vmem:[%s226 + $0x40] sm:$0xff]
      %v245 = vld [vmem:[%s226 + $0x48] sm:$0xff]
      %v246 = vld [vmem:[%s226 + $0x50] sm:$0xff]
      %v247 = vld [vmem:[%s226 + $0x58] sm:$0xff]
      %v248 = vld [vmem:[%s226 + $0x60] sm:$0xff]
      %v249 = vld [vmem:[%s226 + $0x68] sm:$0xff]
      %v250 = vld [vmem:[%s226 + $0x70] sm:$0xff]
      %v251 = vld [vmem:[%s226 + $0x78] sm:$0xff]
      %v252 = vld [vmem:[%s226 + $0x80] sm:$0xff]
      %v253 = vld [vmem:[%s226 + $0x88] sm:$0xff]
      %v254 = vld [vmem:[%s226 + $0x90] sm:$0xff]
      %v255 = vld [vmem:[%s226 + $0x98] sm:$0xff]
      %v256 = vld [vmem:[%s226 + $0xa0] sm:$0xff]
      %v257 = vld [vmem:[%s226 + $0xa8] sm:$0xff]
      %v258 = vld [vmem:[%s226 + $0xb0] sm:$0xff]
      %v259 = vld [vmem:[%s226 + $0xb8] sm:$0xff]
      %v260 = vld [vmem:[%s226 + $0xc0] sm:$0xff]
      %v261 = vld [vmem:[%s226 + $0xc8] sm:$0xff]
      %v262 = vld [vmem:[%s226 + $0xd0] sm:$0xff]
      %v263 = vld [vmem:[%s226 + $0xd8] sm:$0xff]
      %v264 = vld [vmem:[%s226 + $0xe0] sm:$0xff]
      %v265 = vld [vmem:[%s226 + $0xe8] sm:$0xff]
      %v266 = vld [vmem:[%s226 + $0xf0] sm:$0xff]
      %v267 = vld [vmem:[%s226 + $0xf8] sm:$0xff]
      %v268 = vld [vmem:[%s1] sm:$0x1]
      %v270 = vperm.slane %v268, 0
      %v272 = vmul.f32 %v236, %v270
      %v273 = vmul.f32 %v237, %v270
      %v274 = vmul.f32 %v238, %v270
      %v275 = vmul.f32 %v239, %v270
      %v276 = vmul.f32 %v240, %v270
      %v277 = vmul.f32 %v241, %v270
      %v278 = vmul.f32 %v242, %v270
      %v279 = vmul.f32 %v243, %v270
      %v280 = vmul.f32 %v244, %v270
      %v281 = vmul.f32 %v245, %v270
      %v282 = vmul.f32 %v246, %v270
      %v283 = vmul.f32 %v247, %v270
      %v284 = vmul.f32 %v248, %v270
      %v285 = vmul.f32 %v249, %v270
      %v286 = vmul.f32 %v250, %v270
      %v287 = vmul.f32 %v251, %v270
      %v288 = vmul.f32 %v252, %v270
      %v289 = vmul.f32 %v253, %v270
      %v290 = vmul.f32 %v254, %v270
      %v291 = vmul.f32 %v255, %v270
      %v292 = vmul.f32 %v256, %v270
      %v293 = vmul.f32 %v257, %v270
      %v294 = vmul.f32 %v258, %v270
      %v295 = vmul.f32 %v259, %v270
      %v296 = vmul.f32 %v260, %v270
      %v297 = vmul.f32 %v261, %v270
      %v298 = vmul.f32 %v262, %v270
      %v299 = vmul.f32 %v263, %v270
      %v300 = vmul.f32 %v264, %v270
      %v301 = vmul.f32 %v265, %v270
      %v302 = vmul.f32 %v266, %v270
      %v303 = vmul.f32 %v267, %v270
      %v304 = vld [vmem:[%s2] sm:$0x1]
      %v306 = vperm.slane %v304, 0
      %v308 = vadd.f32 %v272, %v306
      %v309 = vadd.f32 %v273, %v306
      %v310 = vadd.f32 %v274, %v306
      %v311 = vadd.f32 %v275, %v306
      %v312 = vadd.f32 %v276, %v306
      %v313 = vadd.f32 %v277, %v306
      %v314 = vadd.f32 %v278, %v306
      %v315 = vadd.f32 %v279, %v306
      %v316 = vadd.f32 %v280, %v306
      %v317 = vadd.f32 %v281, %v306
      %v318 = vadd.f32 %v282, %v306
      %v319 = vadd.f32 %v283, %v306
      %v320 = vadd.f32 %v284, %v306
      %v321 = vadd.f32 %v285, %v306
      %v322 = vadd.f32 %v286, %v306
      %v323 = vadd.f32 %v287, %v306
      %v324 = vadd.f32 %v288, %v306
      %v325 = vadd.f32 %v289, %v306
      %v326 = vadd.f32 %v290, %v306
      %v327 = vadd.f32 %v291, %v306
      %v328 = vadd.f32 %v292, %v306
      %v329 = vadd.f32 %v293, %v306
      %v330 = vadd.f32 %v294, %v306
      %v331 = vadd.f32 %v295, %v306
      %v332 = vadd.f32 %v296, %v306
      %v333 = vadd.f32 %v297, %v306
      %v334 = vadd.f32 %v298, %v306
      %v335 = vadd.f32 %v299, %v306
      %v336 = vadd.f32 %v300, %v306
      %v337 = vadd.f32 %v301, %v306
      %v338 = vadd.f32 %v302, %v306
      %v339 = vadd.f32 %v303, %v306
      %v340 = vmax.f32 %v308, 0.0
      %v341 = vmax.f32 %v309, 0.0
      %v342 = vmax.f32 %v310, 0.0
      %v343 = vmax.f32 %v311, 0.0
      %v344 = vmax.f32 %v312, 0.0
      %v345 = vmax.f32 %v313, 0.0
      %v346 = vmax.f32 %v314, 0.0
      %v347 = vmax.f32 %v315, 0.0
      %v348 = vmax.f32 %v316, 0.0
      %v349 = vmax.f32 %v317, 0.0
      %v350 = vmax.f32 %v318, 0.0
      %v351 = vmax.f32 %v319, 0.0
      %v352 = vmax.f32 %v320, 0.0
      %v353 = vmax.f32 %v321, 0.0
      %v354 = vmax.f32 %v322, 0.0
      %v355 = vmax.f32 %v323, 0.0
      %v356 = vmax.f32 %v324, 0.0
      %v357 = vmax.f32 %v325, 0.0
      %v358 = vmax.f32 %v326, 0.0
      %v359 = vmax.f32 %v327, 0.0
      %v360 = vmax.f32 %v328, 0.0
      %v361 = vmax.f32 %v329, 0.0
      %v362 = vmax.f32 %v330, 0.0
      %v363 = vmax.f32 %v331, 0.0
      %v364 = vmax.f32 %v332, 0.0
      %v365 = vmax.f32 %v333, 0.0
      %v366 = vmax.f32 %v334, 0.0
      %v367 = vmax.f32 %v335, 0.0
      %v368 = vmax.f32 %v336, 0.0
      %v369 = vmax.f32 %v337, 0.0
      %v370 = vmax.f32 %v338, 0.0
      %v371 = vmax.f32 %v339, 0.0
      %vm404 = vcmask 1040384
      %v405 = vrot.slane %v340, 7
      %v406 = vrot.slane %v341, 7
      %v407 = vsel %vm404, %v405, %v406
      %v408 = vrot.slane %v342, 7
      %v409 = vrot.slane %v343, 7
      %v410 = vsel %vm404, %v408, %v409
      %v411 = vrot.slane %v344, 7
      %v412 = vrot.slane %v345, 7
      %v413 = vsel %vm404, %v411, %v412
      %v414 = vrot.slane %v346, 7
      %v415 = vrot.slane %v347, 7
      %v416 = vsel %vm404, %v414, %v415
      %v417 = vrot.slane %v348, 7
      %v418 = vrot.slane %v349, 7
      %v419 = vsel %vm404, %v417, %v418
      %v420 = vrot.slane %v350, 7
      %v421 = vrot.slane %v351, 7
      %v422 = vsel %vm404, %v420, %v421
      %v423 = vrot.slane %v352, 7
      %v424 = vrot.slane %v353, 7
      %v425 = vsel %vm404, %v423, %v424
      %v426 = vrot.slane %v354, 7
      %v427 = vrot.slane %v355, 7
      %v428 = vsel %vm404, %v426, %v427
      %v429 = vrot.slane %v356, 7
      %v430 = vrot.slane %v357, 7
      %v431 = vsel %vm404, %v429, %v430
      %v432 = vrot.slane %v358, 7
      %v433 = vrot.slane %v359, 7
      %v434 = vsel %vm404, %v432, %v433
      %v435 = vrot.slane %v360, 7
      %v436 = vrot.slane %v361, 7
      %v437 = vsel %vm404, %v435, %v436
      %v438 = vrot.slane %v362, 7
      %v439 = vrot.slane %v363, 7
      %v440 = vsel %vm404, %v438, %v439
      %v441 = vrot.slane %v364, 7
      %v442 = vrot.slane %v365, 7
      %v443 = vsel %vm404, %v441, %v442
      %v444 = vrot.slane %v366, 7
      %v445 = vrot.slane %v367, 7
      %v446 = vsel %vm404, %v444, %v445
      %v447 = vrot.slane %v368, 7
      %v448 = vrot.slane %v369, 7
      %v449 = vsel %vm404, %v447, %v448
      %v450 = vrot.slane %v370, 7
      %v451 = vrot.slane %v371, 7
      %v452 = vsel %vm404, %v450, %v451
      %v501 = vsel %vm404, 0.0, %v405
      %v502 = vsel %vm404, 0.0, %v408
      %v503 = vsel %vm404, 0.0, %v411
      %v504 = vsel %vm404, 0.0, %v414
      %v505 = vsel %vm404, 0.0, %v417
      %v506 = vsel %vm404, 0.0, %v420
      %v507 = vsel %vm404, 0.0, %v423
      %v508 = vsel %vm404, 0.0, %v426
      %v509 = vsel %vm404, 0.0, %v429
      %v510 = vsel %vm404, 0.0, %v432
      %v511 = vsel %vm404, 0.0, %v435
      %v512 = vsel %vm404, 0.0, %v438
      %v513 = vsel %vm404, 0.0, %v441
      %v514 = vsel %vm404, 0.0, %v444
      %v515 = vsel %vm404, 0.0, %v447
      %v516 = vsel %vm404, 0.0, %v450
      %v517 = vsel %vm404, %v406, 0.0
      %v518 = vsel %vm404, %v409, 0.0
      %v519 = vsel %vm404, %v412, 0.0
      %v520 = vsel %vm404, %v415, 0.0
      %v521 = vsel %vm404, %v418, 0.0
      %v522 = vsel %vm404, %v421, 0.0
      %v523 = vsel %vm404, %v424, 0.0
      %v524 = vsel %vm404, %v427, 0.0
      %v525 = vsel %vm404, %v430, 0.0
      %v526 = vsel %vm404, %v433, 0.0
      %v527 = vsel %vm404, %v436, 0.0
      %v528 = vsel %vm404, %v439, 0.0
      %v529 = vsel %vm404, %v442, 0.0
      %v530 = vsel %vm404, %v445, 0.0
      %v531 = vsel %vm404, %v448, 0.0
      %v532 = vsel %vm404, %v451, 0.0
      %533 = vst [vmem:[#allocation2] sm:$0xff] 0.0
      %534 = vst [vmem:[#allocation2 + $0x8] sm:$0xff] 0.0
      %535 = vst [vmem:[#allocation2 + $0x10] sm:$0x3] 0.0
      %536 = vst [vmem:[#allocation2 + $0x18] sm:$0xff] %v501
      %537 = vst [vmem:[#allocation2 + $0x20] sm:$0xff] %v407
      %538 = vst [vmem:[#allocation2 + $0x28] sm:$0x3] %v517
      %539 = vst [vmem:[#allocation2 + $0x30] sm:$0xff] %v502
      %540 = vst [vmem:[#allocation2 + $0x38] sm:$0xff] %v410
      %541 = vst [vmem:[#allocation2 + $0x40] sm:$0x3] %v518
      %542 = vst [vmem:[#allocation2 + $0x48] sm:$0xff] %v503
      %543 = vst [vmem:[#allocation2 + $0x50] sm:$0xff] %v413
      %544 = vst [vmem:[#allocation2 + $0x58] sm:$0x3] %v519
      %545 = vst [vmem:[#allocation2 + $0x60] sm:$0xff] %v504
      %546 = vst [vmem:[#allocation2 + $0x68] sm:$0xff] %v416
      %547 = vst [vmem:[#allocation2 + $0x70] sm:$0x3] %v520
      %548 = vst [vmem:[#allocation2 + $0x78] sm:$0xff] %v505
      %549 = vst [vmem:[#allocation2 + $0x80] sm:$0xff] %v419
      %550 = vst [vmem:[#allocation2 + $0x88] sm:$0x3] %v521
      %551 = vst [vmem:[#allocation2 + $0x90] sm:$0xff] %v506
      %552 = vst [vmem:[#allocation2 + $0x98] sm:$0xff] %v422
      %553 = vst [vmem:[#allocation2 + $0xa0] sm:$0x3] %v522
      %554 = vst [vmem:[#allocation2 + $0xa8] sm:$0xff] %v507
      %555 = vst [vmem:[#allocation2 + $0xb0] sm:$0xff] %v425
      %556 = vst [vmem:[#allocation2 + $0xb8] sm:$0x3] %v523
      %557 = vst [vmem:[#allocation2 + $0xc0] sm:$0xff] %v508
      %558 = vst [vmem:[#allocation2 + $0xc8] sm:$0xff] %v428
      %559 = vst [vmem:[#allocation2 + $0xd0] sm:$0x3] %v524
      %560 = vst [vmem:[#allocation2 + $0xd8] sm:$0xff] %v509
      %561 = vst [vmem:[#allocation2 + $0xe0] sm:$0xff] %v431
      %562 = vst [vmem:[#allocation2 + $0xe8] sm:$0x3] %v525
      %563 = vst [vmem:[#allocation2 + $0xf0] sm:$0xff] %v510
      %564 = vst [vmem:[#allocation2 + $0xf8] sm:$0xff] %v434
      %565 = vst [vmem:[#allocation2 + $0x100] sm:$0x3] %v526
      %566 = vst [vmem:[#allocation2 + $0x108] sm:$0xff] %v511
      %567 = vst [vmem:[#allocation2 + $0x110] sm:$0xff] %v437
      %568 = vst [vmem:[#allocation2 + $0x118] sm:$0x3] %v527
      %569 = vst [vmem:[#allocation2 + $0x120] sm:$0xff] %v512
      %570 = vst [vmem:[#allocation2 + $0x128] sm:$0xff] %v440
      %571 = vst [vmem:[#allocation2 + $0x130] sm:$0x3] %v528
      %572 = vst [vmem:[#allocation2 + $0x138] sm:$0xff] %v513
      %573 = vst [vmem:[#allocation2 + $0x140] sm:$0xff] %v443
      %574 = vst [vmem:[#allocation2 + $0x148] sm:$0x3] %v529
      %575 = vst [vmem:[#allocation2 + $0x150] sm:$0xff] %v514
      %576 = vst [vmem:[#allocation2 + $0x158] sm:$0xff] %v446
      %577 = vst [vmem:[#allocation2 + $0x160] sm:$0x3] %v530
      %578 = vst [vmem:[#allocation2 + $0x168] sm:$0xff] %v515
      %579 = vst [vmem:[#allocation2 + $0x170] sm:$0xff] %v449
      %580 = vst [vmem:[#allocation2 + $0x178] sm:$0x3] %v531
      %581 = vst [vmem:[#allocation2 + $0x180] sm:$0xff] %v516
      %582 = vst [vmem:[#allocation2 + $0x188] sm:$0xff] %v452
      %583 = vst [vmem:[#allocation2 + $0x190] sm:$0x3] %v532
      %584 = vst [vmem:[#allocation2 + $0x198] sm:$0xff] 0.0
      %585 = vst [vmem:[#allocation2 + $0x1a0] sm:$0xff] 0.0
      %586 = vst [vmem:[#allocation2 + $0x1a8] sm:$0x3] 0.0
      %v587 = vld [vmem:[#allocation2] sm:$0xff]
      %v588 = vld [vmem:[#allocation2 + $0x8] sm:$0xff]
      %v589 = vld [vmem:[#allocation2 + $0x10] sm:$0x3]
      %v590 = vld [vmem:[#allocation2 + $0x18] sm:$0xff]
      %v591 = vld [vmem:[#allocation2 + $0x20] sm:$0xff]
      %v592 = vld [vmem:[#allocation2 + $0x28] sm:$0x3]
      %v593 = vld [vmem:[#allocation2 + $0x30] sm:$0xff]
      %v594 = vld [vmem:[#allocation2 + $0x38] sm:$0xff]
      %v595 = vld [vmem:[#allocation2 + $0x40] sm:$0x3]
      %v596 = vld [vmem:[#allocation2 + $0x48] sm:$0xff]
      %v597 = vld [vmem:[#allocation2 + $0x50] sm:$0xff]
      %v598 = vld [vmem:[#allocation2 + $0x58] sm:$0x3]
      %v599 = vld [vmem:[#allocation2 + $0x60] sm:$0xff]
      %v600 = vld [vmem:[#allocation2 + $0x68] sm:$0xff]
      %v601 = vld [vmem:[#allocation2 + $0x70] sm:$0x3]
      %v602 = vld [vmem:[#allocation2 + $0x78] sm:$0xff]
      %v603 = vld [vmem:[#allocation2 + $0x80] sm:$0xff]
      %v604 = vld [vmem:[#allocation2 + $0x88] sm:$0x3]
      %v605 = vld [vmem:[#allocation2 + $0x90] sm:$0xff]
      %v606 = vld [vmem:[#allocation2 + $0x98] sm:$0xff]
      %v607 = vld [vmem:[#allocation2 + $0xa0] sm:$0x3]
      %v608 = vld [vmem:[#allocation2 + $0xa8] sm:$0xff]
      %v609 = vld [vmem:[#allocation2 + $0xb0] sm:$0xff]
      %v610 = vld [vmem:[#allocation2 + $0xb8] sm:$0x3]
      %v611 = vld [vmem:[#allocation2 + $0xc0] sm:$0xff]
      %v612 = vld [vmem:[#allocation2 + $0xc8] sm:$0xff]
      %v613 = vld [vmem:[#allocation2 + $0xd0] sm:$0x3]
      %v614 = vld [vmem:[#allocation2 + $0xd8] sm:$0xff]
      %v615 = vld [vmem:[#allocation2 + $0xe0] sm:$0xff]
      %v616 = vld [vmem:[#allocation2 + $0xe8] sm:$0x3]
      %v617 = vld [vmem:[#allocation2 + $0xf0] sm:$0xff]
      %v618 = vld [vmem:[#allocation2 + $0xf8] sm:$0xff]
      %v619 = vld [vmem:[#allocation2 + $0x100] sm:$0x3]
      %v620 = vld [vmem:[#allocation2 + $0x108] sm:$0xff]
      %v621 = vld [vmem:[#allocation2 + $0x110] sm:$0xff]
      %v622 = vld [vmem:[#allocation2 + $0x118] sm:$0x3]
      %v623 = vld [vmem:[#allocation2 + $0x120] sm:$0xff]
      %v624 = vld [vmem:[#allocation2 + $0x128] sm:$0xff]
      %v625 = vld [vmem:[#allocation2 + $0x130] sm:$0x3]
      %v626 = vld [vmem:[#allocation2 + $0x138] sm:$0xff]
      %v627 = vld [vmem:[#allocation2 + $0x140] sm:$0xff]
      %v628 = vld [vmem:[#allocation2 + $0x148] sm:$0x3]
      %v629 = vld [vmem:[#allocation2 + $0x150] sm:$0xff]
      %v630 = vld [vmem:[#allocation2 + $0x158] sm:$0xff]
      %v631 = vld [vmem:[#allocation2 + $0x160] sm:$0x3]
      %v632 = vld [vmem:[#allocation2 + $0x168] sm:$0xff]
      %v633 = vld [vmem:[#allocation2 + $0x170] sm:$0xff]
      %v634 = vld [vmem:[#allocation2 + $0x178] sm:$0x3]
      %vm683 = vcmask 1046528
      %v684 = vrot.slane %v587, 1
      %v685 = vrot.slane %v588, 1
      %v686 = vsel %vm683, %v684, %v685
      %v687 = vrot.slane %v589, 1
      %v688 = vsel %vm683, %v685, %v687
      %v689 = vrot.slane %v590, 1
      %v690 = vrot.slane %v591, 1
      %v691 = vsel %vm683, %v689, %v690
      %v692 = vrot.slane %v592, 1
      %v693 = vsel %vm683, %v690, %v692
      %v694 = vrot.slane %v593, 1
      %v695 = vrot.slane %v594, 1
      %v696 = vsel %vm683, %v694, %v695
      %v697 = vrot.slane %v595, 1
      %v698 = vsel %vm683, %v695, %v697
      %v699 = vrot.slane %v596, 1
      %v700 = vrot.slane %v597, 1
      %v701 = vsel %vm683, %v699, %v700
      %v702 = vrot.slane %v598, 1
      %v703 = vsel %vm683, %v700, %v702
      %v704 = vrot.slane %v599, 1
      %v705 = vrot.slane %v600, 1
      %v706 = vsel %vm683, %v704, %v705
      %v707 = vrot.slane %v601, 1
      %v708 = vsel %vm683, %v705, %v707
      %v709 = vrot.slane %v602, 1
      %v710 = vrot.slane %v603, 1
      %v711 = vsel %vm683, %v709, %v710
      %v712 = vrot.slane %v604, 1
      %v713 = vsel %vm683, %v710, %v712
      %v714 = vrot.slane %v605, 1
      %v715 = vrot.slane %v606, 1
      %v716 = vsel %vm683, %v714, %v715
      %v717 = vrot.slane %v607, 1
      %v718 = vsel %vm683, %v715, %v717
      %v719 = vrot.slane %v608, 1
      %v720 = vrot.slane %v609, 1
      %v721 = vsel %vm683, %v719, %v720
      %v722 = vrot.slane %v610, 1
      %v723 = vsel %vm683, %v720, %v722
      %v724 = vrot.slane %v611, 1
      %v725 = vrot.slane %v612, 1
      %v726 = vsel %vm683, %v724, %v725
      %v727 = vrot.slane %v613, 1
      %v728 = vsel %vm683, %v725, %v727
      %v729 = vrot.slane %v614, 1
      %v730 = vrot.slane %v615, 1
      %v731 = vsel %vm683, %v729, %v730
      %v732 = vrot.slane %v616, 1
      %v733 = vsel %vm683, %v730, %v732
      %v734 = vrot.slane %v617, 1
      %v735 = vrot.slane %v618, 1
      %v736 = vsel %vm683, %v734, %v735
      %v737 = vrot.slane %v619, 1
      %v738 = vsel %vm683, %v735, %v737
      %v739 = vrot.slane %v620, 1
      %v740 = vrot.slane %v621, 1
      %v741 = vsel %vm683, %v739, %v740
      %v742 = vrot.slane %v622, 1
      %v743 = vsel %vm683, %v740, %v742
      %v744 = vrot.slane %v623, 1
      %v745 = vrot.slane %v624, 1
      %v746 = vsel %vm683, %v744, %v745
      %v747 = vrot.slane %v625, 1
      %v748 = vsel %vm683, %v745, %v747
      %v749 = vrot.slane %v626, 1
      %v750 = vrot.slane %v627, 1
      %v751 = vsel %vm683, %v749, %v750
      %v752 = vrot.slane %v628, 1
      %v753 = vsel %vm683, %v750, %v752
      %v754 = vrot.slane %v629, 1
      %v755 = vrot.slane %v630, 1
      %v756 = vsel %vm683, %v754, %v755
      %v757 = vrot.slane %v631, 1
      %v758 = vsel %vm683, %v755, %v757
      %v759 = vrot.slane %v632, 1
      %v760 = vrot.slane %v633, 1
      %v761 = vsel %vm683, %v759, %v760
      %v762 = vrot.slane %v634, 1
      %v763 = vsel %vm683, %v760, %v762
      %vm796 = vcmask 1045504
      %v797 = vrot.slane %v587, 2
      %v798 = vrot.slane %v588, 2
      %v799 = vsel %vm796, %v797, %v798
      %v800 = vrot.slane %v589, 2
      %v801 = vsel %vm796, %v798, %v800
      %v802 = vrot.slane %v590, 2
      %v803 = vrot.slane %v591, 2
      %v804 = vsel %vm796, %v802, %v803
      %v805 = vrot.slane %v592, 2
      %v806 = vsel %vm796, %v803, %v805
      %v807 = vrot.slane %v593, 2
      %v808 = vrot.slane %v594, 2
      %v809 = vsel %vm796, %v807, %v808
      %v810 = vrot.slane %v595, 2
      %v811 = vsel %vm796, %v808, %v810
      %v812 = vrot.slane %v596, 2
      %v813 = vrot.slane %v597, 2
      %v814 = vsel %vm796, %v812, %v813
      %v815 = vrot.slane %v598, 2
      %v816 = vsel %vm796, %v813, %v815
      %v817 = vrot.slane %v599, 2
      %v818 = vrot.slane %v600, 2
      %v819 = vsel %vm796, %v817, %v818
      %v820 = vrot.slane %v601, 2
      %v821 = vsel %vm796, %v818, %v820
      %v822 = vrot.slane %v602, 2
      %v823 = vrot.slane %v603, 2
      %v824 = vsel %vm796, %v822, %v823
      %v825 = vrot.slane %v604, 2
      %v826 = vsel %vm796, %v823, %v825
      %v827 = vrot.slane %v605, 2
      %v828 = vrot.slane %v606, 2
      %v829 = vsel %vm796, %v827, %v828
      %v830 = vrot.slane %v607, 2
      %v831 = vsel %vm796, %v828, %v830
      %v832 = vrot.slane %v608, 2
      %v833 = vrot.slane %v609, 2
      %v834 = vsel %vm796, %v832, %v833
      %v835 = vrot.slane %v610, 2
      %v836 = vsel %vm796, %v833, %v835
      %v837 = vrot.slane %v611, 2
      %v838 = vrot.slane %v612, 2
      %v839 = vsel %vm796, %v837, %v838
      %v840 = vrot.slane %v613, 2
      %v841 = vsel %vm796, %v838, %v840
      %v842 = vrot.slane %v614, 2
      %v843 = vrot.slane %v615, 2
      %v844 = vsel %vm796, %v842, %v843
      %v845 = vrot.slane %v616, 2
      %v846 = vsel %vm796, %v843, %v845
      %v847 = vrot.slane %v617, 2
      %v848 = vrot.slane %v618, 2
      %v849 = vsel %vm796, %v847, %v848
      %v850 = vrot.slane %v619, 2
      %v851 = vsel %vm796, %v848, %v850
      %v852 = vrot.slane %v620, 2
      %v853 = vrot.slane %v621, 2
      %v854 = vsel %vm796, %v852, %v853
      %v855 = vrot.slane %v622, 2
      %v856 = vsel %vm796, %v853, %v855
      %v857 = vrot.slane %v623, 2
      %v858 = vrot.slane %v624, 2
      %v859 = vsel %vm796, %v857, %v858
      %v860 = vrot.slane %v625, 2
      %v861 = vsel %vm796, %v858, %v860
      %v862 = vrot.slane %v626, 2
      %v863 = vrot.slane %v627, 2
      %v864 = vsel %vm796, %v862, %v863
      %v865 = vrot.slane %v628, 2
      %v866 = vsel %vm796, %v863, %v865
      %v867 = vrot.slane %v629, 2
      %v868 = vrot.slane %v630, 2
      %v869 = vsel %vm796, %v867, %v868
      %v870 = vrot.slane %v631, 2
      %v871 = vsel %vm796, %v868, %v870
      %v872 = vrot.slane %v632, 2
      %v873 = vrot.slane %v633, 2
      %v874 = vsel %vm796, %v872, %v873
      %v875 = vrot.slane %v634, 2
      %v876 = vsel %vm796, %v873, %v875
      %v909 = vpack.c.bf16 %v588, %v587
      %v910 = vpack.c.bf16 %v688, %v686
      %v911 = vpack.c.bf16 %v801, %v799
      %v912 = vpack.c.bf16 %v591, %v590
      %v913 = vpack.c.bf16 %v693, %v691
      %v914 = vpack.c.bf16 %v806, %v804
      %v915 = vpack.c.bf16 %v594, %v593
      %v916 = vpack.c.bf16 %v698, %v696
      %v917 = vpack.c.bf16 %v811, %v809
      %v918 = vpack.c.bf16 %v597, %v596
      %v919 = vpack.c.bf16 %v703, %v701
      %v920 = vpack.c.bf16 %v816, %v814
      %v921 = vpack.c.bf16 %v600, %v599
      %v922 = vpack.c.bf16 %v708, %v706
      %v923 = vpack.c.bf16 %v821, %v819
      %v924 = vpack.c.bf16 %v603, %v602
      %v925 = vpack.c.bf16 %v713, %v711
      %v926 = vpack.c.bf16 %v826, %v824
      %v927 = vpack.c.bf16 %v606, %v605
      %v928 = vpack.c.bf16 %v718, %v716
      %v929 = vpack.c.bf16 %v831, %v829
      %v930 = vpack.c.bf16 %v609, %v608
      %v931 = vpack.c.bf16 %v723, %v721
      %v932 = vpack.c.bf16 %v836, %v834
      %v933 = vpack.c.bf16 %v612, %v611
      %v934 = vpack.c.bf16 %v728, %v726
      %v935 = vpack.c.bf16 %v841, %v839
      %v936 = vpack.c.bf16 %v615, %v614
      %v937 = vpack.c.bf16 %v733, %v731
      %v938 = vpack.c.bf16 %v846, %v844
      %v939 = vpack.c.bf16 %v618, %v617
      %v940 = vpack.c.bf16 %v738, %v736
      %v941 = vpack.c.bf16 %v851, %v849
      %v942 = vpack.c.bf16 %v621, %v620
      %v943 = vpack.c.bf16 %v743, %v741
      %v944 = vpack.c.bf16 %v856, %v854
      %v945 = vpack.c.bf16 %v624, %v623
      %v946 = vpack.c.bf16 %v748, %v746
      %v947 = vpack.c.bf16 %v861, %v859
      %v948 = vpack.c.bf16 %v627, %v626
      %v949 = vpack.c.bf16 %v753, %v751
      %v950 = vpack.c.bf16 %v866, %v864
      %v951 = vpack.c.bf16 %v630, %v629
      %v952 = vpack.c.bf16 %v758, %v756
      %v953 = vpack.c.bf16 %v871, %v869
      %v954 = vpack.c.bf16 %v633, %v632
      %v955 = vpack.c.bf16 %v763, %v761
      %v956 = vpack.c.bf16 %v876, %v874
      %v957 = vld [vmem:[%s3] sm:$0xf]
      %v958 = vld [vmem:[%s3 + $0x4] sm:$0xf]
      %v959 = vld [vmem:[%s3 + $0x8] sm:$0xf]
      %v960 = vld [vmem:[%s3 + $0xc] sm:$0xf]
      %v961 = vld [vmem:[%s3 + $0x10] sm:$0xf]
      %v962 = vld [vmem:[%s3 + $0x14] sm:$0xf]
      %v963 = vld [vmem:[%s3 + $0x18] sm:$0xf]
      %v964 = vld [vmem:[%s3 + $0x1c] sm:$0xf]
      %v965 = vld [vmem:[%s3 + $0x20] sm:$0xf]
      %v966 = vld [vmem:[%s3 + $0x24] sm:$0xf]
      %v967 = vld [vmem:[%s3 + $0x28] sm:$0xf]
      %v968 = vld [vmem:[%s3 + $0x2c] sm:$0xf]
      %v969 = vld [vmem:[%s3 + $0x30] sm:$0xf]
      %v970 = vld [vmem:[%s3 + $0x34] sm:$0xf]
      %v971 = vld [vmem:[%s3 + $0x38] sm:$0xf]
      %v972 = vld [vmem:[%s3 + $0x3c] sm:$0xf]
      %v973 = vld [vmem:[%s3 + $0x40] sm:$0xf]
      %v974 = vld [vmem:[%s3 + $0x44] sm:$0xf]
      %v975 = vld [vmem:[%s3 + $0x48] sm:$0xf]
      %v976 = vld [vmem:[%s3 + $0x4c] sm:$0xf]
      %v977 = vld [vmem:[%s3 + $0x50] sm:$0xf]
      %v978 = vld [vmem:[%s3 + $0x54] sm:$0xf]
      %v979 = vld [vmem:[%s3 + $0x58] sm:$0xf]
      %v980 = vld [vmem:[%s3 + $0x5c] sm:$0xf]
      %v981 = vld [vmem:[%s3 + $0x60] sm:$0xf]
      %v982 = vld [vmem:[%s3 + $0x64] sm:$0xf]
      %v983 = vld [vmem:[%s3 + $0x68] sm:$0xf]
      %v984 = vld [vmem:[%s3 + $0x6c] sm:$0xf]
      %v985 = vld [vmem:[%s3 + $0x70] sm:$0xf]
      %v986 = vld [vmem:[%s3 + $0x74] sm:$0xf]
      %v987 = vld [vmem:[%s3 + $0x78] sm:$0xf]
      %v988 = vld [vmem:[%s3 + $0x7c] sm:$0xf]
      %v989 = vld [vmem:[%s3 + $0x80] sm:$0xf]
      %v990 = vld [vmem:[%s3 + $0x84] sm:$0xf]
      %v991 = vld [vmem:[%s3 + $0x88] sm:$0xf]
      %v992 = vld [vmem:[%s3 + $0x8c] sm:$0xf]
      %v993 = vld [vmem:[%s3 + $0x90] sm:$0xf]
      %v994 = vld [vmem:[%s3 + $0x94] sm:$0xf]
      %v995 = vld [vmem:[%s3 + $0x98] sm:$0xf]
      %v996 = vld [vmem:[%s3 + $0x9c] sm:$0xf]
      %v997 = vld [vmem:[%s3 + $0xa0] sm:$0xf]
      %v998 = vld [vmem:[%s3 + $0xa4] sm:$0xf]
      %v999 = vld [vmem:[%s3 + $0xa8] sm:$0xf]
      %v1000 = vld [vmem:[%s3 + $0xac] sm:$0xf]
      %v1001 = vld [vmem:[%s3 + $0xb0] sm:$0xf]
      %v1002 = vld [vmem:[%s3 + $0xb4] sm:$0xf]
      %v1003 = vld [vmem:[%s3 + $0xb8] sm:$0xf]
      %v1004 = vld [vmem:[%s3 + $0xbc] sm:$0xf]
      %s1005 = scalar_lea.vmem [#allocation2], 24
      %v1006 = vld [vmem:[%s1005] sm:$0xff]
      %v1007 = vld [vmem:[%s1005 + $0x8] sm:$0xff]
      %v1008 = vld [vmem:[%s1005 + $0x10] sm:$0x3]
      %v1009 = vld [vmem:[%s1005 + $0x18] sm:$0xff]
      %v1010 = vld [vmem:[%s1005 + $0x20] sm:$0xff]
      %v1011 = vld [vmem:[%s1005 + $0x28] sm:$0x3]
      %v1012 = vld [vmem:[%s1005 + $0x30] sm:$0xff]
      %v1013 = vld [vmem:[%s1005 + $0x38] sm:$0xff]
      %v1014 = vld [vmem:[%s1005 + $0x40] sm:$0x3]
      %v1015 = vld [vmem:[%s1005 + $0x48] sm:$0xff]
      %v1016 = vld [vmem:[%s1005 + $0x50] sm:$0xff]
      %v1017 = vld [vmem:[%s1005 + $0x58] sm:$0x3]
      %v1018 = vld [vmem:[%s1005 + $0x60] sm:$0xff]
      %v1019 = vld [vmem:[%s1005 + $0x68] sm:$0xff]
      %v1020 = vld [vmem:[%s1005 + $0x70] sm:$0x3]
      %v1021 = vld [vmem:[%s1005 + $0x78] sm:$0xff]
      %v1022 = vld [vmem:[%s1005 + $0x80] sm:$0xff]
      %v1023 = vld [vmem:[%s1005 + $0x88] sm:$0x3]
      %v1024 = vld [vmem:[%s1005 + $0x90] sm:$0xff]
      %v1025 = vld [vmem:[%s1005 + $0x98] sm:$0xff]
      %v1026 = vld [vmem:[%s1005 + $0xa0] sm:$0x3]
      %v1027 = vld [vmem:[%s1005 + $0xa8] sm:$0xff]
      %v1028 = vld [vmem:[%s1005 + $0xb0] sm:$0xff]
      %v1029 = vld [vmem:[%s1005 + $0xb8] sm:$0x3]
      %v1030 = vld [vmem:[%s1005 + $0xc0] sm:$0xff]
      %v1031 = vld [vmem:[%s1005 + $0xc8] sm:$0xff]
      %v1032 = vld [vmem:[%s1005 + $0xd0] sm:$0x3]
      %v1033 = vld [vmem:[%s1005 + $0xd8] sm:$0xff]
      %v1034 = vld [vmem:[%s1005 + $0xe0] sm:$0xff]
      %v1035 = vld [vmem:[%s1005 + $0xe8] sm:$0x3]
      %v1036 = vld [vmem:[%s1005 + $0xf0] sm:$0xff]
      %v1037 = vld [vmem:[%s1005 + $0xf8] sm:$0xff]
      %v1038 = vld [vmem:[%s1005 + $0x100] sm:$0x3]
      %v1039 = vld [vmem:[%s1005 + $0x108] sm:$0xff]
      %v1040 = vld [vmem:[%s1005 + $0x110] sm:$0xff]
      %v1041 = vld [vmem:[%s1005 + $0x118] sm:$0x3]
      %v1042 = vld [vmem:[%s1005 + $0x120] sm:$0xff]
      %v1043 = vld [vmem:[%s1005 + $0x128] sm:$0xff]
      %v1044 = vld [vmem:[%s1005 + $0x130] sm:$0x3]
      %v1045 = vld [vmem:[%s1005 + $0x138] sm:$0xff]
      %v1046 = vld [vmem:[%s1005 + $0x140] sm:$0xff]
      %v1047 = vld [vmem:[%s1005 + $0x148] sm:$0x3]
      %v1048 = vld [vmem:[%s1005 + $0x150] sm:$0xff]
      %v1049 = vld [vmem:[%s1005 + $0x158] sm:$0xff]
      %v1050 = vld [vmem:[%s1005 + $0x160] sm:$0x3]
      %v1051 = vld [vmem:[%s1005 + $0x168] sm:$0xff]
      %v1052 = vld [vmem:[%s1005 + $0x170] sm:$0xff]
      %v1053 = vld [vmem:[%s1005 + $0x178] sm:$0x3]
      %v1102 = vrot.slane %v1006, 1
      %v1103 = vrot.slane %v1007, 1
      %v1104 = vsel %vm683, %v1102, %v1103
      %v1105 = vrot.slane %v1008, 1
      %v1106 = vsel %vm683, %v1103, %v1105
      %v1107 = vrot.slane %v1009, 1
      %v1108 = vrot.slane %v1010, 1
      %v1109 = vsel %vm683, %v1107, %v1108
      %v1110 = vrot.slane %v1011, 1
      %v1111 = vsel %vm683, %v1108, %v1110
      %v1112 = vrot.slane %v1012, 1
      %v1113 = vrot.slane %v1013, 1
      %v1114 = vsel %vm683, %v1112, %v1113
      %v1115 = vrot.slane %v1014, 1
      %v1116 = vsel %vm683, %v1113, %v1115
      %v1117 = vrot.slane %v1015, 1
      %v1118 = vrot.slane %v1016, 1
      %v1119 = vsel %vm683, %v1117, %v1118
      %v1120 = vrot.slane %v1017, 1
      %v1121 = vsel %vm683, %v1118, %v1120
      %v1122 = vrot.slane %v1018, 1
      %v1123 = vrot.slane %v1019, 1
      %v1124 = vsel %vm683, %v1122, %v1123
      %v1125 = vrot.slane %v1020, 1
      %v1126 = vsel %vm683, %v1123, %v1125
      %v1127 = vrot.slane %v1021, 1
      %v1128 = vrot.slane %v1022, 1
      %v1129 = vsel %vm683, %v1127, %v1128
      %v1130 = vrot.slane %v1023, 1
      %v1131 = vsel %vm683, %v1128, %v1130
      %v1132 = vrot.slane %v1024, 1
      %v1133 = vrot.slane %v1025, 1
      %v1134 = vsel %vm683, %v1132, %v1133
      %v1135 = vrot.slane %v1026, 1
      %v1136 = vsel %vm683, %v1133, %v1135
      %v1137 = vrot.slane %v1027, 1
      %v1138 = vrot.slane %v1028, 1
      %v1139 = vsel %vm683, %v1137, %v1138
      %v1140 = vrot.slane %v1029, 1
      %v1141 = vsel %vm683, %v1138, %v1140
      %v1142 = vrot.slane %v1030, 1
      %v1143 = vrot.slane %v1031, 1
      %v1144 = vsel %vm683, %v1142, %v1143
      %v1145 = vrot.slane %v1032, 1
      %v1146 = vsel %vm683, %v1143, %v1145
      %v1147 = vrot.slane %v1033, 1
      %v1148 = vrot.slane %v1034, 1
      %v1149 = vsel %vm683, %v1147, %v1148
      %v1150 = vrot.slane %v1035, 1
      %v1151 = vsel %vm683, %v1148, %v1150
      %v1152 = vrot.slane %v1036, 1
      %v1153 = vrot.slane %v1037, 1
      %v1154 = vsel %vm683, %v1152, %v1153
      %v1155 = vrot.slane %v1038, 1
      %v1156 = vsel %vm683, %v1153, %v1155
      %v1157 = vrot.slane %v1039, 1
      %v1158 = vrot.slane %v1040, 1
      %v1159 = vsel %vm683, %v1157, %v1158
      %v1160 = vrot.slane %v1041, 1
      %v1161 = vsel %vm683, %v1158, %v1160
      %v1162 = vrot.slane %v1042, 1
      %v1163 = vrot.slane %v1043, 1
      %v1164 = vsel %vm683, %v1162, %v1163
      %v1165 = vrot.slane %v1044, 1
      %v1166 = vsel %vm683, %v1163, %v1165
      %v1167 = vrot.slane %v1045, 1
      %v1168 = vrot.slane %v1046, 1
      %v1169 = vsel %vm683, %v1167, %v1168
      %v1170 = vrot.slane %v1047, 1
      %v1171 = vsel %vm683, %v1168, %v1170
      %v1172 = vrot.slane %v1048, 1
      %v1173 = vrot.slane %v1049, 1
      %v1174 = vsel %vm683, %v1172, %v1173
      %v1175 = vrot.slane %v1050, 1
      %v1176 = vsel %vm683, %v1173, %v1175
      %v1177 = vrot.slane %v1051, 1
      %v1178 = vrot.slane %v1052, 1
      %v1179 = vsel %vm683, %v1177, %v1178
      %v1180 = vrot.slane %v1053, 1
      %v1181 = vsel %vm683, %v1178, %v1180
      %v1214 = vrot.slane %v1006, 2
      %v1215 = vrot.slane %v1007, 2
      %v1216 = vsel %vm796, %v1214, %v1215
      %v1217 = vrot.slane %v1008, 2
      %v1218 = vsel %vm796, %v1215, %v1217
      %v1219 = vrot.slane %v1009, 2
      %v1220 = vrot.slane %v1010, 2
      %v1221 = vsel %vm796, %v1219, %v1220
      %v1222 = vrot.slane %v1011, 2
      %v1223 = vsel %vm796, %v1220, %v1222
      %v1224 = vrot.slane %v1012, 2
      %v1225 = vrot.slane %v1013, 2
      %v1226 = vsel %vm796, %v1224, %v1225
      %v1227 = vrot.slane %v1014, 2
      %v1228 = vsel %vm796, %v1225, %v1227
      %v1229 = vrot.slane %v1015, 2
      %v1230 = vrot.slane %v1016, 2
      %v1231 = vsel %vm796, %v1229, %v1230
      %v1232 = vrot.slane %v1017, 2
      %v1233 = vsel %vm796, %v1230, %v1232
      %v1234 = vrot.slane %v1018, 2
      %v1235 = vrot.slane %v1019, 2
      %v1236 = vsel %vm796, %v1234, %v1235
      %v1237 = vrot.slane %v1020, 2
      %v1238 = vsel %vm796, %v1235, %v1237
      %v1239 = vrot.slane %v1021, 2
      %v1240 = vrot.slane %v1022, 2
      %v1241 = vsel %vm796, %v1239, %v1240
      %v1242 = vrot.slane %v1023, 2
      %v1243 = vsel %vm796, %v1240, %v1242
      %v1244 = vrot.slane %v1024, 2
      %v1245 = vrot.slane %v1025, 2
      %v1246 = vsel %vm796, %v1244, %v1245
      %v1247 = vrot.slane %v1026, 2
      %v1248 = vsel %vm796, %v1245, %v1247
      %v1249 = vrot.slane %v1027, 2
      %v1250 = vrot.slane %v1028, 2
      %v1251 = vsel %vm796, %v1249, %v1250
      %v1252 = vrot.slane %v1029, 2
      %v1253 = vsel %vm796, %v1250, %v1252
      %v1254 = vrot.slane %v1030, 2
      %v1255 = vrot.slane %v1031, 2
      %v1256 = vsel %vm796, %v1254, %v1255
      %v1257 = vrot.slane %v1032, 2
      %v1258 = vsel %vm796, %v1255, %v1257
      %v1259 = vrot.slane %v1033, 2
      %v1260 = vrot.slane %v1034, 2
      %v1261 = vsel %vm796, %v1259, %v1260
      %v1262 = vrot.slane %v1035, 2
      %v1263 = vsel %vm796, %v1260, %v1262
      %v1264 = vrot.slane %v1036, 2
      %v1265 = vrot.slane %v1037, 2
      %v1266 = vsel %vm796, %v1264, %v1265
      %v1267 = vrot.slane %v1038, 2
      %v1268 = vsel %vm796, %v1265, %v1267
      %v1269 = vrot.slane %v1039, 2
      %v1270 = vrot.slane %v1040, 2
      %v1271 = vsel %vm796, %v1269, %v1270
      %v1272 = vrot.slane %v1041, 2
      %v1273 = vsel %vm796, %v1270, %v1272
      %v1274 = vrot.slane %v1042, 2
      %v1275 = vrot.slane %v1043, 2
      %v1276 = vsel %vm796, %v1274, %v1275
      %v1277 = vrot.slane %v1044, 2
      %v1278 = vsel %vm796, %v1275, %v1277
      %v1279 = vrot.slane %v1045, 2
      %v1280 = vrot.slane %v1046, 2
      %v1281 = vsel %vm796, %v1279, %v1280
      %v1282 = vrot.slane %v1047, 2
      %v1283 = vsel %vm796, %v1280, %v1282
      %v1284 = vrot.slane %v1048, 2
      %v1285 = vrot.slane %v1049, 2
      %v1286 = vsel %vm796, %v1284, %v1285
      %v1287 = vrot.slane %v1050, 2
      %v1288 = vsel %vm796, %v1285, %v1287
      %v1289 = vrot.slane %v1051, 2
      %v1290 = vrot.slane %v1052, 2
      %v1291 = vsel %vm796, %v1289, %v1290
      %v1292 = vrot.slane %v1053, 2
      %v1293 = vsel %vm796, %v1290, %v1292
      %v1326 = vpack.c.bf16 %v1007, %v1006
      %v1327 = vpack.c.bf16 %v1106, %v1104
      %v1328 = vpack.c.bf16 %v1218, %v1216
      %v1329 = vpack.c.bf16 %v1010, %v1009
      %v1330 = vpack.c.bf16 %v1111, %v1109
      %v1331 = vpack.c.bf16 %v1223, %v1221
      %v1332 = vpack.c.bf16 %v1013, %v1012
      %v1333 = vpack.c.bf16 %v1116, %v1114
      %v1334 = vpack.c.bf16 %v1228, %v1226
      %v1335 = vpack.c.bf16 %v1016, %v1015
      %v1336 = vpack.c.bf16 %v1121, %v1119
      %v1337 = vpack.c.bf16 %v1233, %v1231
      %v1338 = vpack.c.bf16 %v1019, %v1018
      %v1339 = vpack.c.bf16 %v1126, %v1124
      %v1340 = vpack.c.bf16 %v1238, %v1236
      %v1341 = vpack.c.bf16 %v1022, %v1021
      %v1342 = vpack.c.bf16 %v1131, %v1129
      %v1343 = vpack.c.bf16 %v1243, %v1241
      %v1344 = vpack.c.bf16 %v1025, %v1024
      %v1345 = vpack.c.bf16 %v1136, %v1134
      %v1346 = vpack.c.bf16 %v1248, %v1246
      %v1347 = vpack.c.bf16 %v1028, %v1027
      %v1348 = vpack.c.bf16 %v1141, %v1139
      %v1349 = vpack.c.bf16 %v1253, %v1251
      %v1350 = vpack.c.bf16 %v1031, %v1030
      %v1351 = vpack.c.bf16 %v1146, %v1144
      %v1352 = vpack.c.bf16 %v1258, %v1256
      %v1353 = vpack.c.bf16 %v1034, %v1033
      %v1354 = vpack.c.bf16 %v1151, %v1149
      %v1355 = vpack.c.bf16 %v1263, %v1261
      %v1356 = vpack.c.bf16 %v1037, %v1036
      %v1357 = vpack.c.bf16 %v1156, %v1154
      %v1358 = vpack.c.bf16 %v1268, %v1266
      %v1359 = vpack.c.bf16 %v1040, %v1039
      %v1360 = vpack.c.bf16 %v1161, %v1159
      %v1361 = vpack.c.bf16 %v1273, %v1271
      %v1362 = vpack.c.bf16 %v1043, %v1042
      %v1363 = vpack.c.bf16 %v1166, %v1164
      %v1364 = vpack.c.bf16 %v1278, %v1276
      %v1365 = vpack.c.bf16 %v1046, %v1045
      %v1366 = vpack.c.bf16 %v1171, %v1169
      %v1367 = vpack.c.bf16 %v1283, %v1281
      %v1368 = vpack.c.bf16 %v1049, %v1048
      %v1369 = vpack.c.bf16 %v1176, %v1174
      %v1370 = vpack.c.bf16 %v1288, %v1286
      %v1371 = vpack.c.bf16 %v1052, %v1051
      %v1372 = vpack.c.bf16 %v1181, %v1179
      %v1373 = vpack.c.bf16 %v1293, %v1291
      %s1374 = scalar_lea.vmem %s3, 192
      %v1375 = vld [vmem:[%s1374] sm:$0xf]
      %v1376 = vld [vmem:[%s1374 + $0x4] sm:$0xf]
      %v1377 = vld [vmem:[%s1374 + $0x8] sm:$0xf]
      %v1378 = vld [vmem:[%s1374 + $0xc] sm:$0xf]
      %v1379 = vld [vmem:[%s1374 + $0x10] sm:$0xf]
      %v1380 = vld [vmem:[%s1374 + $0x14] sm:$0xf]
      %v1381 = vld [vmem:[%s1374 + $0x18] sm:$0xf]
      %v1382 = vld [vmem:[%s1374 + $0x1c] sm:$0xf]
      %v1383 = vld [vmem:[%s1374 + $0x20] sm:$0xf]
      %v1384 = vld [vmem:[%s1374 + $0x24] sm:$0xf]
      %v1385 = vld [vmem:[%s1374 + $0x28] sm:$0xf]
      %v1386 = vld [vmem:[%s1374 + $0x2c] sm:$0xf]
      %v1387 = vld [vmem:[%s1374 + $0x30] sm:$0xf]
      %v1388 = vld [vmem:[%s1374 + $0x34] sm:$0xf]
      %v1389 = vld [vmem:[%s1374 + $0x38] sm:$0xf]
      %v1390 = vld [vmem:[%s1374 + $0x3c] sm:$0xf]
      %v1391 = vld [vmem:[%s1374 + $0x40] sm:$0xf]
      %v1392 = vld [vmem:[%s1374 + $0x44] sm:$0xf]
      %v1393 = vld [vmem:[%s1374 + $0x48] sm:$0xf]
      %v1394 = vld [vmem:[%s1374 + $0x4c] sm:$0xf]
      %v1395 = vld [vmem:[%s1374 + $0x50] sm:$0xf]
      %v1396 = vld [vmem:[%s1374 + $0x54] sm:$0xf]
      %v1397 = vld [vmem:[%s1374 + $0x58] sm:$0xf]
      %v1398 = vld [vmem:[%s1374 + $0x5c] sm:$0xf]
      %v1399 = vld [vmem:[%s1374 + $0x60] sm:$0xf]
      %v1400 = vld [vmem:[%s1374 + $0x64] sm:$0xf]
      %v1401 = vld [vmem:[%s1374 + $0x68] sm:$0xf]
      %v1402 = vld [vmem:[%s1374 + $0x6c] sm:$0xf]
      %v1403 = vld [vmem:[%s1374 + $0x70] sm:$0xf]
      %v1404 = vld [vmem:[%s1374 + $0x74] sm:$0xf]
      %v1405 = vld [vmem:[%s1374 + $0x78] sm:$0xf]
      %v1406 = vld [vmem:[%s1374 + $0x7c] sm:$0xf]
      %v1407 = vld [vmem:[%s1374 + $0x80] sm:$0xf]
      %v1408 = vld [vmem:[%s1374 + $0x84] sm:$0xf]
      %v1409 = vld [vmem:[%s1374 + $0x88] sm:$0xf]
      %v1410 = vld [vmem:[%s1374 + $0x8c] sm:$0xf]
      %v1411 = vld [vmem:[%s1374 + $0x90] sm:$0xf]
      %v1412 = vld [vmem:[%s1374 + $0x94] sm:$0xf]
      %v1413 = vld [vmem:[%s1374 + $0x98] sm:$0xf]
      %v1414 = vld [vmem:[%s1374 + $0x9c] sm:$0xf]
      %v1415 = vld [vmem:[%s1374 + $0xa0] sm:$0xf]
      %v1416 = vld [vmem:[%s1374 + $0xa4] sm:$0xf]
      %v1417 = vld [vmem:[%s1374 + $0xa8] sm:$0xf]
      %v1418 = vld [vmem:[%s1374 + $0xac] sm:$0xf]
      %v1419 = vld [vmem:[%s1374 + $0xb0] sm:$0xf]
      %v1420 = vld [vmem:[%s1374 + $0xb4] sm:$0xf]
      %v1421 = vld [vmem:[%s1374 + $0xb8] sm:$0xf]
      %v1422 = vld [vmem:[%s1374 + $0xbc] sm:$0xf]
      %v1471 = vunpack.c.l.b16 %v1375
      %v1472 = vunpack.c.l.b16 %v1376
      %v1473 = vunpack.c.l.b16 %v1377
      %v1474 = vunpack.c.l.b16 %v1378
      %v1475 = vunpack.c.l.b16 %v1379
      %v1476 = vunpack.c.l.b16 %v1380
      %v1477 = vunpack.c.l.b16 %v1381
      %v1478 = vunpack.c.l.b16 %v1382
      %v1479 = vunpack.c.l.b16 %v1383
      %v1480 = vunpack.c.l.b16 %v1384
      %v1481 = vunpack.c.l.b16 %v1385
      %v1482 = vunpack.c.l.b16 %v1386
      %v1483 = vunpack.c.l.b16 %v1387
      %v1484 = vunpack.c.l.b16 %v1388
      %v1485 = vunpack.c.l.b16 %v1389
      %v1486 = vunpack.c.l.b16 %v1390
      %v1487 = vunpack.c.l.b16 %v1391
      %v1488 = vunpack.c.l.b16 %v1392
      %v1489 = vunpack.c.l.b16 %v1393
      %v1490 = vunpack.c.l.b16 %v1394
      %v1491 = vunpack.c.l.b16 %v1395
      %v1492 = vunpack.c.l.b16 %v1396
      %v1493 = vunpack.c.l.b16 %v1397
      %v1494 = vunpack.c.l.b16 %v1398
      %v1495 = vunpack.c.l.b16 %v1399
      %v1496 = vunpack.c.l.b16 %v1400
      %v1497 = vunpack.c.l.b16 %v1401
      %v1498 = vunpack.c.l.b16 %v1402
      %v1499 = vunpack.c.l.b16 %v1403
      %v1500 = vunpack.c.l.b16 %v1404
      %v1501 = vunpack.c.l.b16 %v1405
      %v1502 = vunpack.c.l.b16 %v1406
      %v1503 = vunpack.c.l.b16 %v1407
      %v1504 = vunpack.c.l.b16 %v1408
      %v1505 = vunpack.c.l.b16 %v1409
      %v1506 = vunpack.c.l.b16 %v1410
      %v1507 = vunpack.c.l.b16 %v1411
      %v1508 = vunpack.c.l.b16 %v1412
      %v1509 = vunpack.c.l.b16 %v1413
      %v1510 = vunpack.c.l.b16 %v1414
      %v1511 = vunpack.c.l.b16 %v1415
      %v1512 = vunpack.c.l.b16 %v1416
      %v1513 = vunpack.c.l.b16 %v1417
      %v1514 = vunpack.c.l.b16 %v1418
      %v1515 = vunpack.c.l.b16 %v1419
      %v1516 = vunpack.c.l.b16 %v1420
      %v1517 = vunpack.c.l.b16 %v1421
      %v1518 = vunpack.c.l.b16 %v1422
      %v1519 = vpack.c.b16 %v1472, %v1471
      %v1520 = vpack.c.b16 %v1474, %v1473
      %v1521 = vpack.c.b16 %v1476, %v1475
      %v1522 = vpack.c.b16 %v1478, %v1477
      %v1523 = vpack.c.b16 %v1480, %v1479
      %v1524 = vpack.c.b16 %v1482, %v1481
      %v1525 = vpack.c.b16 %v1484, %v1483
      %v1526 = vpack.c.b16 %v1486, %v1485
      %v1527 = vpack.c.b16 %v1488, %v1487
      %v1528 = vpack.c.b16 %v1490, %v1489
      %v1529 = vpack.c.b16 %v1492, %v1491
      %v1530 = vpack.c.b16 %v1494, %v1493
      %v1531 = vpack.c.b16 %v1496, %v1495
      %v1532 = vpack.c.b16 %v1498, %v1497
      %v1533 = vpack.c.b16 %v1500, %v1499
      %v1534 = vpack.c.b16 %v1502, %v1501
      %v1535 = vpack.c.b16 %v1504, %v1503
      %v1536 = vpack.c.b16 %v1506, %v1505
      %v1537 = vpack.c.b16 %v1508, %v1507
      %v1538 = vpack.c.b16 %v1510, %v1509
      %v1539 = vpack.c.b16 %v1512, %v1511
      %v1540 = vpack.c.b16 %v1514, %v1513
      %v1541 = vpack.c.b16 %v1516, %v1515
      %v1542 = vpack.c.b16 %v1518, %v1517
      %1567 = vmatpush.bf16.msra.mxu0 %v1526
      %1568 = vmatpush.bf16.msra.mxu0 %v1525
      %1569 = vmatpush.bf16.msra.mxu0 %v1524
      %1570 = vmatpush.bf16.msra.mxu0 %v1523
      %1571 = vmatpush.bf16.msra.mxu0 %v1522
      %1572 = vmatpush.bf16.msra.mxu0 %v1521
      %1573 = vmatpush.bf16.msra.mxu0 %v1520
      %1574 = vmatpush.bf16.msra.mxu0 %v1519
      %1575 = vmatmul.bf16.gmra.mxu0 %v1326
      %v1576 = vpop.f32.mrf.mxu0
      %v1577 = vadd.f32 0.0, %v1576
      %v1578 = vpop.f32.mrf.mxu0
      %v1579 = vadd.f32 0.0, %v1578
      %1580 = vmatmul.bf16.gmra.mxu0 %v1329
      %v1581 = vpop.f32.mrf.mxu0
      %v1582 = vadd.f32 0.0, %v1581
      %v1583 = vpop.f32.mrf.mxu0
      %v1584 = vadd.f32 0.0, %v1583
      %1585 = vmatmul.bf16.gmra.mxu0 %v1332
      %v1586 = vpop.f32.mrf.mxu0
      %v1587 = vadd.f32 0.0, %v1586
      %v1588 = vpop.f32.mrf.mxu0
      %v1589 = vadd.f32 0.0, %v1588
      %1590 = vmatmul.bf16.gmra.mxu0 %v1335
      %v1591 = vpop.f32.mrf.mxu0
      %v1592 = vadd.f32 0.0, %v1591
      %v1593 = vpop.f32.mrf.mxu0
      %v1594 = vadd.f32 0.0, %v1593
      %1595 = vmatmul.bf16.gmra.mxu0 %v1338
      %v1596 = vpop.f32.mrf.mxu0
      %v1597 = vadd.f32 0.0, %v1596
      %v1598 = vpop.f32.mrf.mxu0
      %v1599 = vadd.f32 0.0, %v1598
      %1600 = vmatmul.bf16.gmra.mxu0 %v1341
      %v1601 = vpop.f32.mrf.mxu0
      %v1602 = vadd.f32 0.0, %v1601
      %v1603 = vpop.f32.mrf.mxu0
      %v1604 = vadd.f32 0.0, %v1603
      %1605 = vmatmul.bf16.gmra.mxu0 %v1344
      %v1606 = vpop.f32.mrf.mxu0
      %v1607 = vadd.f32 0.0, %v1606
      %v1608 = vpop.f32.mrf.mxu0
      %v1609 = vadd.f32 0.0, %v1608
      %1610 = vmatmul.bf16.gmra.mxu0 %v1347
      %v1611 = vpop.f32.mrf.mxu0
      %v1612 = vadd.f32 0.0, %v1611
      %v1613 = vpop.f32.mrf.mxu0
      %v1614 = vadd.f32 0.0, %v1613
      %1615 = vmatmul.bf16.gmra.mxu0 %v1350
      %v1616 = vpop.f32.mrf.mxu0
      %v1617 = vadd.f32 0.0, %v1616
      %v1618 = vpop.f32.mrf.mxu0
      %v1619 = vadd.f32 0.0, %v1618
      %1620 = vmatmul.bf16.gmra.mxu0 %v1353
      %v1621 = vpop.f32.mrf.mxu0
      %v1622 = vadd.f32 0.0, %v1621
      %v1623 = vpop.f32.mrf.mxu0
      %v1624 = vadd.f32 0.0, %v1623
      %1625 = vmatmul.bf16.gmra.mxu0 %v1356
      %v1626 = vpop.f32.mrf.mxu0
      %v1627 = vadd.f32 0.0, %v1626
      %v1628 = vpop.f32.mrf.mxu0
      %v1629 = vadd.f32 0.0, %v1628
      %1630 = vmatmul.bf16.gmra.mxu0 %v1359
      %v1631 = vpop.f32.mrf.mxu0
      %v1632 = vadd.f32 0.0, %v1631
      %v1633 = vpop.f32.mrf.mxu0
      %v1634 = vadd.f32 0.0, %v1633
      %1635 = vmatmul.bf16.gmra.mxu0 %v1362
      %v1636 = vpop.f32.mrf.mxu0
      %v1637 = vadd.f32 0.0, %v1636
      %v1638 = vpop.f32.mrf.mxu0
      %v1639 = vadd.f32 0.0, %v1638
      %1640 = vmatmul.bf16.gmra.mxu0 %v1365
      %v1641 = vpop.f32.mrf.mxu0
      %v1642 = vadd.f32 0.0, %v1641
      %v1643 = vpop.f32.mrf.mxu0
      %v1644 = vadd.f32 0.0, %v1643
      %1645 = vmatmul.bf16.gmra.mxu0 %v1368
      %v1646 = vpop.f32.mrf.mxu0
      %v1647 = vadd.f32 0.0, %v1646
      %v1648 = vpop.f32.mrf.mxu0
      %v1649 = vadd.f32 0.0, %v1648
      %1650 = vmatmul.bf16.gmra.mxu0 %v1371
      %v1651 = vpop.f32.mrf.mxu0
      %v1652 = vadd.f32 0.0, %v1651
      %v1653 = vpop.f32.mrf.mxu0
      %v1654 = vadd.f32 0.0, %v1653
      %1655 = vdwg.mxu0
      %1656 = vmatpush.bf16.msra.mxu0 %v1534
      %1657 = vmatpush.bf16.msra.mxu0 %v1533
      %1658 = vmatpush.bf16.msra.mxu0 %v1532
      %1659 = vmatpush.bf16.msra.mxu0 %v1531
      %1660 = vmatpush.bf16.msra.mxu0 %v1530
      %1661 = vmatpush.bf16.msra.mxu0 %v1529
      %1662 = vmatpush.bf16.msra.mxu0 %v1528
      %1663 = vmatpush.bf16.msra.mxu0 %v1527
      %1664 = vmatmul.bf16.gmra.mxu0 %v1327
      %v1665 = vpop.f32.mrf.mxu0
      %v1666 = vadd.f32 %v1577, %v1665
      %v1667 = vpop.f32.mrf.mxu0
      %v1668 = vadd.f32 %v1579, %v1667
      %1669 = vmatmul.bf16.gmra.mxu0 %v1330
      %v1670 = vpop.f32.mrf.mxu0
      %v1671 = vadd.f32 %v1582, %v1670
      %v1672 = vpop.f32.mrf.mxu0
      %v1673 = vadd.f32 %v1584, %v1672
      %1674 = vmatmul.bf16.gmra.mxu0 %v1333
      %v1675 = vpop.f32.mrf.mxu0
      %v1676 = vadd.f32 %v1587, %v1675
      %v1677 = vpop.f32.mrf.mxu0
      %v1678 = vadd.f32 %v1589, %v1677
      %1679 = vmatmul.bf16.gmra.mxu0 %v1336
      %v1680 = vpop.f32.mrf.mxu0
      %v1681 = vadd.f32 %v1592, %v1680
      %v1682 = vpop.f32.mrf.mxu0
      %v1683 = vadd.f32 %v1594, %v1682
      %1684 = vmatmul.bf16.gmra.mxu0 %v1339
      %v1685 = vpop.f32.mrf.mxu0
      %v1686 = vadd.f32 %v1597, %v1685
      %v1687 = vpop.f32.mrf.mxu0
      %v1688 = vadd.f32 %v1599, %v1687
      %1689 = vmatmul.bf16.gmra.mxu0 %v1342
      %v1690 = vpop.f32.mrf.mxu0
      %v1691 = vadd.f32 %v1602, %v1690
      %v1692 = vpop.f32.mrf.mxu0
      %v1693 = vadd.f32 %v1604, %v1692
      %1694 = vmatmul.bf16.gmra.mxu0 %v1345
      %v1695 = vpop.f32.mrf.mxu0
      %v1696 = vadd.f32 %v1607, %v1695
      %v1697 = vpop.f32.mrf.mxu0
      %v1698 = vadd.f32 %v1609, %v1697
      %1699 = vmatmul.bf16.gmra.mxu0 %v1348
      %v1700 = vpop.f32.mrf.mxu0
      %v1701 = vadd.f32 %v1612, %v1700
      %v1702 = vpop.f32.mrf.mxu0
      %v1703 = vadd.f32 %v1614, %v1702
      %1704 = vmatmul.bf16.gmra.mxu0 %v1351
      %v1705 = vpop.f32.mrf.mxu0
      %v1706 = vadd.f32 %v1617, %v1705
      %v1707 = vpop.f32.mrf.mxu0
      %v1708 = vadd.f32 %v1619, %v1707
      %1709 = vmatmul.bf16.gmra.mxu0 %v1354
      %v1710 = vpop.f32.mrf.mxu0
      %v1711 = vadd.f32 %v1622, %v1710
      %v1712 = vpop.f32.mrf.mxu0
      %v1713 = vadd.f32 %v1624, %v1712
      %1714 = vmatmul.bf16.gmra.mxu0 %v1357
      %v1715 = vpop.f32.mrf.mxu0
      %v1716 = vadd.f32 %v1627, %v1715
      %v1717 = vpop.f32.mrf.mxu0
      %v1718 = vadd.f32 %v1629, %v1717
      %1719 = vmatmul.bf16.gmra.mxu0 %v1360
      %v1720 = vpop.f32.mrf.mxu0
      %v1721 = vadd.f32 %v1632, %v1720
      %v1722 = vpop.f32.mrf.mxu0
      %v1723 = vadd.f32 %v1634, %v1722
      %1724 = vmatmul.bf16.gmra.mxu0 %v1363
      %v1725 = vpop.f32.mrf.mxu0
      %v1726 = vadd.f32 %v1637, %v1725
      %v1727 = vpop.f32.mrf.mxu0
      %v1728 = vadd.f32 %v1639, %v1727
      %1729 = vmatmul.bf16.gmra.mxu0 %v1366
      %v1730 = vpop.f32.mrf.mxu0
      %v1731 = vadd.f32 %v1642, %v1730
      %v1732 = vpop.f32.mrf.mxu0
      %v1733 = vadd.f32 %v1644, %v1732
      %1734 = vmatmul.bf16.gmra.mxu0 %v1369
      %v1735 = vpop.f32.mrf.mxu0
      %v1736 = vadd.f32 %v1647, %v1735
      %v1737 = vpop.f32.mrf.mxu0
      %v1738 = vadd.f32 %v1649, %v1737
      %1739 = vmatmul.bf16.gmra.mxu0 %v1372
      %v1740 = vpop.f32.mrf.mxu0
      %v1741 = vadd.f32 %v1652, %v1740
      %v1742 = vpop.f32.mrf.mxu0
      %v1743 = vadd.f32 %v1654, %v1742
      %1744 = vdwg.mxu0
      %1745 = vmatpush.bf16.msra.mxu0 %v1542
      %1746 = vmatpush.bf16.msra.mxu0 %v1541
      %1747 = vmatpush.bf16.msra.mxu0 %v1540
      %1748 = vmatpush.bf16.msra.mxu0 %v1539
      %1749 = vmatpush.bf16.msra.mxu0 %v1538
      %1750 = vmatpush.bf16.msra.mxu0 %v1537
      %1751 = vmatpush.bf16.msra.mxu0 %v1536
      %1752 = vmatpush.bf16.msra.mxu0 %v1535
      %1753 = vmatmul.bf16.gmra.mxu0 %v1328
      %v1754 = vpop.f32.mrf.mxu0
      %v1755 = vadd.f32 %v1666, %v1754
      %v1756 = vpop.f32.mrf.mxu0
      %v1757 = vadd.f32 %v1668, %v1756
      %1758 = vmatmul.bf16.gmra.mxu0 %v1331
      %v1759 = vpop.f32.mrf.mxu0
      %v1760 = vadd.f32 %v1671, %v1759
      %v1761 = vpop.f32.mrf.mxu0
      %v1762 = vadd.f32 %v1673, %v1761
      %1763 = vmatmul.bf16.gmra.mxu0 %v1334
      %v1764 = vpop.f32.mrf.mxu0
      %v1765 = vadd.f32 %v1676, %v1764
      %v1766 = vpop.f32.mrf.mxu0
      %v1767 = vadd.f32 %v1678, %v1766
      %1768 = vmatmul.bf16.gmra.mxu0 %v1337
      %v1769 = vpop.f32.mrf.mxu0
      %v1770 = vadd.f32 %v1681, %v1769
      %v1771 = vpop.f32.mrf.mxu0
      %v1772 = vadd.f32 %v1683, %v1771
      %1773 = vmatmul.bf16.gmra.mxu0 %v1340
      %v1774 = vpop.f32.mrf.mxu0
      %v1775 = vadd.f32 %v1686, %v1774
      %v1776 = vpop.f32.mrf.mxu0
      %v1777 = vadd.f32 %v1688, %v1776
      %1778 = vmatmul.bf16.gmra.mxu0 %v1343
      %v1779 = vpop.f32.mrf.mxu0
      %v1780 = vadd.f32 %v1691, %v1779
      %v1781 = vpop.f32.mrf.mxu0
      %v1782 = vadd.f32 %v1693, %v1781
      %1783 = vmatmul.bf16.gmra.mxu0 %v1346
      %v1784 = vpop.f32.mrf.mxu0
      %v1785 = vadd.f32 %v1696, %v1784
      %v1786 = vpop.f32.mrf.mxu0
      %v1787 = vadd.f32 %v1698, %v1786
      %1788 = vmatmul.bf16.gmra.mxu0 %v1349
      %v1789 = vpop.f32.mrf.mxu0
      %v1790 = vadd.f32 %v1701, %v1789
      %v1791 = vpop.f32.mrf.mxu0
      %v1792 = vadd.f32 %v1703, %v1791
      %1793 = vmatmul.bf16.gmra.mxu0 %v1352
      %v1794 = vpop.f32.mrf.mxu0
      %v1795 = vadd.f32 %v1706, %v1794
      %v1796 = vpop.f32.mrf.mxu0
      %v1797 = vadd.f32 %v1708, %v1796
      %1798 = vmatmul.bf16.gmra.mxu0 %v1355
      %v1799 = vpop.f32.mrf.mxu0
      %v1800 = vadd.f32 %v1711, %v1799
      %v1801 = vpop.f32.mrf.mxu0
      %v1802 = vadd.f32 %v1713, %v1801
      %1803 = vmatmul.bf16.gmra.mxu0 %v1358
      %v1804 = vpop.f32.mrf.mxu0
      %v1805 = vadd.f32 %v1716, %v1804
      %v1806 = vpop.f32.mrf.mxu0
      %v1807 = vadd.f32 %v1718, %v1806
      %1808 = vmatmul.bf16.gmra.mxu0 %v1361
      %v1809 = vpop.f32.mrf.mxu0
      %v1810 = vadd.f32 %v1721, %v1809
      %v1811 = vpop.f32.mrf.mxu0
      %v1812 = vadd.f32 %v1723, %v1811
      %1813 = vmatmul.bf16.gmra.mxu0 %v1364
      %v1814 = vpop.f32.mrf.mxu0
      %v1815 = vadd.f32 %v1726, %v1814
      %v1816 = vpop.f32.mrf.mxu0
      %v1817 = vadd.f32 %v1728, %v1816
      %1818 = vmatmul.bf16.gmra.mxu0 %v1367
      %v1819 = vpop.f32.mrf.mxu0
      %v1820 = vadd.f32 %v1731, %v1819
      %v1821 = vpop.f32.mrf.mxu0
      %v1822 = vadd.f32 %v1733, %v1821
      %1823 = vmatmul.bf16.gmra.mxu0 %v1370
      %v1824 = vpop.f32.mrf.mxu0
      %v1825 = vadd.f32 %v1736, %v1824
      %v1826 = vpop.f32.mrf.mxu0
      %v1827 = vadd.f32 %v1738, %v1826
      %1828 = vmatmul.bf16.gmra.mxu0 %v1373
      %v1829 = vpop.f32.mrf.mxu0
      %v1830 = vadd.f32 %v1741, %v1829
      %v1831 = vpop.f32.mrf.mxu0
      %v1832 = vadd.f32 %v1743, %v1831
      %1833 = vdwg.mxu0
      %v1882 = vunpack.c.l.b16 %v957
      %v1883 = vunpack.c.l.b16 %v958
      %v1884 = vunpack.c.l.b16 %v959
      %v1885 = vunpack.c.l.b16 %v960
      %v1886 = vunpack.c.l.b16 %v961
      %v1887 = vunpack.c.l.b16 %v962
      %v1888 = vunpack.c.l.b16 %v963
      %v1889 = vunpack.c.l.b16 %v964
      %v1890 = vunpack.c.l.b16 %v965
      %v1891 = vunpack.c.l.b16 %v966
      %v1892 = vunpack.c.l.b16 %v967
      %v1893 = vunpack.c.l.b16 %v968
      %v1894 = vunpack.c.l.b16 %v969
      %v1895 = vunpack.c.l.b16 %v970
      %v1896 = vunpack.c.l.b16 %v971
      %v1897 = vunpack.c.l.b16 %v972
      %v1898 = vunpack.c.l.b16 %v973
      %v1899 = vunpack.c.l.b16 %v974
      %v1900 = vunpack.c.l.b16 %v975
      %v1901 = vunpack.c.l.b16 %v976
      %v1902 = vunpack.c.l.b16 %v977
      %v1903 = vunpack.c.l.b16 %v978
      %v1904 = vunpack.c.l.b16 %v979
      %v1905 = vunpack.c.l.b16 %v980
      %v1906 = vunpack.c.l.b16 %v981
      %v1907 = vunpack.c.l.b16 %v982
      %v1908 = vunpack.c.l.b16 %v983
      %v1909 = vunpack.c.l.b16 %v984
      %v1910 = vunpack.c.l.b16 %v985
      %v1911 = vunpack.c.l.b16 %v986
      %v1912 = vunpack.c.l.b16 %v987
      %v1913 = vunpack.c.l.b16 %v988
      %v1914 = vunpack.c.l.b16 %v989
      %v1915 = vunpack.c.l.b16 %v990
      %v1916 = vunpack.c.l.b16 %v991
      %v1917 = vunpack.c.l.b16 %v992
      %v1918 = vunpack.c.l.b16 %v993
      %v1919 = vunpack.c.l.b16 %v994
      %v1920 = vunpack.c.l.b16 %v995
      %v1921 = vunpack.c.l.b16 %v996
      %v1922 = vunpack.c.l.b16 %v997
      %v1923 = vunpack.c.l.b16 %v998
      %v1924 = vunpack.c.l.b16 %v999
      %v1925 = vunpack.c.l.b16 %v1000
      %v1926 = vunpack.c.l.b16 %v1001
      %v1927 = vunpack.c.l.b16 %v1002
      %v1928 = vunpack.c.l.b16 %v1003
      %v1929 = vunpack.c.l.b16 %v1004
      %v1930 = vpack.c.b16 %v1883, %v1882
      %v1931 = vpack.c.b16 %v1885, %v1884
      %v1932 = vpack.c.b16 %v1887, %v1886
      %v1933 = vpack.c.b16 %v1889, %v1888
      %v1934 = vpack.c.b16 %v1891, %v1890
      %v1935 = vpack.c.b16 %v1893, %v1892
      %v1936 = vpack.c.b16 %v1895, %v1894
      %v1937 = vpack.c.b16 %v1897, %v1896
      %v1938 = vpack.c.b16 %v1899, %v1898
      %v1939 = vpack.c.b16 %v1901, %v1900
      %v1940 = vpack.c.b16 %v1903, %v1902
      %v1941 = vpack.c.b16 %v1905, %v1904
      %v1942 = vpack.c.b16 %v1907, %v1906
      %v1943 = vpack.c.b16 %v1909, %v1908
      %v1944 = vpack.c.b16 %v1911, %v1910
      %v1945 = vpack.c.b16 %v1913, %v1912
      %v1946 = vpack.c.b16 %v1915, %v1914
      %v1947 = vpack.c.b16 %v1917, %v1916
      %v1948 = vpack.c.b16 %v1919, %v1918
      %v1949 = vpack.c.b16 %v1921, %v1920
      %v1950 = vpack.c.b16 %v1923, %v1922
      %v1951 = vpack.c.b16 %v1925, %v1924
      %v1952 = vpack.c.b16 %v1927, %v1926
      %v1953 = vpack.c.b16 %v1929, %v1928
      %1978 = vmatpush.bf16.msra.mxu0 %v1937
      %1979 = vmatpush.bf16.msra.mxu0 %v1936
      %1980 = vmatpush.bf16.msra.mxu0 %v1935
      %1981 = vmatpush.bf16.msra.mxu0 %v1934
      %1982 = vmatpush.bf16.msra.mxu0 %v1933
      %1983 = vmatpush.bf16.msra.mxu0 %v1932
      %1984 = vmatpush.bf16.msra.mxu0 %v1931
      %1985 = vmatpush.bf16.msra.mxu0 %v1930
      %1986 = vmatmul.bf16.gmra.mxu0 %v909
      %v1987 = vpop.f32.mrf.mxu0
      %v1988 = vadd.f32 %v1755, %v1987
      %v1989 = vpop.f32.mrf.mxu0
      %v1990 = vadd.f32 %v1757, %v1989
      %1991 = vmatmul.bf16.gmra.mxu0 %v912
      %v1992 = vpop.f32.mrf.mxu0
      %v1993 = vadd.f32 %v1760, %v1992
      %v1994 = vpop.f32.mrf.mxu0
      %v1995 = vadd.f32 %v1762, %v1994
      %1996 = vmatmul.bf16.gmra.mxu0 %v915
      %v1997 = vpop.f32.mrf.mxu0
      %v1998 = vadd.f32 %v1765, %v1997
      %v1999 = vpop.f32.mrf.mxu0
      %v2000 = vadd.f32 %v1767, %v1999
      %2001 = vmatmul.bf16.gmra.mxu0 %v918
      %v2002 = vpop.f32.mrf.mxu0
      %v2003 = vadd.f32 %v1770, %v2002
      %v2004 = vpop.f32.mrf.mxu0
      %v2005 = vadd.f32 %v1772, %v2004
      %2006 = vmatmul.bf16.gmra.mxu0 %v921
      %v2007 = vpop.f32.mrf.mxu0
      %v2008 = vadd.f32 %v1775, %v2007
      %v2009 = vpop.f32.mrf.mxu0
      %v2010 = vadd.f32 %v1777, %v2009
      %2011 = vmatmul.bf16.gmra.mxu0 %v924
      %v2012 = vpop.f32.mrf.mxu0
      %v2013 = vadd.f32 %v1780, %v2012
      %v2014 = vpop.f32.mrf.mxu0
      %v2015 = vadd.f32 %v1782, %v2014
      %2016 = vmatmul.bf16.gmra.mxu0 %v927
      %v2017 = vpop.f32.mrf.mxu0
      %v2018 = vadd.f32 %v1785, %v2017
      %v2019 = vpop.f32.mrf.mxu0
      %v2020 = vadd.f32 %v1787, %v2019
      %2021 = vmatmul.bf16.gmra.mxu0 %v930
      %v2022 = vpop.f32.mrf.mxu0
      %v2023 = vadd.f32 %v1790, %v2022
      %v2024 = vpop.f32.mrf.mxu0
      %v2025 = vadd.f32 %v1792, %v2024
      %2026 = vmatmul.bf16.gmra.mxu0 %v933
      %v2027 = vpop.f32.mrf.mxu0
      %v2028 = vadd.f32 %v1795, %v2027
      %v2029 = vpop.f32.mrf.mxu0
      %v2030 = vadd.f32 %v1797, %v2029
      %2031 = vmatmul.bf16.gmra.mxu0 %v936
      %v2032 = vpop.f32.mrf.mxu0
      %v2033 = vadd.f32 %v1800, %v2032
      %v2034 = vpop.f32.mrf.mxu0
      %v2035 = vadd.f32 %v1802, %v2034
      %2036 = vmatmul.bf16.gmra.mxu0 %v939
      %v2037 = vpop.f32.mrf.mxu0
      %v2038 = vadd.f32 %v1805, %v2037
      %v2039 = vpop.f32.mrf.mxu0
      %v2040 = vadd.f32 %v1807, %v2039
      %2041 = vmatmul.bf16.gmra.mxu0 %v942
      %v2042 = vpop.f32.mrf.mxu0
      %v2043 = vadd.f32 %v1810, %v2042
      %v2044 = vpop.f32.mrf.mxu0
      %v2045 = vadd.f32 %v1812, %v2044
      %2046 = vmatmul.bf16.gmra.mxu0 %v945
      %v2047 = vpop.f32.mrf.mxu0
      %v2048 = vadd.f32 %v1815, %v2047
      %v2049 = vpop.f32.mrf.mxu0
      %v2050 = vadd.f32 %v1817, %v2049
      %2051 = vmatmul.bf16.gmra.mxu0 %v948
      %v2052 = vpop.f32.mrf.mxu0
      %v2053 = vadd.f32 %v1820, %v2052
      %v2054 = vpop.f32.mrf.mxu0
      %v2055 = vadd.f32 %v1822, %v2054
      %2056 = vmatmul.bf16.gmra.mxu0 %v951
      %v2057 = vpop.f32.mrf.mxu0
      %v2058 = vadd.f32 %v1825, %v2057
      %v2059 = vpop.f32.mrf.mxu0
      %v2060 = vadd.f32 %v1827, %v2059
      %2061 = vmatmul.bf16.gmra.mxu0 %v954
      %v2062 = vpop.f32.mrf.mxu0
      %v2063 = vadd.f32 %v1830, %v2062
      %v2064 = vpop.f32.mrf.mxu0
      %v2065 = vadd.f32 %v1832, %v2064
      %2066 = vdwg.mxu0
      %2067 = vmatpush.bf16.msra.mxu0 %v1945
      %2068 = vmatpush.bf16.msra.mxu0 %v1944
      %2069 = vmatpush.bf16.msra.mxu0 %v1943
      %2070 = vmatpush.bf16.msra.mxu0 %v1942
      %2071 = vmatpush.bf16.msra.mxu0 %v1941
      %2072 = vmatpush.bf16.msra.mxu0 %v1940
      %2073 = vmatpush.bf16.msra.mxu0 %v1939
      %2074 = vmatpush.bf16.msra.mxu0 %v1938
      %2075 = vmatmul.bf16.gmra.mxu0 %v910
      %v2076 = vpop.f32.mrf.mxu0
      %v2077 = vadd.f32 %v1988, %v2076
      %v2078 = vpop.f32.mrf.mxu0
      %v2079 = vadd.f32 %v1990, %v2078
      %2080 = vmatmul.bf16.gmra.mxu0 %v913
      %v2081 = vpop.f32.mrf.mxu0
      %v2082 = vadd.f32 %v1993, %v2081
      %v2083 = vpop.f32.mrf.mxu0
      %v2084 = vadd.f32 %v1995, %v2083
      %2085 = vmatmul.bf16.gmra.mxu0 %v916
      %v2086 = vpop.f32.mrf.mxu0
      %v2087 = vadd.f32 %v1998, %v2086
      %v2088 = vpop.f32.mrf.mxu0
      %v2089 = vadd.f32 %v2000, %v2088
      %2090 = vmatmul.bf16.gmra.mxu0 %v919
      %v2091 = vpop.f32.mrf.mxu0
      %v2092 = vadd.f32 %v2003, %v2091
      %v2093 = vpop.f32.mrf.mxu0
      %v2094 = vadd.f32 %v2005, %v2093
      %2095 = vmatmul.bf16.gmra.mxu0 %v922
      %v2096 = vpop.f32.mrf.mxu0
      %v2097 = vadd.f32 %v2008, %v2096
      %v2098 = vpop.f32.mrf.mxu0
      %v2099 = vadd.f32 %v2010, %v2098
      %2100 = vmatmul.bf16.gmra.mxu0 %v925
      %v2101 = vpop.f32.mrf.mxu0
      %v2102 = vadd.f32 %v2013, %v2101
      %v2103 = vpop.f32.mrf.mxu0
      %v2104 = vadd.f32 %v2015, %v2103
      %2105 = vmatmul.bf16.gmra.mxu0 %v928
      %v2106 = vpop.f32.mrf.mxu0
      %v2107 = vadd.f32 %v2018, %v2106
      %v2108 = vpop.f32.mrf.mxu0
      %v2109 = vadd.f32 %v2020, %v2108
      %2110 = vmatmul.bf16.gmra.mxu0 %v931
      %v2111 = vpop.f32.mrf.mxu0
      %v2112 = vadd.f32 %v2023, %v2111
      %v2113 = vpop.f32.mrf.mxu0
      %v2114 = vadd.f32 %v2025, %v2113
      %2115 = vmatmul.bf16.gmra.mxu0 %v934
      %v2116 = vpop.f32.mrf.mxu0
      %v2117 = vadd.f32 %v2028, %v2116
      %v2118 = vpop.f32.mrf.mxu0
      %v2119 = vadd.f32 %v2030, %v2118
      %2120 = vmatmul.bf16.gmra.mxu0 %v937
      %v2121 = vpop.f32.mrf.mxu0
      %v2122 = vadd.f32 %v2033, %v2121
      %v2123 = vpop.f32.mrf.mxu0
      %v2124 = vadd.f32 %v2035, %v2123
      %2125 = vmatmul.bf16.gmra.mxu0 %v940
      %v2126 = vpop.f32.mrf.mxu0
      %v2127 = vadd.f32 %v2038, %v2126
      %v2128 = vpop.f32.mrf.mxu0
      %v2129 = vadd.f32 %v2040, %v2128
      %2130 = vmatmul.bf16.gmra.mxu0 %v943
      %v2131 = vpop.f32.mrf.mxu0
      %v2132 = vadd.f32 %v2043, %v2131
      %v2133 = vpop.f32.mrf.mxu0
      %v2134 = vadd.f32 %v2045, %v2133
      %2135 = vmatmul.bf16.gmra.mxu0 %v946
      %v2136 = vpop.f32.mrf.mxu0
      %v2137 = vadd.f32 %v2048, %v2136
      %v2138 = vpop.f32.mrf.mxu0
      %v2139 = vadd.f32 %v2050, %v2138
      %2140 = vmatmul.bf16.gmra.mxu0 %v949
      %v2141 = vpop.f32.mrf.mxu0
      %v2142 = vadd.f32 %v2053, %v2141
      %v2143 = vpop.f32.mrf.mxu0
      %v2144 = vadd.f32 %v2055, %v2143
      %2145 = vmatmul.bf16.gmra.mxu0 %v952
      %v2146 = vpop.f32.mrf.mxu0
      %v2147 = vadd.f32 %v2058, %v2146
      %v2148 = vpop.f32.mrf.mxu0
      %v2149 = vadd.f32 %v2060, %v2148
      %2150 = vmatmul.bf16.gmra.mxu0 %v955
      %v2151 = vpop.f32.mrf.mxu0
      %v2152 = vadd.f32 %v2063, %v2151
      %v2153 = vpop.f32.mrf.mxu0
      %v2154 = vadd.f32 %v2065, %v2153
      %2155 = vdwg.mxu0
      %2156 = vmatpush.bf16.msra.mxu0 %v1953
      %2157 = vmatpush.bf16.msra.mxu0 %v1952
      %2158 = vmatpush.bf16.msra.mxu0 %v1951
      %2159 = vmatpush.bf16.msra.mxu0 %v1950
      %2160 = vmatpush.bf16.msra.mxu0 %v1949
      %2161 = vmatpush.bf16.msra.mxu0 %v1948
      %2162 = vmatpush.bf16.msra.mxu0 %v1947
      %2163 = vmatpush.bf16.msra.mxu0 %v1946
      %2164 = vmatmul.bf16.gmra.mxu0 %v911
      %v2165 = vpop.f32.mrf.mxu0
      %v2166 = vadd.f32 %v2077, %v2165
      %v2167 = vpop.f32.mrf.mxu0
      %v2168 = vadd.f32 %v2079, %v2167
      %2169 = vmatmul.bf16.gmra.mxu0 %v914
      %v2170 = vpop.f32.mrf.mxu0
      %v2171 = vadd.f32 %v2082, %v2170
      %v2172 = vpop.f32.mrf.mxu0
      %v2173 = vadd.f32 %v2084, %v2172
      %2174 = vmatmul.bf16.gmra.mxu0 %v917
      %v2175 = vpop.f32.mrf.mxu0
      %v2176 = vadd.f32 %v2087, %v2175
      %v2177 = vpop.f32.mrf.mxu0
      %v2178 = vadd.f32 %v2089, %v2177
      %2179 = vmatmul.bf16.gmra.mxu0 %v920
      %v2180 = vpop.f32.mrf.mxu0
      %v2181 = vadd.f32 %v2092, %v2180
      %v2182 = vpop.f32.mrf.mxu0
      %v2183 = vadd.f32 %v2094, %v2182
      %2184 = vmatmul.bf16.gmra.mxu0 %v923
      %v2185 = vpop.f32.mrf.mxu0
      %v2186 = vadd.f32 %v2097, %v2185
      %v2187 = vpop.f32.mrf.mxu0
      %v2188 = vadd.f32 %v2099, %v2187
      %2189 = vmatmul.bf16.gmra.mxu0 %v926
      %v2190 = vpop.f32.mrf.mxu0
      %v2191 = vadd.f32 %v2102, %v2190
      %v2192 = vpop.f32.mrf.mxu0
      %v2193 = vadd.f32 %v2104, %v2192
      %2194 = vmatmul.bf16.gmra.mxu0 %v929
      %v2195 = vpop.f32.mrf.mxu0
      %v2196 = vadd.f32 %v2107, %v2195
      %v2197 = vpop.f32.mrf.mxu0
      %v2198 = vadd.f32 %v2109, %v2197
      %2199 = vmatmul.bf16.gmra.mxu0 %v932
      %v2200 = vpop.f32.mrf.mxu0
      %v2201 = vadd.f32 %v2112, %v2200
      %v2202 = vpop.f32.mrf.mxu0
      %v2203 = vadd.f32 %v2114, %v2202
      %2204 = vmatmul.bf16.gmra.mxu0 %v935
      %v2205 = vpop.f32.mrf.mxu0
      %v2206 = vadd.f32 %v2117, %v2205
      %v2207 = vpop.f32.mrf.mxu0
      %v2208 = vadd.f32 %v2119, %v2207
      %2209 = vmatmul.bf16.gmra.mxu0 %v938
      %v2210 = vpop.f32.mrf.mxu0
      %v2211 = vadd.f32 %v2122, %v2210
      %v2212 = vpop.f32.mrf.mxu0
      %v2213 = vadd.f32 %v2124, %v2212
      %2214 = vmatmul.bf16.gmra.mxu0 %v941
      %v2215 = vpop.f32.mrf.mxu0
      %v2216 = vadd.f32 %v2127, %v2215
      %v2217 = vpop.f32.mrf.mxu0
      %v2218 = vadd.f32 %v2129, %v2217
      %2219 = vmatmul.bf16.gmra.mxu0 %v944
      %v2220 = vpop.f32.mrf.mxu0
      %v2221 = vadd.f32 %v2132, %v2220
      %v2222 = vpop.f32.mrf.mxu0
      %v2223 = vadd.f32 %v2134, %v2222
      %2224 = vmatmul.bf16.gmra.mxu0 %v947
      %v2225 = vpop.f32.mrf.mxu0
      %v2226 = vadd.f32 %v2137, %v2225
      %v2227 = vpop.f32.mrf.mxu0
      %v2228 = vadd.f32 %v2139, %v2227
      %2229 = vmatmul.bf16.gmra.mxu0 %v950
      %v2230 = vpop.f32.mrf.mxu0
      %v2231 = vadd.f32 %v2142, %v2230
      %v2232 = vpop.f32.mrf.mxu0
      %v2233 = vadd.f32 %v2144, %v2232
      %2234 = vmatmul.bf16.gmra.mxu0 %v953
      %v2235 = vpop.f32.mrf.mxu0
      %v2236 = vadd.f32 %v2147, %v2235
      %v2237 = vpop.f32.mrf.mxu0
      %v2238 = vadd.f32 %v2149, %v2237
      %2239 = vmatmul.bf16.gmra.mxu0 %v956
      %v2240 = vpop.f32.mrf.mxu0
      %v2241 = vadd.f32 %v2152, %v2240
      %v2242 = vpop.f32.mrf.mxu0
      %v2243 = vadd.f32 %v2154, %v2242
      %2244 = vdwg.mxu0
      %s2245 = scalar_lea.vmem [#allocation2], 48
      %v2246 = vld [vmem:[%s2245] sm:$0xff]
      %v2247 = vld [vmem:[%s2245 + $0x8] sm:$0xff]
      %v2248 = vld [vmem:[%s2245 + $0x10] sm:$0x3]
      %v2249 = vld [vmem:[%s2245 + $0x18] sm:$0xff]
      %v2250 = vld [vmem:[%s2245 + $0x20] sm:$0xff]
      %v2251 = vld [vmem:[%s2245 + $0x28] sm:$0x3]
      %v2252 = vld [vmem:[%s2245 + $0x30] sm:$0xff]
      %v2253 = vld [vmem:[%s2245 + $0x38] sm:$0xff]
      %v2254 = vld [vmem:[%s2245 + $0x40] sm:$0x3]
      %v2255 = vld [vmem:[%s2245 + $0x48] sm:$0xff]
      %v2256 = vld [vmem:[%s2245 + $0x50] sm:$0xff]
      %v2257 = vld [vmem:[%s2245 + $0x58] sm:$0x3]
      %v2258 = vld [vmem:[%s2245 + $0x60] sm:$0xff]
      %v2259 = vld [vmem:[%s2245 + $0x68] sm:$0xff]
      %v2260 = vld [vmem:[%s2245 + $0x70] sm:$0x3]
      %v2261 = vld [vmem:[%s2245 + $0x78] sm:$0xff]
      %v2262 = vld [vmem:[%s2245 + $0x80] sm:$0xff]
      %v2263 = vld [vmem:[%s2245 + $0x88] sm:$0x3]
      %v2264 = vld [vmem:[%s2245 + $0x90] sm:$0xff]
      %v2265 = vld [vmem:[%s2245 + $0x98] sm:$0xff]
      %v2266 = vld [vmem:[%s2245 + $0xa0] sm:$0x3]
      %v2267 = vld [vmem:[%s2245 + $0xa8] sm:$0xff]
      %v2268 = vld [vmem:[%s2245 + $0xb0] sm:$0xff]
      %v2269 = vld [vmem:[%s2245 + $0xb8] sm:$0x3]
      %v2270 = vld [vmem:[%s2245 + $0xc0] sm:$0xff]
      %v2271 = vld [vmem:[%s2245 + $0xc8] sm:$0xff]
      %v2272 = vld [vmem:[%s2245 + $0xd0] sm:$0x3]
      %v2273 = vld [vmem:[%s2245 + $0xd8] sm:$0xff]
      %v2274 = vld [vmem:[%s2245 + $0xe0] sm:$0xff]
      %v2275 = vld [vmem:[%s2245 + $0xe8] sm:$0x3]
      %v2276 = vld [vmem:[%s2245 + $0xf0] sm:$0xff]
      %v2277 = vld [vmem:[%s2245 + $0xf8] sm:$0xff]
      %v2278 = vld [vmem:[%s2245 + $0x100] sm:$0x3]
      %v2279 = vld [vmem:[%s2245 + $0x108] sm:$0xff]
      %v2280 = vld [vmem:[%s2245 + $0x110] sm:$0xff]
      %v2281 = vld [vmem:[%s2245 + $0x118] sm:$0x3]
      %v2282 = vld [vmem:[%s2245 + $0x120] sm:$0xff]
      %v2283 = vld [vmem:[%s2245 + $0x128] sm:$0xff]
      %v2284 = vld [vmem:[%s2245 + $0x130] sm:$0x3]
      %v2285 = vld [vmem:[%s2245 + $0x138] sm:$0xff]
      %v2286 = vld [vmem:[%s2245 + $0x140] sm:$0xff]
      %v2287 = vld [vmem:[%s2245 + $0x148] sm:$0x3]
      %v2288 = vld [vmem:[%s2245 + $0x150] sm:$0xff]
      %v2289 = vld [vmem:[%s2245 + $0x158] sm:$0xff]
      %v2290 = vld [vmem:[%s2245 + $0x160] sm:$0x3]
      %v2291 = vld [vmem:[%s2245 + $0x168] sm:$0xff]
      %v2292 = vld [vmem:[%s2245 + $0x170] sm:$0xff]
      %v2293 = vld [vmem:[%s2245 + $0x178] sm:$0x3]
      %v2342 = vrot.slane %v2246, 1
      %v2343 = vrot.slane %v2247, 1
      %v2344 = vsel %vm683, %v2342, %v2343
      %v2345 = vrot.slane %v2248, 1
      %v2346 = vsel %vm683, %v2343, %v2345
      %v2347 = vrot.slane %v2249, 1
      %v2348 = vrot.slane %v2250, 1
      %v2349 = vsel %vm683, %v2347, %v2348
      %v2350 = vrot.slane %v2251, 1
      %v2351 = vsel %vm683, %v2348, %v2350
      %v2352 = vrot.slane %v2252, 1
      %v2353 = vrot.slane %v2253, 1
      %v2354 = vsel %vm683, %v2352, %v2353
      %v2355 = vrot.slane %v2254, 1
      %v2356 = vsel %vm683, %v2353, %v2355
      %v2357 = vrot.slane %v2255, 1
      %v2358 = vrot.slane %v2256, 1
      %v2359 = vsel %vm683, %v2357, %v2358
      %v2360 = vrot.slane %v2257, 1
      %v2361 = vsel %vm683, %v2358, %v2360
      %v2362 = vrot.slane %v2258, 1
      %v2363 = vrot.slane %v2259, 1
      %v2364 = vsel %vm683, %v2362, %v2363
      %v2365 = vrot.slane %v2260, 1
      %v2366 = vsel %vm683, %v2363, %v2365
      %v2367 = vrot.slane %v2261, 1
      %v2368 = vrot.slane %v2262, 1
      %v2369 = vsel %vm683, %v2367, %v2368
      %v2370 = vrot.slane %v2263, 1
      %v2371 = vsel %vm683, %v2368, %v2370
      %v2372 = vrot.slane %v2264, 1
      %v2373 = vrot.slane %v2265, 1
      %v2374 = vsel %vm683, %v2372, %v2373
      %v2375 = vrot.slane %v2266, 1
      %v2376 = vsel %vm683, %v2373, %v2375
      %v2377 = vrot.slane %v2267, 1
      %v2378 = vrot.slane %v2268, 1
      %v2379 = vsel %vm683, %v2377, %v2378
      %v2380 = vrot.slane %v2269, 1
      %v2381 = vsel %vm683, %v2378, %v2380
      %v2382 = vrot.slane %v2270, 1
      %v2383 = vrot.slane %v2271, 1
      %v2384 = vsel %vm683, %v2382, %v2383
      %v2385 = vrot.slane %v2272, 1
      %v2386 = vsel %vm683, %v2383, %v2385
      %v2387 = vrot.slane %v2273, 1
      %v2388 = vrot.slane %v2274, 1
      %v2389 = vsel %vm683, %v2387, %v2388
      %v2390 = vrot.slane %v2275, 1
      %v2391 = vsel %vm683, %v2388, %v2390
      %v2392 = vrot.slane %v2276, 1
      %v2393 = vrot.slane %v2277, 1
      %v2394 = vsel %vm683, %v2392, %v2393
      %v2395 = vrot.slane %v2278, 1
      %v2396 = vsel %vm683, %v2393, %v2395
      %v2397 = vrot.slane %v2279, 1
      %v2398 = vrot.slane %v2280, 1
      %v2399 = vsel %vm683, %v2397, %v2398
      %v2400 = vrot.slane %v2281, 1
      %v2401 = vsel %vm683, %v2398, %v2400
      %v2402 = vrot.slane %v2282, 1
      %v2403 = vrot.slane %v2283, 1
      %v2404 = vsel %vm683, %v2402, %v2403
      %v2405 = vrot.slane %v2284, 1
      %v2406 = vsel %vm683, %v2403, %v2405
      %v2407 = vrot.slane %v2285, 1
      %v2408 = vrot.slane %v2286, 1
      %v2409 = vsel %vm683, %v2407, %v2408
      %v2410 = vrot.slane %v2287, 1
      %v2411 = vsel %vm683, %v2408, %v2410
      %v2412 = vrot.slane %v2288, 1
      %v2413 = vrot.slane %v2289, 1
      %v2414 = vsel %vm683, %v2412, %v2413
      %v2415 = vrot.slane %v2290, 1
      %v2416 = vsel %vm683, %v2413, %v2415
      %v2417 = vrot.slane %v2291, 1
      %v2418 = vrot.slane %v2292, 1
      %v2419 = vsel %vm683, %v2417, %v2418
      %v2420 = vrot.slane %v2293, 1
      %v2421 = vsel %vm683, %v2418, %v2420
      %v2454 = vrot.slane %v2246, 2
      %v2455 = vrot.slane %v2247, 2
      %v2456 = vsel %vm796, %v2454, %v2455
      %v2457 = vrot.slane %v2248, 2
      %v2458 = vsel %vm796, %v2455, %v2457
      %v2459 = vrot.slane %v2249, 2
      %v2460 = vrot.slane %v2250, 2
      %v2461 = vsel %vm796, %v2459, %v2460
      %v2462 = vrot.slane %v2251, 2
      %v2463 = vsel %vm796, %v2460, %v2462
      %v2464 = vrot.slane %v2252, 2
      %v2465 = vrot.slane %v2253, 2
      %v2466 = vsel %vm796, %v2464, %v2465
      %v2467 = vrot.slane %v2254, 2
      %v2468 = vsel %vm796, %v2465, %v2467
      %v2469 = vrot.slane %v2255, 2
      %v2470 = vrot.slane %v2256, 2
      %v2471 = vsel %vm796, %v2469, %v2470
      %v2472 = vrot.slane %v2257, 2
      %v2473 = vsel %vm796, %v2470, %v2472
      %v2474 = vrot.slane %v2258, 2
      %v2475 = vrot.slane %v2259, 2
      %v2476 = vsel %vm796, %v2474, %v2475
      %v2477 = vrot.slane %v2260, 2
      %v2478 = vsel %vm796, %v2475, %v2477
      %v2479 = vrot.slane %v2261, 2
      %v2480 = vrot.slane %v2262, 2
      %v2481 = vsel %vm796, %v2479, %v2480
      %v2482 = vrot.slane %v2263, 2
      %v2483 = vsel %vm796, %v2480, %v2482
      %v2484 = vrot.slane %v2264, 2
      %v2485 = vrot.slane %v2265, 2
      %v2486 = vsel %vm796, %v2484, %v2485
      %v2487 = vrot.slane %v2266, 2
      %v2488 = vsel %vm796, %v2485, %v2487
      %v2489 = vrot.slane %v2267, 2
      %v2490 = vrot.slane %v2268, 2
      %v2491 = vsel %vm796, %v2489, %v2490
      %v2492 = vrot.slane %v2269, 2
      %v2493 = vsel %vm796, %v2490, %v2492
      %v2494 = vrot.slane %v2270, 2
      %v2495 = vrot.slane %v2271, 2
      %v2496 = vsel %vm796, %v2494, %v2495
      %v2497 = vrot.slane %v2272, 2
      %v2498 = vsel %vm796, %v2495, %v2497
      %v2499 = vrot.slane %v2273, 2
      %v2500 = vrot.slane %v2274, 2
      %v2501 = vsel %vm796, %v2499, %v2500
      %v2502 = vrot.slane %v2275, 2
      %v2503 = vsel %vm796, %v2500, %v2502
      %v2504 = vrot.slane %v2276, 2
      %v2505 = vrot.slane %v2277, 2
      %v2506 = vsel %vm796, %v2504, %v2505
      %v2507 = vrot.slane %v2278, 2
      %v2508 = vsel %vm796, %v2505, %v2507
      %v2509 = vrot.slane %v2279, 2
      %v2510 = vrot.slane %v2280, 2
      %v2511 = vsel %vm796, %v2509, %v2510
      %v2512 = vrot.slane %v2281, 2
      %v2513 = vsel %vm796, %v2510, %v2512
      %v2514 = vrot.slane %v2282, 2
      %v2515 = vrot.slane %v2283, 2
      %v2516 = vsel %vm796, %v2514, %v2515
      %v2517 = vrot.slane %v2284, 2
      %v2518 = vsel %vm796, %v2515, %v2517
      %v2519 = vrot.slane %v2285, 2
      %v2520 = vrot.slane %v2286, 2
      %v2521 = vsel %vm796, %v2519, %v2520
      %v2522 = vrot.slane %v2287, 2
      %v2523 = vsel %vm796, %v2520, %v2522
      %v2524 = vrot.slane %v2288, 2
      %v2525 = vrot.slane %v2289, 2
      %v2526 = vsel %vm796, %v2524, %v2525
      %v2527 = vrot.slane %v2290, 2
      %v2528 = vsel %vm796, %v2525, %v2527
      %v2529 = vrot.slane %v2291, 2
      %v2530 = vrot.slane %v2292, 2
      %v2531 = vsel %vm796, %v2529, %v2530
      %v2532 = vrot.slane %v2293, 2
      %v2533 = vsel %vm796, %v2530, %v2532
      %v2566 = vpack.c.bf16 %v2247, %v2246
      %v2567 = vpack.c.bf16 %v2346, %v2344
      %v2568 = vpack.c.bf16 %v2458, %v2456
      %v2569 = vpack.c.bf16 %v2250, %v2249
      %v2570 = vpack.c.bf16 %v2351, %v2349
      %v2571 = vpack.c.bf16 %v2463, %v2461
      %v2572 = vpack.c.bf16 %v2253, %v2252
      %v2573 = vpack.c.bf16 %v2356, %v2354
      %v2574 = vpack.c.bf16 %v2468, %v2466
      %v2575 = vpack.c.bf16 %v2256, %v2255
      %v2576 = vpack.c.bf16 %v2361, %v2359
      %v2577 = vpack.c.bf16 %v2473, %v2471
      %v2578 = vpack.c.bf16 %v2259, %v2258
      %v2579 = vpack.c.bf16 %v2366, %v2364
      %v2580 = vpack.c.bf16 %v2478, %v2476
      %v2581 = vpack.c.bf16 %v2262, %v2261
      %v2582 = vpack.c.bf16 %v2371, %v2369
      %v2583 = vpack.c.bf16 %v2483, %v2481
      %v2584 = vpack.c.bf16 %v2265, %v2264
      %v2585 = vpack.c.bf16 %v2376, %v2374
      %v2586 = vpack.c.bf16 %v2488, %v2486
      %v2587 = vpack.c.bf16 %v2268, %v2267
      %v2588 = vpack.c.bf16 %v2381, %v2379
      %v2589 = vpack.c.bf16 %v2493, %v2491
      %v2590 = vpack.c.bf16 %v2271, %v2270
      %v2591 = vpack.c.bf16 %v2386, %v2384
      %v2592 = vpack.c.bf16 %v2498, %v2496
      %v2593 = vpack.c.bf16 %v2274, %v2273
      %v2594 = vpack.c.bf16 %v2391, %v2389
      %v2595 = vpack.c.bf16 %v2503, %v2501
      %v2596 = vpack.c.bf16 %v2277, %v2276
      %v2597 = vpack.c.bf16 %v2396, %v2394
      %v2598 = vpack.c.bf16 %v2508, %v2506
      %v2599 = vpack.c.bf16 %v2280, %v2279
      %v2600 = vpack.c.bf16 %v2401, %v2399
      %v2601 = vpack.c.bf16 %v2513, %v2511
      %v2602 = vpack.c.bf16 %v2283, %v2282
      %v2603 = vpack.c.bf16 %v2406, %v2404
      %v2604 = vpack.c.bf16 %v2518, %v2516
      %v2605 = vpack.c.bf16 %v2286, %v2285
      %v2606 = vpack.c.bf16 %v2411, %v2409
      %v2607 = vpack.c.bf16 %v2523, %v2521
      %v2608 = vpack.c.bf16 %v2289, %v2288
      %v2609 = vpack.c.bf16 %v2416, %v2414
      %v2610 = vpack.c.bf16 %v2528, %v2526
      %v2611 = vpack.c.bf16 %v2292, %v2291
      %v2612 = vpack.c.bf16 %v2421, %v2419
      %v2613 = vpack.c.bf16 %v2533, %v2531
      %s2614 = scalar_lea.vmem %s3, 384
      %v2615 = vld [vmem:[%s2614] sm:$0xf]
      %v2616 = vld [vmem:[%s2614 + $0x4] sm:$0xf]
      %v2617 = vld [vmem:[%s2614 + $0x8] sm:$0xf]
      %v2618 = vld [vmem:[%s2614 + $0xc] sm:$0xf]
      %v2619 = vld [vmem:[%s2614 + $0x10] sm:$0xf]
      %v2620 = vld [vmem:[%s2614 + $0x14] sm:$0xf]
      %v2621 = vld [vmem:[%s2614 + $0x18] sm:$0xf]
      %v2622 = vld [vmem:[%s2614 + $0x1c] sm:$0xf]
      %v2623 = vld [vmem:[%s2614 + $0x20] sm:$0xf]
      %v2624 = vld [vmem:[%s2614 + $0x24] sm:$0xf]
      %v2625 = vld [vmem:[%s2614 + $0x28] sm:$0xf]
      %v2626 = vld [vmem:[%s2614 + $0x2c] sm:$0xf]
      %v2627 = vld [vmem:[%s2614 + $0x30] sm:$0xf]
      %v2628 = vld [vmem:[%s2614 + $0x34] sm:$0xf]
      %v2629 = vld [vmem:[%s2614 + $0x38] sm:$0xf]
      %v2630 = vld [vmem:[%s2614 + $0x3c] sm:$0xf]
      %v2631 = vld [vmem:[%s2614 + $0x40] sm:$0xf]
      %v2632 = vld [vmem:[%s2614 + $0x44] sm:$0xf]
      %v2633 = vld [vmem:[%s2614 + $0x48] sm:$0xf]
      %v2634 = vld [vmem:[%s2614 + $0x4c] sm:$0xf]
      %v2635 = vld [vmem:[%s2614 + $0x50] sm:$0xf]
      %v2636 = vld [vmem:[%s2614 + $0x54] sm:$0xf]
      %v2637 = vld [vmem:[%s2614 + $0x58] sm:$0xf]
      %v2638 = vld [vmem:[%s2614 + $0x5c] sm:$0xf]
      %v2639 = vld [vmem:[%s2614 + $0x60] sm:$0xf]
      %v2640 = vld [vmem:[%s2614 + $0x64] sm:$0xf]
      %v2641 = vld [vmem:[%s2614 + $0x68] sm:$0xf]
      %v2642 = vld [vmem:[%s2614 + $0x6c] sm:$0xf]
      %v2643 = vld [vmem:[%s2614 + $0x70] sm:$0xf]
      %v2644 = vld [vmem:[%s2614 + $0x74] sm:$0xf]
      %v2645 = vld [vmem:[%s2614 + $0x78] sm:$0xf]
      %v2646 = vld [vmem:[%s2614 + $0x7c] sm:$0xf]
      %v2647 = vld [vmem:[%s2614 + $0x80] sm:$0xf]
      %v2648 = vld [vmem:[%s2614 + $0x84] sm:$0xf]
      %v2649 = vld [vmem:[%s2614 + $0x88] sm:$0xf]
      %v2650 = vld [vmem:[%s2614 + $0x8c] sm:$0xf]
      %v2651 = vld [vmem:[%s2614 + $0x90] sm:$0xf]
      %v2652 = vld [vmem:[%s2614 + $0x94] sm:$0xf]
      %v2653 = vld [vmem:[%s2614 + $0x98] sm:$0xf]
      %v2654 = vld [vmem:[%s2614 + $0x9c] sm:$0xf]
      %v2655 = vld [vmem:[%s2614 + $0xa0] sm:$0xf]
      %v2656 = vld [vmem:[%s2614 + $0xa4] sm:$0xf]
      %v2657 = vld [vmem:[%s2614 + $0xa8] sm:$0xf]
      %v2658 = vld [vmem:[%s2614 + $0xac] sm:$0xf]
      %v2659 = vld [vmem:[%s2614 + $0xb0] sm:$0xf]
      %v2660 = vld [vmem:[%s2614 + $0xb4] sm:$0xf]
      %v2661 = vld [vmem:[%s2614 + $0xb8] sm:$0xf]
      %v2662 = vld [vmem:[%s2614 + $0xbc] sm:$0xf]
      %v2711 = vunpack.c.l.b16 %v2615
      %v2712 = vunpack.c.l.b16 %v2616
      %v2713 = vunpack.c.l.b16 %v2617
      %v2714 = vunpack.c.l.b16 %v2618
      %v2715 = vunpack.c.l.b16 %v2619
      %v2716 = vunpack.c.l.b16 %v2620
      %v2717 = vunpack.c.l.b16 %v2621
      %v2718 = vunpack.c.l.b16 %v2622
      %v2719 = vunpack.c.l.b16 %v2623
      %v2720 = vunpack.c.l.b16 %v2624
      %v2721 = vunpack.c.l.b16 %v2625
      %v2722 = vunpack.c.l.b16 %v2626
      %v2723 = vunpack.c.l.b16 %v2627
      %v2724 = vunpack.c.l.b16 %v2628
      %v2725 = vunpack.c.l.b16 %v2629
      %v2726 = vunpack.c.l.b16 %v2630
      %v2727 = vunpack.c.l.b16 %v2631
      %v2728 = vunpack.c.l.b16 %v2632
      %v2729 = vunpack.c.l.b16 %v2633
      %v2730 = vunpack.c.l.b16 %v2634
      %v2731 = vunpack.c.l.b16 %v2635
      %v2732 = vunpack.c.l.b16 %v2636
      %v2733 = vunpack.c.l.b16 %v2637
      %v2734 = vunpack.c.l.b16 %v2638
      %v2735 = vunpack.c.l.b16 %v2639
      %v2736 = vunpack.c.l.b16 %v2640
      %v2737 = vunpack.c.l.b16 %v2641
      %v2738 = vunpack.c.l.b16 %v2642
      %v2739 = vunpack.c.l.b16 %v2643
      %v2740 = vunpack.c.l.b16 %v2644
      %v2741 = vunpack.c.l.b16 %v2645
      %v2742 = vunpack.c.l.b16 %v2646
      %v2743 = vunpack.c.l.b16 %v2647
      %v2744 = vunpack.c.l.b16 %v2648
      %v2745 = vunpack.c.l.b16 %v2649
      %v2746 = vunpack.c.l.b16 %v2650
      %v2747 = vunpack.c.l.b16 %v2651
      %v2748 = vunpack.c.l.b16 %v2652
      %v2749 = vunpack.c.l.b16 %v2653
      %v2750 = vunpack.c.l.b16 %v2654
      %v2751 = vunpack.c.l.b16 %v2655
      %v2752 = vunpack.c.l.b16 %v2656
      %v2753 = vunpack.c.l.b16 %v2657
      %v2754 = vunpack.c.l.b16 %v2658
      %v2755 = vunpack.c.l.b16 %v2659
      %v2756 = vunpack.c.l.b16 %v2660
      %v2757 = vunpack.c.l.b16 %v2661
      %v2758 = vunpack.c.l.b16 %v2662
      %v2759 = vpack.c.b16 %v2712, %v2711
      %v2760 = vpack.c.b16 %v2714, %v2713
      %v2761 = vpack.c.b16 %v2716, %v2715
      %v2762 = vpack.c.b16 %v2718, %v2717
      %v2763 = vpack.c.b16 %v2720, %v2719
      %v2764 = vpack.c.b16 %v2722, %v2721
      %v2765 = vpack.c.b16 %v2724, %v2723
      %v2766 = vpack.c.b16 %v2726, %v2725
      %v2767 = vpack.c.b16 %v2728, %v2727
      %v2768 = vpack.c.b16 %v2730, %v2729
      %v2769 = vpack.c.b16 %v2732, %v2731
      %v2770 = vpack.c.b16 %v2734, %v2733
      %v2771 = vpack.c.b16 %v2736, %v2735
      %v2772 = vpack.c.b16 %v2738, %v2737
      %v2773 = vpack.c.b16 %v2740, %v2739
      %v2774 = vpack.c.b16 %v2742, %v2741
      %v2775 = vpack.c.b16 %v2744, %v2743
      %v2776 = vpack.c.b16 %v2746, %v2745
      %v2777 = vpack.c.b16 %v2748, %v2747
      %v2778 = vpack.c.b16 %v2750, %v2749
      %v2779 = vpack.c.b16 %v2752, %v2751
      %v2780 = vpack.c.b16 %v2754, %v2753
      %v2781 = vpack.c.b16 %v2756, %v2755
      %v2782 = vpack.c.b16 %v2758, %v2757
      %2807 = vmatpush.bf16.msra.mxu0 %v2766
      %2808 = vmatpush.bf16.msra.mxu0 %v2765
      %2809 = vmatpush.bf16.msra.mxu0 %v2764
      %2810 = vmatpush.bf16.msra.mxu0 %v2763
      %2811 = vmatpush.bf16.msra.mxu0 %v2762
      %2812 = vmatpush.bf16.msra.mxu0 %v2761
      %2813 = vmatpush.bf16.msra.mxu0 %v2760
      %2814 = vmatpush.bf16.msra.mxu0 %v2759
      %2815 = vmatmul.bf16.gmra.mxu0 %v2566
      %v2816 = vpop.f32.mrf.mxu0
      %v2817 = vadd.f32 0.0, %v2816
      %v2818 = vpop.f32.mrf.mxu0
      %v2819 = vadd.f32 0.0, %v2818
      %2820 = vmatmul.bf16.gmra.mxu0 %v2569
      %v2821 = vpop.f32.mrf.mxu0
      %v2822 = vadd.f32 0.0, %v2821
      %v2823 = vpop.f32.mrf.mxu0
      %v2824 = vadd.f32 0.0, %v2823
      %2825 = vmatmul.bf16.gmra.mxu0 %v2572
      %v2826 = vpop.f32.mrf.mxu0
      %v2827 = vadd.f32 0.0, %v2826
      %v2828 = vpop.f32.mrf.mxu0
      %v2829 = vadd.f32 0.0, %v2828
      %2830 = vmatmul.bf16.gmra.mxu0 %v2575
      %v2831 = vpop.f32.mrf.mxu0
      %v2832 = vadd.f32 0.0, %v2831
      %v2833 = vpop.f32.mrf.mxu0
      %v2834 = vadd.f32 0.0, %v2833
      %2835 = vmatmul.bf16.gmra.mxu0 %v2578
      %v2836 = vpop.f32.mrf.mxu0
      %v2837 = vadd.f32 0.0, %v2836
      %v2838 = vpop.f32.mrf.mxu0
      %v2839 = vadd.f32 0.0, %v2838
      %2840 = vmatmul.bf16.gmra.mxu0 %v2581
      %v2841 = vpop.f32.mrf.mxu0
      %v2842 = vadd.f32 0.0, %v2841
      %v2843 = vpop.f32.mrf.mxu0
      %v2844 = vadd.f32 0.0, %v2843
      %2845 = vmatmul.bf16.gmra.mxu0 %v2584
      %v2846 = vpop.f32.mrf.mxu0
      %v2847 = vadd.f32 0.0, %v2846
      %v2848 = vpop.f32.mrf.mxu0
      %v2849 = vadd.f32 0.0, %v2848
      %2850 = vmatmul.bf16.gmra.mxu0 %v2587
      %v2851 = vpop.f32.mrf.mxu0
      %v2852 = vadd.f32 0.0, %v2851
      %v2853 = vpop.f32.mrf.mxu0
      %v2854 = vadd.f32 0.0, %v2853
      %2855 = vmatmul.bf16.gmra.mxu0 %v2590
      %v2856 = vpop.f32.mrf.mxu0
      %v2857 = vadd.f32 0.0, %v2856
      %v2858 = vpop.f32.mrf.mxu0
      %v2859 = vadd.f32 0.0, %v2858
      %2860 = vmatmul.bf16.gmra.mxu0 %v2593
      %v2861 = vpop.f32.mrf.mxu0
      %v2862 = vadd.f32 0.0, %v2861
      %v2863 = vpop.f32.mrf.mxu0
      %v2864 = vadd.f32 0.0, %v2863
      %2865 = vmatmul.bf16.gmra.mxu0 %v2596
      %v2866 = vpop.f32.mrf.mxu0
      %v2867 = vadd.f32 0.0, %v2866
      %v2868 = vpop.f32.mrf.mxu0
      %v2869 = vadd.f32 0.0, %v2868
      %2870 = vmatmul.bf16.gmra.mxu0 %v2599
      %v2871 = vpop.f32.mrf.mxu0
      %v2872 = vadd.f32 0.0, %v2871
      %v2873 = vpop.f32.mrf.mxu0
      %v2874 = vadd.f32 0.0, %v2873
      %2875 = vmatmul.bf16.gmra.mxu0 %v2602
      %v2876 = vpop.f32.mrf.mxu0
      %v2877 = vadd.f32 0.0, %v2876
      %v2878 = vpop.f32.mrf.mxu0
      %v2879 = vadd.f32 0.0, %v2878
      %2880 = vmatmul.bf16.gmra.mxu0 %v2605
      %v2881 = vpop.f32.mrf.mxu0
      %v2882 = vadd.f32 0.0, %v2881
      %v2883 = vpop.f32.mrf.mxu0
      %v2884 = vadd.f32 0.0, %v2883
      %2885 = vmatmul.bf16.gmra.mxu0 %v2608
      %v2886 = vpop.f32.mrf.mxu0
      %v2887 = vadd.f32 0.0, %v2886
      %v2888 = vpop.f32.mrf.mxu0
      %v2889 = vadd.f32 0.0, %v2888
      %2890 = vmatmul.bf16.gmra.mxu0 %v2611
      %v2891 = vpop.f32.mrf.mxu0
      %v2892 = vadd.f32 0.0, %v2891
      %v2893 = vpop.f32.mrf.mxu0
      %v2894 = vadd.f32 0.0, %v2893
      %2895 = vdwg.mxu0
      %2896 = vmatpush.bf16.msra.mxu0 %v2774
      %2897 = vmatpush.bf16.msra.mxu0 %v2773
      %2898 = vmatpush.bf16.msra.mxu0 %v2772
      %2899 = vmatpush.bf16.msra.mxu0 %v2771
      %2900 = vmatpush.bf16.msra.mxu0 %v2770
      %2901 = vmatpush.bf16.msra.mxu0 %v2769
      %2902 = vmatpush.bf16.msra.mxu0 %v2768
      %2903 = vmatpush.bf16.msra.mxu0 %v2767
      %2904 = vmatmul.bf16.gmra.mxu0 %v2567
      %v2905 = vpop.f32.mrf.mxu0
      %v2906 = vadd.f32 %v2817, %v2905
      %v2907 = vpop.f32.mrf.mxu0
      %v2908 = vadd.f32 %v2819, %v2907
      %2909 = vmatmul.bf16.gmra.mxu0 %v2570
      %v2910 = vpop.f32.mrf.mxu0
      %v2911 = vadd.f32 %v2822, %v2910
      %v2912 = vpop.f32.mrf.mxu0
      %v2913 = vadd.f32 %v2824, %v2912
      %2914 = vmatmul.bf16.gmra.mxu0 %v2573
      %v2915 = vpop.f32.mrf.mxu0
      %v2916 = vadd.f32 %v2827, %v2915
      %v2917 = vpop.f32.mrf.mxu0
      %v2918 = vadd.f32 %v2829, %v2917
      %2919 = vmatmul.bf16.gmra.mxu0 %v2576
      %v2920 = vpop.f32.mrf.mxu0
      %v2921 = vadd.f32 %v2832, %v2920
      %v2922 = vpop.f32.mrf.mxu0
      %v2923 = vadd.f32 %v2834, %v2922
      %2924 = vmatmul.bf16.gmra.mxu0 %v2579
      %v2925 = vpop.f32.mrf.mxu0
      %v2926 = vadd.f32 %v2837, %v2925
      %v2927 = vpop.f32.mrf.mxu0
      %v2928 = vadd.f32 %v2839, %v2927
      %2929 = vmatmul.bf16.gmra.mxu0 %v2582
      %v2930 = vpop.f32.mrf.mxu0
      %v2931 = vadd.f32 %v2842, %v2930
      %v2932 = vpop.f32.mrf.mxu0
      %v2933 = vadd.f32 %v2844, %v2932
      %2934 = vmatmul.bf16.gmra.mxu0 %v2585
      %v2935 = vpop.f32.mrf.mxu0
      %v2936 = vadd.f32 %v2847, %v2935
      %v2937 = vpop.f32.mrf.mxu0
      %v2938 = vadd.f32 %v2849, %v2937
      %2939 = vmatmul.bf16.gmra.mxu0 %v2588
      %v2940 = vpop.f32.mrf.mxu0
      %v2941 = vadd.f32 %v2852, %v2940
      %v2942 = vpop.f32.mrf.mxu0
      %v2943 = vadd.f32 %v2854, %v2942
      %2944 = vmatmul.bf16.gmra.mxu0 %v2591
      %v2945 = vpop.f32.mrf.mxu0
      %v2946 = vadd.f32 %v2857, %v2945
      %v2947 = vpop.f32.mrf.mxu0
      %v2948 = vadd.f32 %v2859, %v2947
      %2949 = vmatmul.bf16.gmra.mxu0 %v2594
      %v2950 = vpop.f32.mrf.mxu0
      %v2951 = vadd.f32 %v2862, %v2950
      %v2952 = vpop.f32.mrf.mxu0
      %v2953 = vadd.f32 %v2864, %v2952
      %2954 = vmatmul.bf16.gmra.mxu0 %v2597
      %v2955 = vpop.f32.mrf.mxu0
      %v2956 = vadd.f32 %v2867, %v2955
      %v2957 = vpop.f32.mrf.mxu0
      %v2958 = vadd.f32 %v2869, %v2957
      %2959 = vmatmul.bf16.gmra.mxu0 %v2600
      %v2960 = vpop.f32.mrf.mxu0
      %v2961 = vadd.f32 %v2872, %v2960
      %v2962 = vpop.f32.mrf.mxu0
      %v2963 = vadd.f32 %v2874, %v2962
      %2964 = vmatmul.bf16.gmra.mxu0 %v2603
      %v2965 = vpop.f32.mrf.mxu0
      %v2966 = vadd.f32 %v2877, %v2965
      %v2967 = vpop.f32.mrf.mxu0
      %v2968 = vadd.f32 %v2879, %v2967
      %2969 = vmatmul.bf16.gmra.mxu0 %v2606
      %v2970 = vpop.f32.mrf.mxu0
      %v2971 = vadd.f32 %v2882, %v2970
      %v2972 = vpop.f32.mrf.mxu0
      %v2973 = vadd.f32 %v2884, %v2972
      %2974 = vmatmul.bf16.gmra.mxu0 %v2609
      %v2975 = vpop.f32.mrf.mxu0
      %v2976 = vadd.f32 %v2887, %v2975
      %v2977 = vpop.f32.mrf.mxu0
      %v2978 = vadd.f32 %v2889, %v2977
      %2979 = vmatmul.bf16.gmra.mxu0 %v2612
      %v2980 = vpop.f32.mrf.mxu0
      %v2981 = vadd.f32 %v2892, %v2980
      %v2982 = vpop.f32.mrf.mxu0
      %v2983 = vadd.f32 %v2894, %v2982
      %2984 = vdwg.mxu0
      %2985 = vmatpush.bf16.msra.mxu0 %v2782
      %2986 = vmatpush.bf16.msra.mxu0 %v2781
      %2987 = vmatpush.bf16.msra.mxu0 %v2780
      %2988 = vmatpush.bf16.msra.mxu0 %v2779
      %2989 = vmatpush.bf16.msra.mxu0 %v2778
      %2990 = vmatpush.bf16.msra.mxu0 %v2777
      %2991 = vmatpush.bf16.msra.mxu0 %v2776
      %2992 = vmatpush.bf16.msra.mxu0 %v2775
      %2993 = vmatmul.bf16.gmra.mxu0 %v2568
      %v2994 = vpop.f32.mrf.mxu0
      %v2995 = vadd.f32 %v2906, %v2994
      %v2996 = vpop.f32.mrf.mxu0
      %v2997 = vadd.f32 %v2908, %v2996
      %2998 = vmatmul.bf16.gmra.mxu0 %v2571
      %v2999 = vpop.f32.mrf.mxu0
      %v3000 = vadd.f32 %v2911, %v2999
      %v3001 = vpop.f32.mrf.mxu0
      %v3002 = vadd.f32 %v2913, %v3001
      %3003 = vmatmul.bf16.gmra.mxu0 %v2574
      %v3004 = vpop.f32.mrf.mxu0
      %v3005 = vadd.f32 %v2916, %v3004
      %v3006 = vpop.f32.mrf.mxu0
      %v3007 = vadd.f32 %v2918, %v3006
      %3008 = vmatmul.bf16.gmra.mxu0 %v2577
      %v3009 = vpop.f32.mrf.mxu0
      %v3010 = vadd.f32 %v2921, %v3009
      %v3011 = vpop.f32.mrf.mxu0
      %v3012 = vadd.f32 %v2923, %v3011
      %3013 = vmatmul.bf16.gmra.mxu0 %v2580
      %v3014 = vpop.f32.mrf.mxu0
      %v3015 = vadd.f32 %v2926, %v3014
      %v3016 = vpop.f32.mrf.mxu0
      %v3017 = vadd.f32 %v2928, %v3016
      %3018 = vmatmul.bf16.gmra.mxu0 %v2583
      %v3019 = vpop.f32.mrf.mxu0
      %v3020 = vadd.f32 %v2931, %v3019
      %v3021 = vpop.f32.mrf.mxu0
      %v3022 = vadd.f32 %v2933, %v3021
      %3023 = vmatmul.bf16.gmra.mxu0 %v2586
      %v3024 = vpop.f32.mrf.mxu0
      %v3025 = vadd.f32 %v2936, %v3024
      %v3026 = vpop.f32.mrf.mxu0
      %v3027 = vadd.f32 %v2938, %v3026
      %3028 = vmatmul.bf16.gmra.mxu0 %v2589
      %v3029 = vpop.f32.mrf.mxu0
      %v3030 = vadd.f32 %v2941, %v3029
      %v3031 = vpop.f32.mrf.mxu0
      %v3032 = vadd.f32 %v2943, %v3031
      %3033 = vmatmul.bf16.gmra.mxu0 %v2592
      %v3034 = vpop.f32.mrf.mxu0
      %v3035 = vadd.f32 %v2946, %v3034
      %v3036 = vpop.f32.mrf.mxu0
      %v3037 = vadd.f32 %v2948, %v3036
      %3038 = vmatmul.bf16.gmra.mxu0 %v2595
      %v3039 = vpop.f32.mrf.mxu0
      %v3040 = vadd.f32 %v2951, %v3039
      %v3041 = vpop.f32.mrf.mxu0
      %v3042 = vadd.f32 %v2953, %v3041
      %3043 = vmatmul.bf16.gmra.mxu0 %v2598
      %v3044 = vpop.f32.mrf.mxu0
      %v3045 = vadd.f32 %v2956, %v3044
      %v3046 = vpop.f32.mrf.mxu0
      %v3047 = vadd.f32 %v2958, %v3046
      %3048 = vmatmul.bf16.gmra.mxu0 %v2601
      %v3049 = vpop.f32.mrf.mxu0
      %v3050 = vadd.f32 %v2961, %v3049
      %v3051 = vpop.f32.mrf.mxu0
      %v3052 = vadd.f32 %v2963, %v3051
      %3053 = vmatmul.bf16.gmra.mxu0 %v2604
      %v3054 = vpop.f32.mrf.mxu0
      %v3055 = vadd.f32 %v2966, %v3054
      %v3056 = vpop.f32.mrf.mxu0
      %v3057 = vadd.f32 %v2968, %v3056
      %3058 = vmatmul.bf16.gmra.mxu0 %v2607
      %v3059 = vpop.f32.mrf.mxu0
      %v3060 = vadd.f32 %v2971, %v3059
      %v3061 = vpop.f32.mrf.mxu0
      %v3062 = vadd.f32 %v2973, %v3061
      %3063 = vmatmul.bf16.gmra.mxu0 %v2610
      %v3064 = vpop.f32.mrf.mxu0
      %v3065 = vadd.f32 %v2976, %v3064
      %v3066 = vpop.f32.mrf.mxu0
      %v3067 = vadd.f32 %v2978, %v3066
      %3068 = vmatmul.bf16.gmra.mxu0 %v2613
      %v3069 = vpop.f32.mrf.mxu0
      %v3070 = vadd.f32 %v2981, %v3069
      %v3071 = vpop.f32.mrf.mxu0
      %v3072 = vadd.f32 %v2983, %v3071
      %3073 = vdwg.mxu0
      %v3074 = vadd.f32 %v2166, %v2995
      %v3075 = vadd.f32 %v2168, %v2997
      %v3076 = vadd.f32 %v2171, %v3000
      %v3077 = vadd.f32 %v2173, %v3002
      %v3078 = vadd.f32 %v2176, %v3005
      %v3079 = vadd.f32 %v2178, %v3007
      %v3080 = vadd.f32 %v2181, %v3010
      %v3081 = vadd.f32 %v2183, %v3012
      %v3082 = vadd.f32 %v2186, %v3015
      %v3083 = vadd.f32 %v2188, %v3017
      %v3084 = vadd.f32 %v2191, %v3020
      %v3085 = vadd.f32 %v2193, %v3022
      %v3086 = vadd.f32 %v2196, %v3025
      %v3087 = vadd.f32 %v2198, %v3027
      %v3088 = vadd.f32 %v2201, %v3030
      %v3089 = vadd.f32 %v2203, %v3032
      %v3090 = vadd.f32 %v2206, %v3035
      %v3091 = vadd.f32 %v2208, %v3037
      %v3092 = vadd.f32 %v2211, %v3040
      %v3093 = vadd.f32 %v2213, %v3042
      %v3094 = vadd.f32 %v2216, %v3045
      %v3095 = vadd.f32 %v2218, %v3047
      %v3096 = vadd.f32 %v2221, %v3050
      %v3097 = vadd.f32 %v2223, %v3052
      %v3098 = vadd.f32 %v2226, %v3055
      %v3099 = vadd.f32 %v2228, %v3057
      %v3100 = vadd.f32 %v2231, %v3060
      %v3101 = vadd.f32 %v2233, %v3062
      %v3102 = vadd.f32 %v2236, %v3065
      %v3103 = vadd.f32 %v2238, %v3067
      %v3104 = vadd.f32 %v2241, %v3070
      %v3105 = vadd.f32 %v2243, %v3072
      %3106 = vst [vmem:[%s231] sm:$0xff] %v3074
      %3107 = vst [vmem:[%s231 + $0x8] sm:$0xff] %v3075
      %3108 = vst [vmem:[%s231 + $0x10] sm:$0xff] %v3076
      %3109 = vst [vmem:[%s231 + $0x18] sm:$0xff] %v3077
      %3110 = vst [vmem:[%s231 + $0x20] sm:$0xff] %v3078
      %3111 = vst [vmem:[%s231 + $0x28] sm:$0xff] %v3079
      %3112 = vst [vmem:[%s231 + $0x30] sm:$0xff] %v3080
      %3113 = vst [vmem:[%s231 + $0x38] sm:$0xff] %v3081
      %3114 = vst [vmem:[%s231 + $0x40] sm:$0xff] %v3082
      %3115 = vst [vmem:[%s231 + $0x48] sm:$0xff] %v3083
      %3116 = vst [vmem:[%s231 + $0x50] sm:$0xff] %v3084
      %3117 = vst [vmem:[%s231 + $0x58] sm:$0xff] %v3085
      %3118 = vst [vmem:[%s231 + $0x60] sm:$0xff] %v3086
      %3119 = vst [vmem:[%s231 + $0x68] sm:$0xff] %v3087
      %3120 = vst [vmem:[%s231 + $0x70] sm:$0xff] %v3088
      %3121 = vst [vmem:[%s231 + $0x78] sm:$0xff] %v3089
      %3122 = vst [vmem:[%s231 + $0x80] sm:$0xff] %v3090
      %3123 = vst [vmem:[%s231 + $0x88] sm:$0xff] %v3091
      %3124 = vst [vmem:[%s231 + $0x90] sm:$0xff] %v3092
      %3125 = vst [vmem:[%s231 + $0x98] sm:$0xff] %v3093
      %3126 = vst [vmem:[%s231 + $0xa0] sm:$0xff] %v3094
      %3127 = vst [vmem:[%s231 + $0xa8] sm:$0xff] %v3095
      %3128 = vst [vmem:[%s231 + $0xb0] sm:$0xff] %v3096
      %3129 = vst [vmem:[%s231 + $0xb8] sm:$0xff] %v3097
      %3130 = vst [vmem:[%s231 + $0xc0] sm:$0xff] %v3098
      %3131 = vst [vmem:[%s231 + $0xc8] sm:$0xff] %v3099
      %3132 = vst [vmem:[%s231 + $0xd0] sm:$0xff] %v3100
      %3133 = vst [vmem:[%s231 + $0xd8] sm:$0xff] %v3101
      %3134 = vst [vmem:[%s231 + $0xe0] sm:$0xff] %v3102
      %3135 = vst [vmem:[%s231 + $0xe8] sm:$0xff] %v3103
      %3136 = vst [vmem:[%s231 + $0xf0] sm:$0xff] %v3104
      %3137 = vst [vmem:[%s231 + $0xf8] sm:$0xff] %v3105
      %v3138 = vadd.f32 %v3074, %v3075
      %v3139 = vadd.f32 %v3138, %v3076
      %v3140 = vadd.f32 %v3139, %v3077
      %v3141 = vadd.f32 %v3140, %v3078
      %v3142 = vadd.f32 %v3141, %v3079
      %v3143 = vadd.f32 %v3142, %v3080
      %v3144 = vadd.f32 %v3143, %v3081
      %v3145 = vadd.f32 %v3144, %v3082
      %v3146 = vadd.f32 %v3145, %v3083
      %v3147 = vadd.f32 %v3146, %v3084
      %v3148 = vadd.f32 %v3147, %v3085
      %v3149 = vadd.f32 %v3148, %v3086
      %v3150 = vadd.f32 %v3149, %v3087
      %v3151 = vadd.f32 %v3150, %v3088
      %v3152 = vadd.f32 %v3151, %v3089
      %v3153 = vadd.f32 %v3152, %v3090
      %v3154 = vadd.f32 %v3153, %v3091
      %v3155 = vadd.f32 %v3154, %v3092
      %v3156 = vadd.f32 %v3155, %v3093
      %v3157 = vadd.f32 %v3156, %v3094
      %v3158 = vadd.f32 %v3157, %v3095
      %v3159 = vadd.f32 %v3158, %v3096
      %v3160 = vadd.f32 %v3159, %v3097
      %v3161 = vadd.f32 %v3160, %v3098
      %v3162 = vadd.f32 %v3161, %v3099
      %v3163 = vadd.f32 %v3162, %v3100
      %v3164 = vadd.f32 %v3163, %v3101
      %v3165 = vadd.f32 %v3164, %v3102
      %v3166 = vadd.f32 %v3165, %v3103
      %v3167 = vadd.f32 %v3166, %v3104
      %v3168 = vadd.f32 %v3167, %v3105
      %v3169 = vrot.slane %v3168, 4
      %v3170 = vadd.f32 %v3168, %v3169
      %v3171 = vrot.slane %v3170, 2
      %v3172 = vadd.f32 %v3170, %v3171
      %v3173 = vrot.slane %v3172, 1
      %v3174 = vadd.f32 %v3172, %v3173
      %v3175 = vmul.f32 %v3074, %v3074
      %v3176 = vmul.f32 %v3075, %v3075
      %v3177 = vmul.f32 %v3076, %v3076
      %v3178 = vmul.f32 %v3077, %v3077
      %v3179 = vmul.f32 %v3078, %v3078
      %v3180 = vmul.f32 %v3079, %v3079
      %v3181 = vmul.f32 %v3080, %v3080
      %v3182 = vmul.f32 %v3081, %v3081
      %v3183 = vmul.f32 %v3082, %v3082
      %v3184 = vmul.f32 %v3083, %v3083
      %v3185 = vmul.f32 %v3084, %v3084
      %v3186 = vmul.f32 %v3085, %v3085
      %v3187 = vmul.f32 %v3086, %v3086
      %v3188 = vmul.f32 %v3087, %v3087
      %v3189 = vmul.f32 %v3088, %v3088
      %v3190 = vmul.f32 %v3089, %v3089
      %v3191 = vmul.f32 %v3090, %v3090
      %v3192 = vmul.f32 %v3091, %v3091
      %v3193 = vmul.f32 %v3092, %v3092
      %v3194 = vmul.f32 %v3093, %v3093
      %v3195 = vmul.f32 %v3094, %v3094
      %v3196 = vmul.f32 %v3095, %v3095
      %v3197 = vmul.f32 %v3096, %v3096
      %v3198 = vmul.f32 %v3097, %v3097
      %v3199 = vmul.f32 %v3098, %v3098
      %v3200 = vmul.f32 %v3099, %v3099
      %v3201 = vmul.f32 %v3100, %v3100
      %v3202 = vmul.f32 %v3101, %v3101
      %v3203 = vmul.f32 %v3102, %v3102
      %v3204 = vmul.f32 %v3103, %v3103
      %v3205 = vmul.f32 %v3104, %v3104
      %v3206 = vmul.f32 %v3105, %v3105
      %v3207 = vadd.f32 %v3175, %v3176
      %v3208 = vadd.f32 %v3207, %v3177
      %v3209 = vadd.f32 %v3208, %v3178
      %v3210 = vadd.f32 %v3209, %v3179
      %v3211 = vadd.f32 %v3210, %v3180
      %v3212 = vadd.f32 %v3211, %v3181
      %v3213 = vadd.f32 %v3212, %v3182
      %v3214 = vadd.f32 %v3213, %v3183
      %v3215 = vadd.f32 %v3214, %v3184
      %v3216 = vadd.f32 %v3215, %v3185
      %v3217 = vadd.f32 %v3216, %v3186
      %v3218 = vadd.f32 %v3217, %v3187
      %v3219 = vadd.f32 %v3218, %v3188
      %v3220 = vadd.f32 %v3219, %v3189
      %v3221 = vadd.f32 %v3220, %v3190
      %v3222 = vadd.f32 %v3221, %v3191
      %v3223 = vadd.f32 %v3222, %v3192
      %v3224 = vadd.f32 %v3223, %v3193
      %v3225 = vadd.f32 %v3224, %v3194
      %v3226 = vadd.f32 %v3225, %v3195
      %v3227 = vadd.f32 %v3226, %v3196
      %v3228 = vadd.f32 %v3227, %v3197
      %v3229 = vadd.f32 %v3228, %v3198
      %v3230 = vadd.f32 %v3229, %v3199
      %v3231 = vadd.f32 %v3230, %v3200
      %v3232 = vadd.f32 %v3231, %v3201
      %v3233 = vadd.f32 %v3232, %v3202
      %v3234 = vadd.f32 %v3233, %v3203
      %v3235 = vadd.f32 %v3234, %v3204
      %v3236 = vadd.f32 %v3235, %v3205
      %v3237 = vadd.f32 %v3236, %v3206
      %v3238 = vrot.slane %v3237, 4
      %v3239 = vadd.f32 %v3237, %v3238
      %v3240 = vrot.slane %v3239, 2
      %v3241 = vadd.f32 %v3239, %v3240
      %v3242 = vrot.slane %v3241, 1
      %v3243 = vadd.f32 %v3241, %v3242
      %v3244 = vsel %vm404, %v3174, %v3243
      %vm3245 = vcmask 1041408
      %v3246 = vsel %vm3245, %v3244, 0.0
      %3247 = vst [vmem:[%s235] sm:$0xff] %v3246
      %p3248 = scmp.lt.s32.totalorder %s17, 1
      %s3249 = scalar_select %p3248, %s17, 1
      %s3250 = smul.addr %s3249, 32
      %s3251 = smul.addr %s3250, 8
      %s3252 = scalar_lea.vmem %s4, %s3251
      %p3253 = scmp.lt.s32.totalorder %s17, 1
      %s3254 = scalar_select %p3253, %s17, 1
      %s3255 = smul.addr %s3254, 8
      %s3256 = scalar_lea.vmem %s5, %s3255
      // Predicated region
      $region37: #{bottleneck_pallas.5} parent=35 // pred_check
        %p3257 = pneg %p124
      $region38: #{bottleneck_pallas.5} parent=35 // pred_check_branch
        %3259 = sbr.rel (%p3257) target = $region40
      $region39: #{bottleneck_pallas.5} parent=35 // pred_region
        _
      $region40: #{bottleneck_pallas.5} parent=35 // pred_fallthru
        _
      // Predicated region
      $region41: #{bottleneck_pallas.5} parent=35 // pred_check
        %p3260 = pneg %p150
      $region42: #{bottleneck_pallas.5} parent=35 // pred_check_branch
        %3262 = sbr.rel (%p3260) target = $region44
      $region43: #{bottleneck_pallas.5} parent=35 // pred_region
        _
      $region44: #{bottleneck_pallas.5} parent=35 // pred_fallthru
        _
    $region36: #{bottleneck_pallas.5} parent=5 // pred_fallthru
      _
    %p3263 = scmp.le.s32.totalorder 2, %s12
    // Predicated region
    $region45: #{bottleneck_pallas.5} parent=5 // pred_check
      %p3264 = pneg %p3263
    $region46: #{bottleneck_pallas.5} parent=5 // pred_check_branch
      %3266 = sbr.rel (%p3264) target = $region48
    $region47: #{bottleneck_pallas.5} parent=5 // pred_region
      %s3267 = ssub.s32 %s12, 2
      // Predicated region
      $region49: #{bottleneck_pallas.5} parent=47 // pred_check
        %p3268 = pneg %p130
      $region50: #{bottleneck_pallas.5} parent=47 // pred_check_branch
        %3270 = sbr.rel (%p3268) target = $region52
      $region51: #{bottleneck_pallas.5} parent=47 // pred_region
        %p3271 = scmp.lt.s32.totalorder %s18, 1
        %s3272 = scalar_select %p3271, %s18, 1
        %s3273 = smul.addr %s3272, 32
        %s3274 = smul.addr %s3273, 8
        %s3275 = scalar_lea.vmem %s4, %s3274
      $region52: #{bottleneck_pallas.5} parent=47 // pred_fallthru
        _
      // Predicated region
      $region53: #{bottleneck_pallas.5} parent=47 // pred_check
        %p3276 = pneg %p156
      $region54: #{bottleneck_pallas.5} parent=47 // pred_check_branch
        %3278 = sbr.rel (%p3276) target = $region56
      $region55: #{bottleneck_pallas.5} parent=47 // pred_region
        %p3279 = scmp.lt.s32.totalorder %s18, 1
        %s3280 = scalar_select %p3279, %s18, 1
        %s3281 = smul.addr %s3280, 8
        %s3282 = scalar_lea.vmem %s5, %s3281
      $region56: #{bottleneck_pallas.5} parent=47 // pred_fallthru
        _
    $region48: #{bottleneck_pallas.5} parent=5 // pred_fallthru
      _
  $region6: #{bottleneck_pallas.5} parent=0 // loop_footer
    %s16 = sadd.s32 1, %s12
  $region7: #{bottleneck_pallas.5} parent=0 // loop_footer_branch
    %11 = sbr.rel target = $region3
  $region8: #{bottleneck_pallas.5} parent=0 // loop_exit
    _

</llo_original>
